<compile_context>
chip_gen: v7x
topology: tpu7x:2x2x1
jax: 0.10.0
libtpu: 0.0.40
codegen_flags: <defaults>
</compile_context>

<pallas_src>
import functools

import jax
import jax.numpy as jnp
from jax import lax
from jax.experimental import pallas as pl
from jax.experimental.pallas import tpu as pltpu


def _fpn_head_kernel(x_ref, w0_ref, w1_ref, mask_ref, o_ref, *, shifts):
    # x_ref   : (Bblk, Cin,  L)  flattened zero-padded planes, L lane-dense
    # w0_ref  : (9, Cmid, Cin)   conv0 weights, tap-major (t = ky*3 + kx)
    # w1_ref  : (9, Cout, Cmid)  conv1 weights, tap-major
    # mask_ref: (1, L)           1.0 at interior plane positions, 0.0 elsewhere
    # o_ref   : (Bblk, Cout, L)  flattened (padded-plane coords) outputs
    b_blk = x_ref.shape[0]
    L = x_ref.shape[2]
    cmid = w0_ref.shape[1]
    cout = w1_ref.shape[1]

    mask = mask_ref[...]                       # (1, L)
    w0 = [w0_ref[t] for t in range(9)]         # 9 x (Cmid, Cin), tiny tiles
    w1 = [w1_ref[t] for t in range(9)]         # 9 x (Cout, Cmid)

    def shifted(v, s):
        # shifted[:, i] == v[:, i + tap_offset] for all interior positions i
        # (roll never wraps real data into the interior: i + off stays in-range).
        return v if s == 0 else pltpu.roll(v, shift=s, axis=1)

    for b in range(b_blk):                     # static unroll, Bblk in {1, B}
        x = x_ref[b]                           # (Cin, L)

        # --- conv0 + ReLU ---
        acc0 = jnp.zeros((cmid, L), dtype=jnp.float32)
        for t, s in enumerate(shifts):
            acc0 = acc0 + jnp.dot(w0[t], shifted(x, s),
                                  preferred_element_type=jnp.float32)
        # ReLU, then zero the padded border so conv1 sees true zero padding.
        mid = jnp.maximum(acc0, 0.0) * mask    # (Cmid, L)

        # --- conv1 + ReLU ---
        acc1 = jnp.zeros((cout, L), dtype=jnp.float32)
        for t, s in enumerate(shifts):
            acc1 = acc1 + jnp.dot(w1[t], shifted(mid, s),
                                  preferred_element_type=jnp.float32)
        o_ref[b] = jnp.maximum(acc1, 0.0).astype(o_ref.dtype)


def fpn_head_pallas(x_nchw, w0_oihw, w1_oihw, *, batch_in_grid=None):
    """FPNHead forward: relu(conv1(relu(conv0(x)))), 3x3 / padding=1 / no bias.

    x_nchw : (B, Cin, H, W)  PyTorch NCHW activations
    w*_oihw: (O, I, 3, 3)    PyTorch Conv2d weight layout
    """
    B, Cin, H, W = x_nchw.shape
    Cmid = w0_oihw.shape[0]
    Cout = w1_oihw.shape[0]
    Hp, Wp = H + 2, W + 2
    l_real = Hp * Wp
    L = pl.cdiv(l_real, 128) * 128             # lane-dense flattened length

    # ---- layout plumbing in plain XLA (no activation transposes) ----
    xp = jnp.pad(x_nchw, ((0, 0), (0, 0), (1, 1), (1, 1)))      # (B,Cin,Hp,Wp)
    x_flat = jnp.pad(xp.reshape(B, Cin, l_real),
                     ((0, 0), (0, 0), (0, L - l_real)))          # (B,Cin,L)

    # weights -> (tap, O, I) with tap index t = ky*3 + kx
    w0_t = jnp.transpose(w0_oihw, (2, 3, 0, 1)).reshape(9, Cmid, Cin)
    w1_t = jnp.transpose(w1_oihw, (2, 3, 0, 1)).reshape(9, Cout, Cmid)

    # interior mask over flattened padded-plane positions
    pos = jnp.arange(L, dtype=jnp.int32)
    hh, ww = pos // Wp, pos % Wp
    interior = (hh >= 1) & (hh <= H) & (ww >= 1) & (ww <= W) & (pos < l_real)
    mask = interior.astype(x_nchw.dtype).reshape(1, L)

    # flat offset of tap (ky, kx) relative to the output pixel, as a roll amount
    # (result[i] = x[i + off]  <=>  roll shift = (-off) % L; no wrap for interior i)
    shifts = tuple((-((ky - 1) * Wp + (kx - 1))) % L
                   for ky in range(3) for kx in range(3))

    # Batch strategy: v7x has 2 TensorCores -> shard batch across cores;
    # single-TC chips (v5e / v6e) -> fuse the whole batch into one grid step.
    if batch_in_grid is None:
        try:
            kind = jax.devices()[0].device_kind.lower().replace(" ", "")
        except Exception:  # pragma: no cover - conservative fallback
            kind = ""
        batch_in_grid = (("v7" in kind) or ("tpu7" in kind)) and B > 1
    b_blk = 1 if batch_in_grid else B
    grid = (B // b_blk,)

    kernel = functools.partial(_fpn_head_kernel, shifts=shifts)
    out_flat = pl.pallas_call(
        kernel,
        out_shape=jax.ShapeDtypeStruct((B, Cout, L), x_nchw.dtype),
        grid_spec=pltpu.PrefetchScalarGridSpec(
            num_scalar_prefetch=0,
            grid=grid,
            in_specs=[
                pl.BlockSpec((b_blk, Cin, L), lambda i: (i, 0, 0)),
                pl.BlockSpec((9, Cmid, Cin), lambda i: (0, 0, 0)),
                pl.BlockSpec((9, Cout, Cmid), lambda i: (0, 0, 0)),
                pl.BlockSpec((1, L), lambda i: (0, 0)),
            ],
            out_specs=pl.BlockSpec((b_blk, Cout, L), lambda i: (i, 0, 0)),
        ),
        compiler_params=pltpu.CompilerParams(
            dimension_semantics=("parallel",) if batch_in_grid else ("arbitrary",)),
    )(x_flat, w0_t, w1_t, mask)

    # Back to (B, Cout, H, W): drop lane padding and the 1-pixel border
    # (wrapper-side slicing/reshaping of a tiny array = layout plumbing only).
    out = out_flat[:, :, :l_real].reshape(B, Cout, Hp, Wp)[:, :, 1:1 + H, 1:1 + W]
    return out


def _reference(x_nchw, w0_oihw, w1_oihw):
    """Pure-JAX reference matching PyTorch semantics (for verification)."""
    def conv(x, w):  # NCHW, OIHW
        return lax.conv_general_dilated(
            x, w, window_strides=(1, 1), padding=((1, 1), (1, 1)),
            dimension_numbers=("NCHW", "OIHW", "NCHW"))
    y = jnp.maximum(conv(x_nchw, w0_oihw), 0.0)
    y = jnp.maximum(conv(y, w1_oihw), 0.0)
    return y


if __name__ == "__main__":
    # FPNHead(num_in=4, num_mid=8, num_out=4), input (B=2, C=4, H=16, W=16)
    num_in, num_mid, num_out = 4, 8, 4
    B, H, W = 2, 16, 16

    key = jax.random.PRNGKey(0)
    kx, k0, k1 = jax.random.split(key, 3)
    x = jax.random.normal(kx, (B, num_in, H, W), dtype=jnp.float32)
    # deterministic synthetic weights (PyTorch Conv2d weight shape: O, I, kH, kW)
    w0 = 0.1 * jax.random.normal(k0, (num_mid, num_in, 3, 3), dtype=jnp.float32)
    w1 = 0.1 * jax.random.normal(k1, (num_out, num_mid, 3, 3), dtype=jnp.float32)

    out = jax.block_until_ready(jax.jit(fpn_head_pallas)(x, w0, w1))
    ref = jax.block_until_ready(_reference(x, w0, w1))

    assert out.shape == (B, num_out, H, W), out.shape
    max_err = float(jnp.max(jnp.abs(out - ref)))
    assert max_err < 1e-4, max_err
    print("KERNEL_OK")
</pallas_src>

<mosaic_0001>
module attributes {stable_mosaic.version = 11 : i64} {
  func.func @_fpn_head_kernel(%arg0: i32, %arg1: memref<2x4x384xf32, #tpu.memory_space<vmem>>, %arg2: memref<9x8x4xf32, #tpu.memory_space<vmem>>, %arg3: memref<9x4x8xf32, #tpu.memory_space<vmem>>, %arg4: memref<1x384xf32, #tpu.memory_space<vmem>>, %arg5: memref<2x4x384xf32, #tpu.memory_space<vmem>>) attributes {dimension_semantics = [#tpu.dimension_semantics<arbitrary>], iteration_bounds = array<i64: 1>, scalar_prefetch = 0 : i64, scratch_operands = 0 : i64, tpu.core_type = #tpu.core_type<tc>, window_params = [{transform_indices = @transform_0, window_bounds = array<i64: 2, 4, 384>}, {pipeline_mode = #tpu.pipeline_mode<synchronous>, transform_indices = @transform_1, window_bounds = array<i64: 9, 8, 4>}, {pipeline_mode = #tpu.pipeline_mode<synchronous>, transform_indices = @transform_2, window_bounds = array<i64: 9, 4, 8>}, {pipeline_mode = #tpu.pipeline_mode<synchronous>, transform_indices = @transform_3, window_bounds = array<i64: 1, 384>}, {transform_indices = @transform_4, window_bounds = array<i64: 2, 4, 384>}]} {
    %c0 = arith.constant 0 : index
    %c0_0 = arith.constant 0 : index
    %0 = vector.load %arg4[%c0, %c0_0] : memref<1x384xf32, #tpu.memory_space<vmem>>, vector<1x384xf32>
    %c0_1 = arith.constant 0 : index
    %c0_2 = arith.constant 0 : index
    %c0_3 = arith.constant 0 : index
    %1 = vector.load %arg2[%c0_1, %c0_2, %c0_3] : memref<9x8x4xf32, #tpu.memory_space<vmem>>, vector<1x8x4xf32>
    %2 = vector.shape_cast %1 : vector<1x8x4xf32> to vector<8x4xf32>
    %c1 = arith.constant 1 : index
    %c0_4 = arith.constant 0 : index
    %c0_5 = arith.constant 0 : index
    %3 = vector.load %arg2[%c1, %c0_4, %c0_5] : memref<9x8x4xf32, #tpu.memory_space<vmem>>, vector<1x8x4xf32>
    %4 = vector.shape_cast %3 : vector<1x8x4xf32> to vector<8x4xf32>
    %c2 = arith.constant 2 : index
    %c0_6 = arith.constant 0 : index
    %c0_7 = arith.constant 0 : index
    %5 = vector.load %arg2[%c2, %c0_6, %c0_7] : memref<9x8x4xf32, #tpu.memory_space<vmem>>, vector<1x8x4xf32>
    %6 = vector.shape_cast %5 : vector<1x8x4xf32> to vector<8x4xf32>
    %c3 = arith.constant 3 : index
    %c0_8 = arith.constant 0 : index
    %c0_9 = arith.constant 0 : index
    %7 = vector.load %arg2[%c3, %c0_8, %c0_9] : memref<9x8x4xf32, #tpu.memory_space<vmem>>, vector<1x8x4xf32>
    %8 = vector.shape_cast %7 : vector<1x8x4xf32> to vector<8x4xf32>
    %c4 = arith.constant 4 : index
    %c0_10 = arith.constant 0 : index
    %c0_11 = arith.constant 0 : index
    %9 = vector.load %arg2[%c4, %c0_10, %c0_11] : memref<9x8x4xf32, #tpu.memory_space<vmem>>, vector<1x8x4xf32>
    %10 = vector.shape_cast %9 : vector<1x8x4xf32> to vector<8x4xf32>
    %c5 = arith.constant 5 : index
    %c0_12 = arith.constant 0 : index
    %c0_13 = arith.constant 0 : index
    %11 = vector.load %arg2[%c5, %c0_12, %c0_13] : memref<9x8x4xf32, #tpu.memory_space<vmem>>, vector<1x8x4xf32>
    %12 = vector.shape_cast %11 : vector<1x8x4xf32> to vector<8x4xf32>
    %c6 = arith.constant 6 : index
    %c0_14 = arith.constant 0 : index
    %c0_15 = arith.constant 0 : index
    %13 = vector.load %arg2[%c6, %c0_14, %c0_15] : memref<9x8x4xf32, #tpu.memory_space<vmem>>, vector<1x8x4xf32>
    %14 = vector.shape_cast %13 : vector<1x8x4xf32> to vector<8x4xf32>
    %c7 = arith.constant 7 : index
    %c0_16 = arith.constant 0 : index
    %c0_17 = arith.constant 0 : index
    %15 = vector.load %arg2[%c7, %c0_16, %c0_17] : memref<9x8x4xf32, #tpu.memory_space<vmem>>, vector<1x8x4xf32>
    %16 = vector.shape_cast %15 : vector<1x8x4xf32> to vector<8x4xf32>
    %c8 = arith.constant 8 : index
    %c0_18 = arith.constant 0 : index
    %c0_19 = arith.constant 0 : index
    %17 = vector.load %arg2[%c8, %c0_18, %c0_19] : memref<9x8x4xf32, #tpu.memory_space<vmem>>, vector<1x8x4xf32>
    %18 = vector.shape_cast %17 : vector<1x8x4xf32> to vector<8x4xf32>
    %c0_20 = arith.constant 0 : index
    %c0_21 = arith.constant 0 : index
    %c0_22 = arith.constant 0 : index
    %19 = vector.load %arg3[%c0_20, %c0_21, %c0_22] : memref<9x4x8xf32, #tpu.memory_space<vmem>>, vector<1x4x8xf32>
    %20 = vector.shape_cast %19 : vector<1x4x8xf32> to vector<4x8xf32>
    %c1_23 = arith.constant 1 : index
    %c0_24 = arith.constant 0 : index
    %c0_25 = arith.constant 0 : index
    %21 = vector.load %arg3[%c1_23, %c0_24, %c0_25] : memref<9x4x8xf32, #tpu.memory_space<vmem>>, vector<1x4x8xf32>
    %22 = vector.shape_cast %21 : vector<1x4x8xf32> to vector<4x8xf32>
    %c2_26 = arith.constant 2 : index
    %c0_27 = arith.constant 0 : index
    %c0_28 = arith.constant 0 : index
    %23 = vector.load %arg3[%c2_26, %c0_27, %c0_28] : memref<9x4x8xf32, #tpu.memory_space<vmem>>, vector<1x4x8xf32>
    %24 = vector.shape_cast %23 : vector<1x4x8xf32> to vector<4x8xf32>
    %c3_29 = arith.constant 3 : index
    %c0_30 = arith.constant 0 : index
    %c0_31 = arith.constant 0 : index
    %25 = vector.load %arg3[%c3_29, %c0_30, %c0_31] : memref<9x4x8xf32, #tpu.memory_space<vmem>>, vector<1x4x8xf32>
    %26 = vector.shape_cast %25 : vector<1x4x8xf32> to vector<4x8xf32>
    %c4_32 = arith.constant 4 : index
    %c0_33 = arith.constant 0 : index
    %c0_34 = arith.constant 0 : index
    %27 = vector.load %arg3[%c4_32, %c0_33, %c0_34] : memref<9x4x8xf32, #tpu.memory_space<vmem>>, vector<1x4x8xf32>
    %28 = vector.shape_cast %27 : vector<1x4x8xf32> to vector<4x8xf32>
    %c5_35 = arith.constant 5 : index
    %c0_36 = arith.constant 0 : index
    %c0_37 = arith.constant 0 : index
    %29 = vector.load %arg3[%c5_35, %c0_36, %c0_37] : memref<9x4x8xf32, #tpu.memory_space<vmem>>, vector<1x4x8xf32>
    %30 = vector.shape_cast %29 : vector<1x4x8xf32> to vector<4x8xf32>
    %c6_38 = arith.constant 6 : index
    %c0_39 = arith.constant 0 : index
    %c0_40 = arith.constant 0 : index
    %31 = vector.load %arg3[%c6_38, %c0_39, %c0_40] : memref<9x4x8xf32, #tpu.memory_space<vmem>>, vector<1x4x8xf32>
    %32 = vector.shape_cast %31 : vector<1x4x8xf32> to vector<4x8xf32>
    %c7_41 = arith.constant 7 : index
    %c0_42 = arith.constant 0 : index
    %c0_43 = arith.constant 0 : index
    %33 = vector.load %arg3[%c7_41, %c0_42, %c0_43] : memref<9x4x8xf32, #tpu.memory_space<vmem>>, vector<1x4x8xf32>
    %34 = vector.shape_cast %33 : vector<1x4x8xf32> to vector<4x8xf32>
    %c8_44 = arith.constant 8 : index
    %c0_45 = arith.constant 0 : index
    %c0_46 = arith.constant 0 : index
    %35 = vector.load %arg3[%c8_44, %c0_45, %c0_46] : memref<9x4x8xf32, #tpu.memory_space<vmem>>, vector<1x4x8xf32>
    %36 = vector.shape_cast %35 : vector<1x4x8xf32> to vector<4x8xf32>
    %c0_47 = arith.constant 0 : index
    %c0_48 = arith.constant 0 : index
    %c0_49 = arith.constant 0 : index
    %37 = vector.load %arg1[%c0_47, %c0_48, %c0_49] : memref<2x4x384xf32, #tpu.memory_space<vmem>>, vector<1x4x384xf32>
    %38 = vector.shape_cast %37 : vector<1x4x384xf32> to vector<4x384xf32>
    %cst = arith.constant 0.000000e+00 : f32
    %39 = vector.broadcast %cst : f32 to vector<8x384xf32>
    %c19_i32 = arith.constant 19 : i32
    %40 = tpu.dynamic_rotate %38 by %c19_i32 dim 1 : vector<4x384xf32>, i32 -> vector<4x384xf32>
    %cst_50 = arith.constant dense<0.000000e+00> : vector<8x384xf32>
    %41 = tpu.matmul %2, %40, %cst_50 {dimension_numbers = #tpu.dot_dimension_numbers<[1], [0], [0], [1], [0, 0, 1, 1], [], []>} : vector<8x4xf32>, vector<4x384xf32>, vector<8x384xf32> -> vector<8x384xf32>
    %42 = arith.addf %39, %41 : vector<8x384xf32>
    %c18_i32 = arith.constant 18 : i32
    %43 = tpu.dynamic_rotate %38 by %c18_i32 dim 1 : vector<4x384xf32>, i32 -> vector<4x384xf32>
    %cst_51 = arith.constant dense<0.000000e+00> : vector<8x384xf32>
    %44 = tpu.matmul %4, %43, %cst_51 {dimension_numbers = #tpu.dot_dimension_numbers<[1], [0], [0], [1], [0, 0, 1, 1], [], []>} : vector<8x4xf32>, vector<4x384xf32>, vector<8x384xf32> -> vector<8x384xf32>
    %45 = arith.addf %42, %44 : vector<8x384xf32>
    %c17_i32 = arith.constant 17 : i32
    %46 = tpu.dynamic_rotate %38 by %c17_i32 dim 1 : vector<4x384xf32>, i32 -> vector<4x384xf32>
    %cst_52 = arith.constant dense<0.000000e+00> : vector<8x384xf32>
    %47 = tpu.matmul %6, %46, %cst_52 {dimension_numbers = #tpu.dot_dimension_numbers<[1], [0], [0], [1], [0, 0, 1, 1], [], []>} : vector<8x4xf32>, vector<4x384xf32>, vector<8x384xf32> -> vector<8x384xf32>
    %48 = arith.addf %45, %47 : vector<8x384xf32>
    %c1_i32 = arith.constant 1 : i32
    %49 = tpu.dynamic_rotate %38 by %c1_i32 dim 1 : vector<4x384xf32>, i32 -> vector<4x384xf32>
    %cst_53 = arith.constant dense<0.000000e+00> : vector<8x384xf32>
    %50 = tpu.matmul %8, %49, %cst_53 {dimension_numbers = #tpu.dot_dimension_numbers<[1], [0], [0], [1], [0, 0, 1, 1], [], []>} : vector<8x4xf32>, vector<4x384xf32>, vector<8x384xf32> -> vector<8x384xf32>
    %51 = arith.addf %48, %50 : vector<8x384xf32>
    %cst_54 = arith.constant dense<0.000000e+00> : vector<8x384xf32>
    %52 = tpu.matmul %10, %38, %cst_54 {dimension_numbers = #tpu.dot_dimension_numbers<[1], [0], [0], [1], [0, 0, 1, 1], [], []>} : vector<8x4xf32>, vector<4x384xf32>, vector<8x384xf32> -> vector<8x384xf32>
    %53 = arith.addf %51, %52 : vector<8x384xf32>
    %c383_i32 = arith.constant 383 : i32
    %54 = tpu.dynamic_rotate %38 by %c383_i32 dim 1 : vector<4x384xf32>, i32 -> vector<4x384xf32>
    %cst_55 = arith.constant dense<0.000000e+00> : vector<8x384xf32>
    %55 = tpu.matmul %12, %54, %cst_55 {dimension_numbers = #tpu.dot_dimension_numbers<[1], [0], [0], [1], [0, 0, 1, 1], [], []>} : vector<8x4xf32>, vector<4x384xf32>, vector<8x384xf32> -> vector<8x384xf32>
    %56 = arith.addf %53, %55 : vector<8x384xf32>
    %c367_i32 = arith.constant 367 : i32
    %57 = tpu.dynamic_rotate %38 by %c367_i32 dim 1 : vector<4x384xf32>, i32 -> vector<4x384xf32>
    %cst_56 = arith.constant dense<0.000000e+00> : vector<8x384xf32>
    %58 = tpu.matmul %14, %57, %cst_56 {dimension_numbers = #tpu.dot_dimension_numbers<[1], [0], [0], [1], [0, 0, 1, 1], [], []>} : vector<8x4xf32>, vector<4x384xf32>, vector<8x384xf32> -> vector<8x384xf32>
    %59 = arith.addf %56, %58 : vector<8x384xf32>
    %c366_i32 = arith.constant 366 : i32
    %60 = tpu.dynamic_rotate %38 by %c366_i32 dim 1 : vector<4x384xf32>, i32 -> vector<4x384xf32>
    %cst_57 = arith.constant dense<0.000000e+00> : vector<8x384xf32>
    %61 = tpu.matmul %16, %60, %cst_57 {dimension_numbers = #tpu.dot_dimension_numbers<[1], [0], [0], [1], [0, 0, 1, 1], [], []>} : vector<8x4xf32>, vector<4x384xf32>, vector<8x384xf32> -> vector<8x384xf32>
    %62 = arith.addf %59, %61 : vector<8x384xf32>
    %c365_i32 = arith.constant 365 : i32
    %63 = tpu.dynamic_rotate %38 by %c365_i32 dim 1 : vector<4x384xf32>, i32 -> vector<4x384xf32>
    %cst_58 = arith.constant dense<0.000000e+00> : vector<8x384xf32>
    %64 = tpu.matmul %18, %63, %cst_58 {dimension_numbers = #tpu.dot_dimension_numbers<[1], [0], [0], [1], [0, 0, 1, 1], [], []>} : vector<8x4xf32>, vector<4x384xf32>, vector<8x384xf32> -> vector<8x384xf32>
    %65 = arith.addf %62, %64 : vector<8x384xf32>
    %cst_59 = arith.constant 0.000000e+00 : f32
    %66 = vector.broadcast %cst_59 : f32 to vector<8x384xf32>
    %67 = arith.maximumf %65, %66 : vector<8x384xf32>
    %68 = vector.broadcast %0 : vector<1x384xf32> to vector<8x384xf32>
    %69 = arith.mulf %67, %68 : vector<8x384xf32>
    %cst_60 = arith.constant 0.000000e+00 : f32
    %70 = vector.broadcast %cst_60 : f32 to vector<4x384xf32>
    %c19_i32_61 = arith.constant 19 : i32
    %71 = tpu.dynamic_rotate %69 by %c19_i32_61 dim 1 : vector<8x384xf32>, i32 -> vector<8x384xf32>
    %cst_62 = arith.constant dense<0.000000e+00> : vector<4x384xf32>
    %72 = tpu.matmul %20, %71, %cst_62 {dimension_numbers = #tpu.dot_dimension_numbers<[1], [0], [0], [1], [0, 0, 1, 1], [], []>} : vector<4x8xf32>, vector<8x384xf32>, vector<4x384xf32> -> vector<4x384xf32>
    %73 = arith.addf %70, %72 : vector<4x384xf32>
    %c18_i32_63 = arith.constant 18 : i32
    %74 = tpu.dynamic_rotate %69 by %c18_i32_63 dim 1 : vector<8x384xf32>, i32 -> vector<8x384xf32>
    %cst_64 = arith.constant dense<0.000000e+00> : vector<4x384xf32>
    %75 = tpu.matmul %22, %74, %cst_64 {dimension_numbers = #tpu.dot_dimension_numbers<[1], [0], [0], [1], [0, 0, 1, 1], [], []>} : vector<4x8xf32>, vector<8x384xf32>, vector<4x384xf32> -> vector<4x384xf32>
    %76 = arith.addf %73, %75 : vector<4x384xf32>
    %c17_i32_65 = arith.constant 17 : i32
    %77 = tpu.dynamic_rotate %69 by %c17_i32_65 dim 1 : vector<8x384xf32>, i32 -> vector<8x384xf32>
    %cst_66 = arith.constant dense<0.000000e+00> : vector<4x384xf32>
    %78 = tpu.matmul %24, %77, %cst_66 {dimension_numbers = #tpu.dot_dimension_numbers<[1], [0], [0], [1], [0, 0, 1, 1], [], []>} : vector<4x8xf32>, vector<8x384xf32>, vector<4x384xf32> -> vector<4x384xf32>
    %79 = arith.addf %76, %78 : vector<4x384xf32>
    %c1_i32_67 = arith.constant 1 : i32
    %80 = tpu.dynamic_rotate %69 by %c1_i32_67 dim 1 : vector<8x384xf32>, i32 -> vector<8x384xf32>
    %cst_68 = arith.constant dense<0.000000e+00> : vector<4x384xf32>
    %81 = tpu.matmul %26, %80, %cst_68 {dimension_numbers = #tpu.dot_dimension_numbers<[1], [0], [0], [1], [0, 0, 1, 1], [], []>} : vector<4x8xf32>, vector<8x384xf32>, vector<4x384xf32> -> vector<4x384xf32>
    %82 = arith.addf %79, %81 : vector<4x384xf32>
    %cst_69 = arith.constant dense<0.000000e+00> : vector<4x384xf32>
    %83 = tpu.matmul %28, %69, %cst_69 {dimension_numbers = #tpu.dot_dimension_numbers<[1], [0], [0], [1], [0, 0, 1, 1], [], []>} : vector<4x8xf32>, vector<8x384xf32>, vector<4x384xf32> -> vector<4x384xf32>
    %84 = arith.addf %82, %83 : vector<4x384xf32>
    %c383_i32_70 = arith.constant 383 : i32
    %85 = tpu.dynamic_rotate %69 by %c383_i32_70 dim 1 : vector<8x384xf32>, i32 -> vector<8x384xf32>
    %cst_71 = arith.constant dense<0.000000e+00> : vector<4x384xf32>
    %86 = tpu.matmul %30, %85, %cst_71 {dimension_numbers = #tpu.dot_dimension_numbers<[1], [0], [0], [1], [0, 0, 1, 1], [], []>} : vector<4x8xf32>, vector<8x384xf32>, vector<4x384xf32> -> vector<4x384xf32>
    %87 = arith.addf %84, %86 : vector<4x384xf32>
    %c367_i32_72 = arith.constant 367 : i32
    %88 = tpu.dynamic_rotate %69 by %c367_i32_72 dim 1 : vector<8x384xf32>, i32 -> vector<8x384xf32>
    %cst_73 = arith.constant dense<0.000000e+00> : vector<4x384xf32>
    %89 = tpu.matmul %32, %88, %cst_73 {dimension_numbers = #tpu.dot_dimension_numbers<[1], [0], [0], [1], [0, 0, 1, 1], [], []>} : vector<4x8xf32>, vector<8x384xf32>, vector<4x384xf32> -> vector<4x384xf32>
    %90 = arith.addf %87, %89 : vector<4x384xf32>
    %c366_i32_74 = arith.constant 366 : i32
    %91 = tpu.dynamic_rotate %69 by %c366_i32_74 dim 1 : vector<8x384xf32>, i32 -> vector<8x384xf32>
    %cst_75 = arith.constant dense<0.000000e+00> : vector<4x384xf32>
    %92 = tpu.matmul %34, %91, %cst_75 {dimension_numbers = #tpu.dot_dimension_numbers<[1], [0], [0], [1], [0, 0, 1, 1], [], []>} : vector<4x8xf32>, vector<8x384xf32>, vector<4x384xf32> -> vector<4x384xf32>
    %93 = arith.addf %90, %92 : vector<4x384xf32>
    %c365_i32_76 = arith.constant 365 : i32
    %94 = tpu.dynamic_rotate %69 by %c365_i32_76 dim 1 : vector<8x384xf32>, i32 -> vector<8x384xf32>
    %cst_77 = arith.constant dense<0.000000e+00> : vector<4x384xf32>
    %95 = tpu.matmul %36, %94, %cst_77 {dimension_numbers = #tpu.dot_dimension_numbers<[1], [0], [0], [1], [0, 0, 1, 1], [], []>} : vector<4x8xf32>, vector<8x384xf32>, vector<4x384xf32> -> vector<4x384xf32>
    %96 = arith.addf %93, %95 : vector<4x384xf32>
    %cst_78 = arith.constant 0.000000e+00 : f32
    %97 = vector.broadcast %cst_78 : f32 to vector<4x384xf32>
    %98 = arith.maximumf %96, %97 : vector<4x384xf32>
    %c0_79 = arith.constant 0 : index
    %c0_80 = arith.constant 0 : index
    %c0_81 = arith.constant 0 : index
    %99 = vector.load %arg5[%c0_79, %c0_80, %c0_81] : memref<2x4x384xf32, #tpu.memory_space<vmem>>, vector<1x4x384xf32>
    %100 = vector.shape_cast %99 : vector<1x4x384xf32> to vector<4x384xf32>
    %101 = vector.shape_cast %98 : vector<4x384xf32> to vector<1x4x384xf32>
    tpu.vector_store %arg5[%c0_79, %c0_80, %c0_81], %101 {strides = array<i32>} : memref<2x4x384xf32, #tpu.memory_space<vmem>>, vector<1x4x384xf32>,
    %c1_82 = arith.constant 1 : index
    %c0_83 = arith.constant 0 : index
    %c0_84 = arith.constant 0 : index
    %102 = vector.load %arg1[%c1_82, %c0_83, %c0_84] : memref<2x4x384xf32, #tpu.memory_space<vmem>>, vector<1x4x384xf32>
    %103 = vector.shape_cast %102 : vector<1x4x384xf32> to vector<4x384xf32>
    %cst_85 = arith.constant 0.000000e+00 : f32
    %104 = vector.broadcast %cst_85 : f32 to vector<8x384xf32>
    %c19_i32_86 = arith.constant 19 : i32
    %105 = tpu.dynamic_rotate %103 by %c19_i32_86 dim 1 : vector<4x384xf32>, i32 -> vector<4x384xf32>
    %cst_87 = arith.constant dense<0.000000e+00> : vector<8x384xf32>
    %106 = tpu.matmul %2, %105, %cst_87 {dimension_numbers = #tpu.dot_dimension_numbers<[1], [0], [0], [1], [0, 0, 1, 1], [], []>} : vector<8x4xf32>, vector<4x384xf32>, vector<8x384xf32> -> vector<8x384xf32>
    %107 = arith.addf %104, %106 : vector<8x384xf32>
    %c18_i32_88 = arith.constant 18 : i32
    %108 = tpu.dynamic_rotate %103 by %c18_i32_88 dim 1 : vector<4x384xf32>, i32 -> vector<4x384xf32>
    %cst_89 = arith.constant dense<0.000000e+00> : vector<8x384xf32>
    %109 = tpu.matmul %4, %108, %cst_89 {dimension_numbers = #tpu.dot_dimension_numbers<[1], [0], [0], [1], [0, 0, 1, 1], [], []>} : vector<8x4xf32>, vector<4x384xf32>, vector<8x384xf32> -> vector<8x384xf32>
    %110 = arith.addf %107, %109 : vector<8x384xf32>
    %c17_i32_90 = arith.constant 17 : i32
    %111 = tpu.dynamic_rotate %103 by %c17_i32_90 dim 1 : vector<4x384xf32>, i32 -> vector<4x384xf32>
    %cst_91 = arith.constant dense<0.000000e+00> : vector<8x384xf32>
    %112 = tpu.matmul %6, %111, %cst_91 {dimension_numbers = #tpu.dot_dimension_numbers<[1], [0], [0], [1], [0, 0, 1, 1], [], []>} : vector<8x4xf32>, vector<4x384xf32>, vector<8x384xf32> -> vector<8x384xf32>
    %113 = arith.addf %110, %112 : vector<8x384xf32>
    %c1_i32_92 = arith.constant 1 : i32
    %114 = tpu.dynamic_rotate %103 by %c1_i32_92 dim 1 : vector<4x384xf32>, i32 -> vector<4x384xf32>
    %cst_93 = arith.constant dense<0.000000e+00> : vector<8x384xf32>
    %115 = tpu.matmul %8, %114, %cst_93 {dimension_numbers = #tpu.dot_dimension_numbers<[1], [0], [0], [1], [0, 0, 1, 1], [], []>} : vector<8x4xf32>, vector<4x384xf32>, vector<8x384xf32> -> vector<8x384xf32>
    %116 = arith.addf %113, %115 : vector<8x384xf32>
    %cst_94 = arith.constant dense<0.000000e+00> : vector<8x384xf32>
    %117 = tpu.matmul %10, %103, %cst_94 {dimension_numbers = #tpu.dot_dimension_numbers<[1], [0], [0], [1], [0, 0, 1, 1], [], []>} : vector<8x4xf32>, vector<4x384xf32>, vector<8x384xf32> -> vector<8x384xf32>
    %118 = arith.addf %116, %117 : vector<8x384xf32>
    %c383_i32_95 = arith.constant 383 : i32
    %119 = tpu.dynamic_rotate %103 by %c383_i32_95 dim 1 : vector<4x384xf32>, i32 -> vector<4x384xf32>
    %cst_96 = arith.constant dense<0.000000e+00> : vector<8x384xf32>
    %120 = tpu.matmul %12, %119, %cst_96 {dimension_numbers = #tpu.dot_dimension_numbers<[1], [0], [0], [1], [0, 0, 1, 1], [], []>} : vector<8x4xf32>, vector<4x384xf32>, vector<8x384xf32> -> vector<8x384xf32>
    %121 = arith.addf %118, %120 : vector<8x384xf32>
    %c367_i32_97 = arith.constant 367 : i32
    %122 = tpu.dynamic_rotate %103 by %c367_i32_97 dim 1 : vector<4x384xf32>, i32 -> vector<4x384xf32>
    %cst_98 = arith.constant dense<0.000000e+00> : vector<8x384xf32>
    %123 = tpu.matmul %14, %122, %cst_98 {dimension_numbers = #tpu.dot_dimension_numbers<[1], [0], [0], [1], [0, 0, 1, 1], [], []>} : vector<8x4xf32>, vector<4x384xf32>, vector<8x384xf32> -> vector<8x384xf32>
    %124 = arith.addf %121, %123 : vector<8x384xf32>
    %c366_i32_99 = arith.constant 366 : i32
    %125 = tpu.dynamic_rotate %103 by %c366_i32_99 dim 1 : vector<4x384xf32>, i32 -> vector<4x384xf32>
    %cst_100 = arith.constant dense<0.000000e+00> : vector<8x384xf32>
    %126 = tpu.matmul %16, %125, %cst_100 {dimension_numbers = #tpu.dot_dimension_numbers<[1], [0], [0], [1], [0, 0, 1, 1], [], []>} : vector<8x4xf32>, vector<4x384xf32>, vector<8x384xf32> -> vector<8x384xf32>
    %127 = arith.addf %124, %126 : vector<8x384xf32>
    %c365_i32_101 = arith.constant 365 : i32
    %128 = tpu.dynamic_rotate %103 by %c365_i32_101 dim 1 : vector<4x384xf32>, i32 -> vector<4x384xf32>
    %cst_102 = arith.constant dense<0.000000e+00> : vector<8x384xf32>
    %129 = tpu.matmul %18, %128, %cst_102 {dimension_numbers = #tpu.dot_dimension_numbers<[1], [0], [0], [1], [0, 0, 1, 1], [], []>} : vector<8x4xf32>, vector<4x384xf32>, vector<8x384xf32> -> vector<8x384xf32>
    %130 = arith.addf %127, %129 : vector<8x384xf32>
    %cst_103 = arith.constant 0.000000e+00 : f32
    %131 = vector.broadcast %cst_103 : f32 to vector<8x384xf32>
    %132 = arith.maximumf %130, %131 : vector<8x384xf32>
    %133 = vector.broadcast %0 : vector<1x384xf32> to vector<8x384xf32>
    %134 = arith.mulf %132, %133 : vector<8x384xf32>
    %cst_104 = arith.constant 0.000000e+00 : f32
    %135 = vector.broadcast %cst_104 : f32 to vector<4x384xf32>
    %c19_i32_105 = arith.constant 19 : i32
    %136 = tpu.dynamic_rotate %134 by %c19_i32_105 dim 1 : vector<8x384xf32>, i32 -> vector<8x384xf32>
    %cst_106 = arith.constant dense<0.000000e+00> : vector<4x384xf32>
    %137 = tpu.matmul %20, %136, %cst_106 {dimension_numbers = #tpu.dot_dimension_numbers<[1], [0], [0], [1], [0, 0, 1, 1], [], []>} : vector<4x8xf32>, vector<8x384xf32>, vector<4x384xf32> -> vector<4x384xf32>
    %138 = arith.addf %135, %137 : vector<4x384xf32>
    %c18_i32_107 = arith.constant 18 : i32
    %139 = tpu.dynamic_rotate %134 by %c18_i32_107 dim 1 : vector<8x384xf32>, i32 -> vector<8x384xf32>
    %cst_108 = arith.constant dense<0.000000e+00> : vector<4x384xf32>
    %140 = tpu.matmul %22, %139, %cst_108 {dimension_numbers = #tpu.dot_dimension_numbers<[1], [0], [0], [1], [0, 0, 1, 1], [], []>} : vector<4x8xf32>, vector<8x384xf32>, vector<4x384xf32> -> vector<4x384xf32>
    %141 = arith.addf %138, %140 : vector<4x384xf32>
    %c17_i32_109 = arith.constant 17 : i32
    %142 = tpu.dynamic_rotate %134 by %c17_i32_109 dim 1 : vector<8x384xf32>, i32 -> vector<8x384xf32>
    %cst_110 = arith.constant dense<0.000000e+00> : vector<4x384xf32>
    %143 = tpu.matmul %24, %142, %cst_110 {dimension_numbers = #tpu.dot_dimension_numbers<[1], [0], [0], [1], [0, 0, 1, 1], [], []>} : vector<4x8xf32>, vector<8x384xf32>, vector<4x384xf32> -> vector<4x384xf32>
    %144 = arith.addf %141, %143 : vector<4x384xf32>
    %c1_i32_111 = arith.constant 1 : i32
    %145 = tpu.dynamic_rotate %134 by %c1_i32_111 dim 1 : vector<8x384xf32>, i32 -> vector<8x384xf32>
    %cst_112 = arith.constant dense<0.000000e+00> : vector<4x384xf32>
    %146 = tpu.matmul %26, %145, %cst_112 {dimension_numbers = #tpu.dot_dimension_numbers<[1], [0], [0], [1], [0, 0, 1, 1], [], []>} : vector<4x8xf32>, vector<8x384xf32>, vector<4x384xf32> -> vector<4x384xf32>
    %147 = arith.addf %144, %146 : vector<4x384xf32>
    %cst_113 = arith.constant dense<0.000000e+00> : vector<4x384xf32>
    %148 = tpu.matmul %28, %134, %cst_113 {dimension_numbers = #tpu.dot_dimension_numbers<[1], [0], [0], [1], [0, 0, 1, 1], [], []>} : vector<4x8xf32>, vector<8x384xf32>, vector<4x384xf32> -> vector<4x384xf32>
    %149 = arith.addf %147, %148 : vector<4x384xf32>
    %c383_i32_114 = arith.constant 383 : i32
    %150 = tpu.dynamic_rotate %134 by %c383_i32_114 dim 1 : vector<8x384xf32>, i32 -> vector<8x384xf32>
    %cst_115 = arith.constant dense<0.000000e+00> : vector<4x384xf32>
    %151 = tpu.matmul %30, %150, %cst_115 {dimension_numbers = #tpu.dot_dimension_numbers<[1], [0], [0], [1], [0, 0, 1, 1], [], []>} : vector<4x8xf32>, vector<8x384xf32>, vector<4x384xf32> -> vector<4x384xf32>
    %152 = arith.addf %149, %151 : vector<4x384xf32>
    %c367_i32_116 = arith.constant 367 : i32
    %153 = tpu.dynamic_rotate %134 by %c367_i32_116 dim 1 : vector<8x384xf32>, i32 -> vector<8x384xf32>
    %cst_117 = arith.constant dense<0.000000e+00> : vector<4x384xf32>
    %154 = tpu.matmul %32, %153, %cst_117 {dimension_numbers = #tpu.dot_dimension_numbers<[1], [0], [0], [1], [0, 0, 1, 1], [], []>} : vector<4x8xf32>, vector<8x384xf32>, vector<4x384xf32> -> vector<4x384xf32>
    %155 = arith.addf %152, %154 : vector<4x384xf32>
    %c366_i32_118 = arith.constant 366 : i32
    %156 = tpu.dynamic_rotate %134 by %c366_i32_118 dim 1 : vector<8x384xf32>, i32 -> vector<8x384xf32>
    %cst_119 = arith.constant dense<0.000000e+00> : vector<4x384xf32>
    %157 = tpu.matmul %34, %156, %cst_119 {dimension_numbers = #tpu.dot_dimension_numbers<[1], [0], [0], [1], [0, 0, 1, 1], [], []>} : vector<4x8xf32>, vector<8x384xf32>, vector<4x384xf32> -> vector<4x384xf32>
    %158 = arith.addf %155, %157 : vector<4x384xf32>
    %c365_i32_120 = arith.constant 365 : i32
    %159 = tpu.dynamic_rotate %134 by %c365_i32_120 dim 1 : vector<8x384xf32>, i32 -> vector<8x384xf32>
    %cst_121 = arith.constant dense<0.000000e+00> : vector<4x384xf32>
    %160 = tpu.matmul %36, %159, %cst_121 {dimension_numbers = #tpu.dot_dimension_numbers<[1], [0], [0], [1], [0, 0, 1, 1], [], []>} : vector<4x8xf32>, vector<8x384xf32>, vector<4x384xf32> -> vector<4x384xf32>
    %161 = arith.addf %158, %160 : vector<4x384xf32>
    %cst_122 = arith.constant 0.000000e+00 : f32
    %162 = vector.broadcast %cst_122 : f32 to vector<4x384xf32>
    %163 = arith.maximumf %161, %162 : vector<4x384xf32>
    %c1_123 = arith.constant 1 : index
    %c0_124 = arith.constant 0 : index
    %c0_125 = arith.constant 0 : index
    %164 = vector.load %arg5[%c1_123, %c0_124, %c0_125] : memref<2x4x384xf32, #tpu.memory_space<vmem>>, vector<1x4x384xf32>
    %165 = vector.shape_cast %164 : vector<1x4x384xf32> to vector<4x384xf32>
    %166 = vector.shape_cast %163 : vector<4x384xf32> to vector<1x4x384xf32>
    tpu.vector_store %arg5[%c1_123, %c0_124, %c0_125], %166 {strides = array<i32>} : memref<2x4x384xf32, #tpu.memory_space<vmem>>, vector<1x4x384xf32>,
    return
  }
  func.func @transform_0(%arg0: i32) -> (i32, i32, i32) {
    %c0_i32 = arith.constant 0 : i32
    %c0_i32_0 = arith.constant 0 : i32
    %c0_i32_1 = arith.constant 0 : i32
    return %arg0, %c0_i32, %c0_i32_0 : i32, i32, i32
  }
  func.func @transform_1(%arg0: i32) -> (i32, i32, i32) {
    %c0_i32 = arith.constant 0 : i32
    %c0_i32_0 = arith.constant 0 : i32
    %c0_i32_1 = arith.constant 0 : i32
    %c0_i32_2 = arith.constant 0 : i32
    return %c0_i32, %c0_i32_0, %c0_i32_1 : i32, i32, i32
  }
  func.func @transform_2(%arg0: i32) -> (i32, i32, i32) {
    %c0_i32 = arith.constant 0 : i32
    %c0_i32_0 = arith.constant 0 : i32
    %c0_i32_1 = arith.constant 0 : i32
    %c0_i32_2 = arith.constant 0 : i32
    return %c0_i32, %c0_i32_0, %c0_i32_1 : i32, i32, i32
  }
  func.func @transform_3(%arg0: i32) -> (i32, i32) {
    %c0_i32 = arith.constant 0 : i32
    %c0_i32_0 = arith.constant 0 : i32
    %c0_i32_1 = arith.constant 0 : i32
    return %c0_i32, %c0_i32_0 : i32, i32
  }
  func.func @transform_4(%arg0: i32) -> (i32, i32, i32) {
    %c0_i32 = arith.constant 0 : i32
    %c0_i32_0 = arith.constant 0 : i32
    %c0_i32_1 = arith.constant 0 : i32
    return %arg0, %c0_i32, %c0_i32_0 : i32, i32, i32
  }
}

</mosaic_0001>

<llo_original>
// kernel: fpn_head_pallas.1
$region0: #{fpn_head_pallas.1}
  #allocation0 [shape = 'u32[]', space=smem, size = 0x4, offset = 0x4, fixed_abs, tag = 'smem constant byte address 0x4 - core index']
  #allocation1 [shape = 'u32[144,128]{1,0:T(1,128)}', space=vmem, size = 0x12000, scoped, tag = 'internal scratch']
  %s0 = inlined_call_operand.vmem [shape: f32[2,4,384], index: 0, kind: input, shape index: {}]
  %s1 = inlined_call_operand.vmem [shape: f32[9,8,4], index: 1, kind: input, shape index: {}]
  %s2 = inlined_call_operand.vmem [shape: f32[9,4,8], index: 2, kind: input, shape index: {}]
  %s3 = inlined_call_operand.vmem [shape: f32[1,384], index: 3, kind: input, shape index: {}]
  %s4 = inlined_call_operand.vmem [shape: f32[2,4,384], index: 4, kind: output, shape index: {}]
  %s5 = sld [smem:[#allocation0]]
  $region26: #{fpn_head_pallas.1} parent=0
    _
  %s7 = ssub.s32 1, %s5
  %s8 = scalar_select 0, %s7, %s5
  // Predicated region
  $region2: #{fpn_head_pallas.1} parent=0 // pred_check
    _
  $region3: #{fpn_head_pallas.1} parent=0 // pred_check_branch
    %10 = sbr.rel (0) target = $region5
  $region4: #{fpn_head_pallas.1} parent=0 // pred_region
    _
  $region5: #{fpn_head_pallas.1} parent=0 // pred_fallthru
    _
  // Predicated region
  $region6: #{fpn_head_pallas.1} parent=0 // pred_check
    _
  $region7: #{fpn_head_pallas.1} parent=0 // pred_check_branch
    %12 = sbr.rel (0) target = $region9
  $region8: #{fpn_head_pallas.1} parent=0 // pred_region
    _
  $region9: #{fpn_head_pallas.1} parent=0 // pred_fallthru
    _
  // Predicated region
  $region10: #{fpn_head_pallas.1} parent=0 // pred_check
    _
  $region11: #{fpn_head_pallas.1} parent=0 // pred_check_branch
    %14 = sbr.rel (0) target = $region13
  $region12: #{fpn_head_pallas.1} parent=0 // pred_region
    _
  $region13: #{fpn_head_pallas.1} parent=0 // pred_fallthru
    _
  // Predicated region
  $region14: #{fpn_head_pallas.1} parent=0 // pred_check
    _
  $region15: #{fpn_head_pallas.1} parent=0 // pred_check_branch
    %16 = sbr.rel (0) target = $region17
  $region16: #{fpn_head_pallas.1} parent=0 // pred_region
    _
  $region17: #{fpn_head_pallas.1} parent=0 // pred_fallthru
    _
  %v17 = vld [vmem:[%s3] sm:$0x7]
  %v18 = vld [vmem:[%s1] sm:$0xff]
  %s19 = scalar_lea.vmem %s1, 8
  %v20 = vld [vmem:[%s19] sm:$0xff]
  %s21 = scalar_lea.vmem %s1, 16
  %v22 = vld [vmem:[%s21] sm:$0xff]
  %s23 = scalar_lea.vmem %s1, 24
  %v24 = vld [vmem:[%s23] sm:$0xff]
  %s25 = scalar_lea.vmem %s1, 32
  %v26 = vld [vmem:[%s25] sm:$0xff]
  %s27 = scalar_lea.vmem %s1, 40
  %v28 = vld [vmem:[%s27] sm:$0xff]
  %s29 = scalar_lea.vmem %s1, 48
  %v30 = vld [vmem:[%s29] sm:$0xff]
  %s31 = scalar_lea.vmem %s1, 56
  %v32 = vld [vmem:[%s31] sm:$0xff]
  %s33 = scalar_lea.vmem %s1, 64
  %v34 = vld [vmem:[%s33] sm:$0xff]
  %v35 = vld [vmem:[%s2] sm:$0xf]
  %s36 = scalar_lea.vmem %s2, 4
  %v37 = vld [vmem:[%s36] sm:$0xf]
  %s38 = scalar_lea.vmem %s2, 8
  %v39 = vld [vmem:[%s38] sm:$0xf]
  %s40 = scalar_lea.vmem %s2, 12
  %v41 = vld [vmem:[%s40] sm:$0xf]
  %s42 = scalar_lea.vmem %s2, 16
  %v43 = vld [vmem:[%s42] sm:$0xf]
  %s44 = scalar_lea.vmem %s2, 20
  %v45 = vld [vmem:[%s44] sm:$0xf]
  %s46 = scalar_lea.vmem %s2, 24
  %v47 = vld [vmem:[%s46] sm:$0xf]
  %s48 = scalar_lea.vmem %s2, 28
  %v49 = vld [vmem:[%s48] sm:$0xf]
  %s50 = scalar_lea.vmem %s2, 32
  %v51 = vld [vmem:[%s50] sm:$0xf]
  %v52 = vld [vmem:[%s0] sm:$0xff]
  %v53 = vld [vmem:[%s0 + $0x8] sm:$0xf]
  %v56 = vcombine.high %v52, %v52
  %58 = vrot.lane.b32.xlu0 %v52, 19
  %v59 = vpop.permute.xlu0 %58
  %60 = vrot.lane.b32.xlu0 %v56, 19
  %v61 = vpop.permute.xlu0 %60
  %62 = vrot.lane.b32.xlu0 %v53, 19
  %v63 = vpop.permute.xlu0 %62
  %v64 = vlaneseq
  %v65 = vand.u32 %v64, 127
  %vm66 = vcmp.lt.s32.totalorder %v65, 19
  %v67 = vsel %vm66, %v61, %v63
  %v68 = vsel %vm66, %v59, %v61
  %v69 = vsel %vm66, %v63, %v59
  %70 = vrot.lane.b32.xlu0 %v52, 18
  %v71 = vpop.permute.xlu0 %70
  %72 = vrot.lane.b32.xlu0 %v56, 18
  %v73 = vpop.permute.xlu0 %72
  %74 = vrot.lane.b32.xlu0 %v53, 18
  %v75 = vpop.permute.xlu0 %74
  %vm76 = vcmp.lt.s32.totalorder %v65, 18
  %v77 = vsel %vm76, %v73, %v75
  %v78 = vsel %vm76, %v71, %v73
  %v79 = vsel %vm76, %v75, %v71
  %vm80 = vcmask 31744
  %v82 = vsel %vm80, %v20, 0
  %vm84 = vcmask 1043456
  %v86 = vsel %vm84, %v79, 0
  %v89 = vsel %vm84, %v78, 0
  %v92 = vsel %vm84, %v77, 0
  %94 = vmatprep.subr.mxu0 %v89
  %95 = vmatpush1.msra.mxu0 %v86
  %96 = vmatprep.subr.mxu0 0.0
  %97 = vmatpush1.msra.mxu0 0.0
  %98 = vmatprep.subr.mxu0 0.0
  %99 = vmatpush1.msra.mxu0 0.0
  %100 = vmatprep.subr.mxu0 0.0
  %101 = vmatpush1.msra.mxu0 0.0
  %102 = vmatprep.subr.mxu0 0.0
  %103 = vmatpush1.msra.mxu0 0.0
  %104 = vmatprep.subr.mxu0 0.0
  %105 = vmatpush1.msra.mxu0 0.0
  %106 = vmatprep.subr.mxu0 0.0
  %107 = vmatpush1.msra.mxu0 0.0
  %108 = vmatprep.subr.mxu0 0.0
  %109 = vmatpush1.msra.mxu0 0.0
  %110 = vmatprep.subr.mxu0 0.0
  %111 = vmatpush1.msra.mxu0 0.0
  %112 = vmatprep.subr.mxu0 0.0
  %113 = vmatpush1.msra.mxu0 0.0
  %114 = vmatprep.subr.mxu0 0.0
  %115 = vmatpush1.msra.mxu0 0.0
  %116 = vmatprep.subr.mxu0 0.0
  %117 = vmatpush1.msra.mxu0 0.0
  %118 = vmatprep.subr.mxu0 0.0
  %119 = vmatpush1.msra.mxu0 0.0
  %120 = vmatprep.subr.mxu0 0.0
  %121 = vmatpush1.msra.mxu0 0.0
  %122 = vmatprep.subr.mxu0 0.0
  %123 = vmatpush1.msra.mxu0 0.0
  %124 = vmatprep.subr.mxu0 0.0
  %125 = vmatpush1.msra.mxu0 0.0
  %126 = vmatprep.subr.mxu0 0.0
  %127 = vmatpush1.msra.mxu0 0.0
  %128 = vmatprep.subr.mxu0 0.0
  %129 = vmatpush1.msra.mxu0 0.0
  %130 = vmatprep.subr.mxu0 0.0
  %131 = vmatpush1.msra.mxu0 0.0
  %132 = vmatprep.subr.mxu0 0.0
  %133 = vmatpush1.msra.mxu0 0.0
  %134 = vmatprep.subr.mxu0 0.0
  %135 = vmatpush1.msra.mxu0 0.0
  %136 = vmatprep.subr.mxu0 0.0
  %137 = vmatpush1.msra.mxu0 0.0
  %138 = vmatprep.subr.mxu0 0.0
  %139 = vmatpush1.msra.mxu0 0.0
  %140 = vmatprep.subr.mxu0 0.0
  %141 = vmatpush1.msra.mxu0 0.0
  %142 = vmatprep.subr.mxu0 0.0
  %143 = vmatpush1.msra.mxu0 0.0
  %144 = vmatprep.subr.mxu0 0.0
  %145 = vmatpush1.msra.mxu0 0.0
  %146 = vmatprep.subr.mxu0 0.0
  %147 = vmatpush1.msra.mxu0 0.0
  %148 = vmatprep.subr.mxu0 0.0
  %149 = vmatpush1.msra.mxu0 0.0
  %150 = vmatprep.subr.mxu0 0.0
  %151 = vmatpush1.msra.mxu0 0.0
  %152 = vmatprep.subr.mxu0 0.0
  %153 = vmatpush1.msra.mxu0 0.0
  %154 = vmatprep.subr.mxu0 0.0
  %155 = vmatpush1.msra.mxu0 0.0
  %156 = vmatprep.subr.mxu0 0.0
  %157 = vmatpush1.msra.mxu0 0.0
  %158 = vmatprep.mubr.f32.mxu0 0.0
  %159 = vmatmul.mubr.f32.gmra.mrb[0].mxu0 %v82
  %v160 = vpop.f32.mrb[0].mxu0
  %v161 = vadd.f32 0.0, %v160
  %v162 = vpop.f32.mrb[0].mxu0
  %v163 = vadd.f32 0.0, %v162
  %164 = vdwg.mxu0
  %165 = vmatprep.subr.mxu0 0.0
  %166 = vmatpush1.msra.mxu0 %v92
  %167 = vmatprep.subr.mxu0 0.0
  %168 = vmatpush1.msra.mxu0 0.0
  %169 = vmatprep.subr.mxu0 0.0
  %170 = vmatpush1.msra.mxu0 0.0
  %171 = vmatprep.subr.mxu0 0.0
  %172 = vmatpush1.msra.mxu0 0.0
  %173 = vmatprep.subr.mxu0 0.0
  %174 = vmatpush1.msra.mxu0 0.0
  %175 = vmatprep.subr.mxu0 0.0
  %176 = vmatpush1.msra.mxu0 0.0
  %177 = vmatprep.subr.mxu0 0.0
  %178 = vmatpush1.msra.mxu0 0.0
  %179 = vmatprep.subr.mxu0 0.0
  %180 = vmatpush1.msra.mxu0 0.0
  %181 = vmatprep.subr.mxu0 0.0
  %182 = vmatpush1.msra.mxu0 0.0
  %183 = vmatprep.subr.mxu0 0.0
  %184 = vmatpush1.msra.mxu0 0.0
  %185 = vmatprep.subr.mxu0 0.0
  %186 = vmatpush1.msra.mxu0 0.0
  %187 = vmatprep.subr.mxu0 0.0
  %188 = vmatpush1.msra.mxu0 0.0
  %189 = vmatprep.subr.mxu0 0.0
  %190 = vmatpush1.msra.mxu0 0.0
  %191 = vmatprep.subr.mxu0 0.0
  %192 = vmatpush1.msra.mxu0 0.0
  %193 = vmatprep.subr.mxu0 0.0
  %194 = vmatpush1.msra.mxu0 0.0
  %195 = vmatprep.subr.mxu0 0.0
  %196 = vmatpush1.msra.mxu0 0.0
  %197 = vmatprep.subr.mxu0 0.0
  %198 = vmatpush1.msra.mxu0 0.0
  %199 = vmatprep.subr.mxu0 0.0
  %200 = vmatpush1.msra.mxu0 0.0
  %201 = vmatprep.subr.mxu0 0.0
  %202 = vmatpush1.msra.mxu0 0.0
  %203 = vmatprep.subr.mxu0 0.0
  %204 = vmatpush1.msra.mxu0 0.0
  %205 = vmatprep.subr.mxu0 0.0
  %206 = vmatpush1.msra.mxu0 0.0
  %207 = vmatprep.subr.mxu0 0.0
  %208 = vmatpush1.msra.mxu0 0.0
  %209 = vmatprep.subr.mxu0 0.0
  %210 = vmatpush1.msra.mxu0 0.0
  %211 = vmatprep.subr.mxu0 0.0
  %212 = vmatpush1.msra.mxu0 0.0
  %213 = vmatprep.subr.mxu0 0.0
  %214 = vmatpush1.msra.mxu0 0.0
  %215 = vmatprep.subr.mxu0 0.0
  %216 = vmatpush1.msra.mxu0 0.0
  %217 = vmatprep.subr.mxu0 0.0
  %218 = vmatpush1.msra.mxu0 0.0
  %219 = vmatprep.subr.mxu0 0.0
  %220 = vmatpush1.msra.mxu0 0.0
  %221 = vmatprep.subr.mxu0 0.0
  %222 = vmatpush1.msra.mxu0 0.0
  %223 = vmatprep.subr.mxu0 0.0
  %224 = vmatpush1.msra.mxu0 0.0
  %225 = vmatprep.subr.mxu0 0.0
  %226 = vmatpush1.msra.mxu0 0.0
  %227 = vmatprep.subr.mxu0 0.0
  %228 = vmatpush1.msra.mxu0 0.0
  %229 = vmatprep.mubr.f32.mxu0 0.0
  %230 = vmatmul.mubr.f32.gmra.mrb[0].mxu0 %v82
  %v231 = vpop.f32.mrb[0].mxu0
  %v232 = vadd.f32 0.0, %v231
  %v233 = vpop.f32.mrb[0].mxu0
  %234 = vdwg.mxu0
  %v236 = vsel %vm80, %v18, 0
  %v239 = vsel %vm84, %v69, 0
  %v242 = vsel %vm84, %v68, 0
  %v245 = vsel %vm84, %v67, 0
  %247 = vmatprep.subr.mxu0 %v242
  %248 = vmatpush1.msra.mxu0 %v239
  %249 = vmatprep.subr.mxu0 0.0
  %250 = vmatpush1.msra.mxu0 0.0
  %251 = vmatprep.subr.mxu0 0.0
  %252 = vmatpush1.msra.mxu0 0.0
  %253 = vmatprep.subr.mxu0 0.0
  %254 = vmatpush1.msra.mxu0 0.0
  %255 = vmatprep.subr.mxu0 0.0
  %256 = vmatpush1.msra.mxu0 0.0
  %257 = vmatprep.subr.mxu0 0.0
  %258 = vmatpush1.msra.mxu0 0.0
  %259 = vmatprep.subr.mxu0 0.0
  %260 = vmatpush1.msra.mxu0 0.0
  %261 = vmatprep.subr.mxu0 0.0
  %262 = vmatpush1.msra.mxu0 0.0
  %263 = vmatprep.subr.mxu0 0.0
  %264 = vmatpush1.msra.mxu0 0.0
  %265 = vmatprep.subr.mxu0 0.0
  %266 = vmatpush1.msra.mxu0 0.0
  %267 = vmatprep.subr.mxu0 0.0
  %268 = vmatpush1.msra.mxu0 0.0
  %269 = vmatprep.subr.mxu0 0.0
  %270 = vmatpush1.msra.mxu0 0.0
  %271 = vmatprep.subr.mxu0 0.0
  %272 = vmatpush1.msra.mxu0 0.0
  %273 = vmatprep.subr.mxu0 0.0
  %274 = vmatpush1.msra.mxu0 0.0
  %275 = vmatprep.subr.mxu0 0.0
  %276 = vmatpush1.msra.mxu0 0.0
  %277 = vmatprep.subr.mxu0 0.0
  %278 = vmatpush1.msra.mxu0 0.0
  %279 = vmatprep.subr.mxu0 0.0
  %280 = vmatpush1.msra.mxu0 0.0
  %281 = vmatprep.subr.mxu0 0.0
  %282 = vmatpush1.msra.mxu0 0.0
  %283 = vmatprep.subr.mxu0 0.0
  %284 = vmatpush1.msra.mxu0 0.0
  %285 = vmatprep.subr.mxu0 0.0
  %286 = vmatpush1.msra.mxu0 0.0
  %287 = vmatprep.subr.mxu0 0.0
  %288 = vmatpush1.msra.mxu0 0.0
  %289 = vmatprep.subr.mxu0 0.0
  %290 = vmatpush1.msra.mxu0 0.0
  %291 = vmatprep.subr.mxu0 0.0
  %292 = vmatpush1.msra.mxu0 0.0
  %293 = vmatprep.subr.mxu0 0.0
  %294 = vmatpush1.msra.mxu0 0.0
  %295 = vmatprep.subr.mxu0 0.0
  %296 = vmatpush1.msra.mxu0 0.0
  %297 = vmatprep.subr.mxu0 0.0
  %298 = vmatpush1.msra.mxu0 0.0
  %299 = vmatprep.subr.mxu0 0.0
  %300 = vmatpush1.msra.mxu0 0.0
  %301 = vmatprep.subr.mxu0 0.0
  %302 = vmatpush1.msra.mxu0 0.0
  %303 = vmatprep.subr.mxu0 0.0
  %304 = vmatpush1.msra.mxu0 0.0
  %305 = vmatprep.subr.mxu0 0.0
  %306 = vmatpush1.msra.mxu0 0.0
  %307 = vmatprep.subr.mxu0 0.0
  %308 = vmatpush1.msra.mxu0 0.0
  %309 = vmatprep.subr.mxu0 0.0
  %310 = vmatpush1.msra.mxu0 0.0
  %311 = vmatprep.mubr.f32.mxu0 0.0
  %312 = vmatmul.mubr.f32.gmra.mrb[0].mxu0 %v236
  %v313 = vpop.f32.mrb[0].mxu0
  %v314 = vadd.f32 %v161, %v313
  %v315 = vpop.f32.mrb[0].mxu0
  %v316 = vadd.f32 %v163, %v315
  %317 = vdwg.mxu0
  %318 = vmatprep.subr.mxu0 0.0
  %319 = vmatpush1.msra.mxu0 %v245
  %320 = vmatprep.subr.mxu0 0.0
  %321 = vmatpush1.msra.mxu0 0.0
  %322 = vmatprep.subr.mxu0 0.0
  %323 = vmatpush1.msra.mxu0 0.0
  %324 = vmatprep.subr.mxu0 0.0
  %325 = vmatpush1.msra.mxu0 0.0
  %326 = vmatprep.subr.mxu0 0.0
  %327 = vmatpush1.msra.mxu0 0.0
  %328 = vmatprep.subr.mxu0 0.0
  %329 = vmatpush1.msra.mxu0 0.0
  %330 = vmatprep.subr.mxu0 0.0
  %331 = vmatpush1.msra.mxu0 0.0
  %332 = vmatprep.subr.mxu0 0.0
  %333 = vmatpush1.msra.mxu0 0.0
  %334 = vmatprep.subr.mxu0 0.0
  %335 = vmatpush1.msra.mxu0 0.0
  %336 = vmatprep.subr.mxu0 0.0
  %337 = vmatpush1.msra.mxu0 0.0
  %338 = vmatprep.subr.mxu0 0.0
  %339 = vmatpush1.msra.mxu0 0.0
  %340 = vmatprep.subr.mxu0 0.0
  %341 = vmatpush1.msra.mxu0 0.0
  %342 = vmatprep.subr.mxu0 0.0
  %343 = vmatpush1.msra.mxu0 0.0
  %344 = vmatprep.subr.mxu0 0.0
  %345 = vmatpush1.msra.mxu0 0.0
  %346 = vmatprep.subr.mxu0 0.0
  %347 = vmatpush1.msra.mxu0 0.0
  %348 = vmatprep.subr.mxu0 0.0
  %349 = vmatpush1.msra.mxu0 0.0
  %350 = vmatprep.subr.mxu0 0.0
  %351 = vmatpush1.msra.mxu0 0.0
  %352 = vmatprep.subr.mxu0 0.0
  %353 = vmatpush1.msra.mxu0 0.0
  %354 = vmatprep.subr.mxu0 0.0
  %355 = vmatpush1.msra.mxu0 0.0
  %356 = vmatprep.subr.mxu0 0.0
  %357 = vmatpush1.msra.mxu0 0.0
  %358 = vmatprep.subr.mxu0 0.0
  %359 = vmatpush1.msra.mxu0 0.0
  %360 = vmatprep.subr.mxu0 0.0
  %361 = vmatpush1.msra.mxu0 0.0
  %362 = vmatprep.subr.mxu0 0.0
  %363 = vmatpush1.msra.mxu0 0.0
  %364 = vmatprep.subr.mxu0 0.0
  %365 = vmatpush1.msra.mxu0 0.0
  %366 = vmatprep.subr.mxu0 0.0
  %367 = vmatpush1.msra.mxu0 0.0
  %368 = vmatprep.subr.mxu0 0.0
  %369 = vmatpush1.msra.mxu0 0.0
  %370 = vmatprep.subr.mxu0 0.0
  %371 = vmatpush1.msra.mxu0 0.0
  %372 = vmatprep.subr.mxu0 0.0
  %373 = vmatpush1.msra.mxu0 0.0
  %374 = vmatprep.subr.mxu0 0.0
  %375 = vmatpush1.msra.mxu0 0.0
  %376 = vmatprep.subr.mxu0 0.0
  %377 = vmatpush1.msra.mxu0 0.0
  %378 = vmatprep.subr.mxu0 0.0
  %379 = vmatpush1.msra.mxu0 0.0
  %380 = vmatprep.subr.mxu0 0.0
  %381 = vmatpush1.msra.mxu0 0.0
  %382 = vmatprep.mubr.f32.mxu0 0.0
  %383 = vmatmul.mubr.f32.gmra.mrb[0].mxu0 %v236
  %v384 = vpop.f32.mrb[0].mxu0
  %v385 = vadd.f32 %v232, %v384
  %v386 = vpop.f32.mrb[0].mxu0
  %387 = vdwg.mxu0
  %388 = vrot.lane.b32.xlu0 %v52, 17
  %v389 = vpop.permute.xlu0 %388
  %390 = vrot.lane.b32.xlu0 %v56, 17
  %v391 = vpop.permute.xlu0 %390
  %392 = vrot.lane.b32.xlu0 %v53, 17
  %v393 = vpop.permute.xlu0 %392
  %vm394 = vcmp.lt.s32.totalorder %v65, 17
  %v395 = vsel %vm394, %v391, %v393
  %v396 = vsel %vm394, %v389, %v391
  %v397 = vsel %vm394, %v393, %v389
  %v399 = vsel %vm80, %v22, 0
  %v402 = vsel %vm84, %v397, 0
  %v405 = vsel %vm84, %v396, 0
  %v408 = vsel %vm84, %v395, 0
  %410 = vmatprep.subr.mxu0 %v405
  %411 = vmatpush1.msra.mxu0 %v402
  %412 = vmatprep.subr.mxu0 0.0
  %413 = vmatpush1.msra.mxu0 0.0
  %414 = vmatprep.subr.mxu0 0.0
  %415 = vmatpush1.msra.mxu0 0.0
  %416 = vmatprep.subr.mxu0 0.0
  %417 = vmatpush1.msra.mxu0 0.0
  %418 = vmatprep.subr.mxu0 0.0
  %419 = vmatpush1.msra.mxu0 0.0
  %420 = vmatprep.subr.mxu0 0.0
  %421 = vmatpush1.msra.mxu0 0.0
  %422 = vmatprep.subr.mxu0 0.0
  %423 = vmatpush1.msra.mxu0 0.0
  %424 = vmatprep.subr.mxu0 0.0
  %425 = vmatpush1.msra.mxu0 0.0
  %426 = vmatprep.subr.mxu0 0.0
  %427 = vmatpush1.msra.mxu0 0.0
  %428 = vmatprep.subr.mxu0 0.0
  %429 = vmatpush1.msra.mxu0 0.0
  %430 = vmatprep.subr.mxu0 0.0
  %431 = vmatpush1.msra.mxu0 0.0
  %432 = vmatprep.subr.mxu0 0.0
  %433 = vmatpush1.msra.mxu0 0.0
  %434 = vmatprep.subr.mxu0 0.0
  %435 = vmatpush1.msra.mxu0 0.0
  %436 = vmatprep.subr.mxu0 0.0
  %437 = vmatpush1.msra.mxu0 0.0
  %438 = vmatprep.subr.mxu0 0.0
  %439 = vmatpush1.msra.mxu0 0.0
  %440 = vmatprep.subr.mxu0 0.0
  %441 = vmatpush1.msra.mxu0 0.0
  %442 = vmatprep.subr.mxu0 0.0
  %443 = vmatpush1.msra.mxu0 0.0
  %444 = vmatprep.subr.mxu0 0.0
  %445 = vmatpush1.msra.mxu0 0.0
  %446 = vmatprep.subr.mxu0 0.0
  %447 = vmatpush1.msra.mxu0 0.0
  %448 = vmatprep.subr.mxu0 0.0
  %449 = vmatpush1.msra.mxu0 0.0
  %450 = vmatprep.subr.mxu0 0.0
  %451 = vmatpush1.msra.mxu0 0.0
  %452 = vmatprep.subr.mxu0 0.0
  %453 = vmatpush1.msra.mxu0 0.0
  %454 = vmatprep.subr.mxu0 0.0
  %455 = vmatpush1.msra.mxu0 0.0
  %456 = vmatprep.subr.mxu0 0.0
  %457 = vmatpush1.msra.mxu0 0.0
  %458 = vmatprep.subr.mxu0 0.0
  %459 = vmatpush1.msra.mxu0 0.0
  %460 = vmatprep.subr.mxu0 0.0
  %461 = vmatpush1.msra.mxu0 0.0
  %462 = vmatprep.subr.mxu0 0.0
  %463 = vmatpush1.msra.mxu0 0.0
  %464 = vmatprep.subr.mxu0 0.0
  %465 = vmatpush1.msra.mxu0 0.0
  %466 = vmatprep.subr.mxu0 0.0
  %467 = vmatpush1.msra.mxu0 0.0
  %468 = vmatprep.subr.mxu0 0.0
  %469 = vmatpush1.msra.mxu0 0.0
  %470 = vmatprep.subr.mxu0 0.0
  %471 = vmatpush1.msra.mxu0 0.0
  %472 = vmatprep.subr.mxu0 0.0
  %473 = vmatpush1.msra.mxu0 0.0
  %474 = vmatprep.mubr.f32.mxu0 0.0
  %475 = vmatmul.mubr.f32.gmra.mrb[0].mxu0 %v399
  %v476 = vpop.f32.mrb[0].mxu0
  %v477 = vadd.f32 0.0, %v476
  %v478 = vpop.f32.mrb[0].mxu0
  %v479 = vadd.f32 0.0, %v478
  %480 = vdwg.mxu0
  %481 = vmatprep.subr.mxu0 0.0
  %482 = vmatpush1.msra.mxu0 %v408
  %483 = vmatprep.subr.mxu0 0.0
  %484 = vmatpush1.msra.mxu0 0.0
  %485 = vmatprep.subr.mxu0 0.0
  %486 = vmatpush1.msra.mxu0 0.0
  %487 = vmatprep.subr.mxu0 0.0
  %488 = vmatpush1.msra.mxu0 0.0
  %489 = vmatprep.subr.mxu0 0.0
  %490 = vmatpush1.msra.mxu0 0.0
  %491 = vmatprep.subr.mxu0 0.0
  %492 = vmatpush1.msra.mxu0 0.0
  %493 = vmatprep.subr.mxu0 0.0
  %494 = vmatpush1.msra.mxu0 0.0
  %495 = vmatprep.subr.mxu0 0.0
  %496 = vmatpush1.msra.mxu0 0.0
  %497 = vmatprep.subr.mxu0 0.0
  %498 = vmatpush1.msra.mxu0 0.0
  %499 = vmatprep.subr.mxu0 0.0
  %500 = vmatpush1.msra.mxu0 0.0
  %501 = vmatprep.subr.mxu0 0.0
  %502 = vmatpush1.msra.mxu0 0.0
  %503 = vmatprep.subr.mxu0 0.0
  %504 = vmatpush1.msra.mxu0 0.0
  %505 = vmatprep.subr.mxu0 0.0
  %506 = vmatpush1.msra.mxu0 0.0
  %507 = vmatprep.subr.mxu0 0.0
  %508 = vmatpush1.msra.mxu0 0.0
  %509 = vmatprep.subr.mxu0 0.0
  %510 = vmatpush1.msra.mxu0 0.0
  %511 = vmatprep.subr.mxu0 0.0
  %512 = vmatpush1.msra.mxu0 0.0
  %513 = vmatprep.subr.mxu0 0.0
  %514 = vmatpush1.msra.mxu0 0.0
  %515 = vmatprep.subr.mxu0 0.0
  %516 = vmatpush1.msra.mxu0 0.0
  %517 = vmatprep.subr.mxu0 0.0
  %518 = vmatpush1.msra.mxu0 0.0
  %519 = vmatprep.subr.mxu0 0.0
  %520 = vmatpush1.msra.mxu0 0.0
  %521 = vmatprep.subr.mxu0 0.0
  %522 = vmatpush1.msra.mxu0 0.0
  %523 = vmatprep.subr.mxu0 0.0
  %524 = vmatpush1.msra.mxu0 0.0
  %525 = vmatprep.subr.mxu0 0.0
  %526 = vmatpush1.msra.mxu0 0.0
  %527 = vmatprep.subr.mxu0 0.0
  %528 = vmatpush1.msra.mxu0 0.0
  %529 = vmatprep.subr.mxu0 0.0
  %530 = vmatpush1.msra.mxu0 0.0
  %531 = vmatprep.subr.mxu0 0.0
  %532 = vmatpush1.msra.mxu0 0.0
  %533 = vmatprep.subr.mxu0 0.0
  %534 = vmatpush1.msra.mxu0 0.0
  %535 = vmatprep.subr.mxu0 0.0
  %536 = vmatpush1.msra.mxu0 0.0
  %537 = vmatprep.subr.mxu0 0.0
  %538 = vmatpush1.msra.mxu0 0.0
  %539 = vmatprep.subr.mxu0 0.0
  %540 = vmatpush1.msra.mxu0 0.0
  %541 = vmatprep.subr.mxu0 0.0
  %542 = vmatpush1.msra.mxu0 0.0
  %543 = vmatprep.subr.mxu0 0.0
  %544 = vmatpush1.msra.mxu0 0.0
  %545 = vmatprep.mubr.f32.mxu0 0.0
  %546 = vmatmul.mubr.f32.gmra.mrb[0].mxu0 %v399
  %v547 = vpop.f32.mrb[0].mxu0
  %v548 = vadd.f32 0.0, %v547
  %v549 = vpop.f32.mrb[0].mxu0
  %550 = vdwg.mxu0
  %v551 = vadd.f32 %v314, %v477
  %v552 = vadd.f32 %v316, %v479
  %v553 = vadd.f32 %v385, %v548
  %554 = vrot.lane.b32.xlu0 %v52, 1
  %v555 = vpop.permute.xlu0 %554
  %556 = vrot.lane.b32.xlu0 %v56, 1
  %v557 = vpop.permute.xlu0 %556
  %558 = vrot.lane.b32.xlu0 %v53, 1
  %v559 = vpop.permute.xlu0 %558
  %vm560 = vcmp.lt.s32.totalorder %v65, 1
  %v561 = vsel %vm560, %v557, %v559
  %v562 = vsel %vm560, %v555, %v557
  %v563 = vsel %vm560, %v559, %v555
  %v565 = vsel %vm80, %v24, 0
  %v568 = vsel %vm84, %v563, 0
  %v571 = vsel %vm84, %v562, 0
  %v574 = vsel %vm84, %v561, 0
  %576 = vmatprep.subr.mxu0 %v571
  %577 = vmatpush1.msra.mxu0 %v568
  %578 = vmatprep.subr.mxu0 0.0
  %579 = vmatpush1.msra.mxu0 0.0
  %580 = vmatprep.subr.mxu0 0.0
  %581 = vmatpush1.msra.mxu0 0.0
  %582 = vmatprep.subr.mxu0 0.0
  %583 = vmatpush1.msra.mxu0 0.0
  %584 = vmatprep.subr.mxu0 0.0
  %585 = vmatpush1.msra.mxu0 0.0
  %586 = vmatprep.subr.mxu0 0.0
  %587 = vmatpush1.msra.mxu0 0.0
  %588 = vmatprep.subr.mxu0 0.0
  %589 = vmatpush1.msra.mxu0 0.0
  %590 = vmatprep.subr.mxu0 0.0
  %591 = vmatpush1.msra.mxu0 0.0
  %592 = vmatprep.subr.mxu0 0.0
  %593 = vmatpush1.msra.mxu0 0.0
  %594 = vmatprep.subr.mxu0 0.0
  %595 = vmatpush1.msra.mxu0 0.0
  %596 = vmatprep.subr.mxu0 0.0
  %597 = vmatpush1.msra.mxu0 0.0
  %598 = vmatprep.subr.mxu0 0.0
  %599 = vmatpush1.msra.mxu0 0.0
  %600 = vmatprep.subr.mxu0 0.0
  %601 = vmatpush1.msra.mxu0 0.0
  %602 = vmatprep.subr.mxu0 0.0
  %603 = vmatpush1.msra.mxu0 0.0
  %604 = vmatprep.subr.mxu0 0.0
  %605 = vmatpush1.msra.mxu0 0.0
  %606 = vmatprep.subr.mxu0 0.0
  %607 = vmatpush1.msra.mxu0 0.0
  %608 = vmatprep.subr.mxu0 0.0
  %609 = vmatpush1.msra.mxu0 0.0
  %610 = vmatprep.subr.mxu0 0.0
  %611 = vmatpush1.msra.mxu0 0.0
  %612 = vmatprep.subr.mxu0 0.0
  %613 = vmatpush1.msra.mxu0 0.0
  %614 = vmatprep.subr.mxu0 0.0
  %615 = vmatpush1.msra.mxu0 0.0
  %616 = vmatprep.subr.mxu0 0.0
  %617 = vmatpush1.msra.mxu0 0.0
  %618 = vmatprep.subr.mxu0 0.0
  %619 = vmatpush1.msra.mxu0 0.0
  %620 = vmatprep.subr.mxu0 0.0
  %621 = vmatpush1.msra.mxu0 0.0
  %622 = vmatprep.subr.mxu0 0.0
  %623 = vmatpush1.msra.mxu0 0.0
  %624 = vmatprep.subr.mxu0 0.0
  %625 = vmatpush1.msra.mxu0 0.0
  %626 = vmatprep.subr.mxu0 0.0
  %627 = vmatpush1.msra.mxu0 0.0
  %628 = vmatprep.subr.mxu0 0.0
  %629 = vmatpush1.msra.mxu0 0.0
  %630 = vmatprep.subr.mxu0 0.0
  %631 = vmatpush1.msra.mxu0 0.0
  %632 = vmatprep.subr.mxu0 0.0
  %633 = vmatpush1.msra.mxu0 0.0
  %634 = vmatprep.subr.mxu0 0.0
  %635 = vmatpush1.msra.mxu0 0.0
  %636 = vmatprep.subr.mxu0 0.0
  %637 = vmatpush1.msra.mxu0 0.0
  %638 = vmatprep.subr.mxu0 0.0
  %639 = vmatpush1.msra.mxu0 0.0
  %640 = vmatprep.mubr.f32.mxu0 0.0
  %641 = vmatmul.mubr.f32.gmra.mrb[0].mxu0 %v565
  %v642 = vpop.f32.mrb[0].mxu0
  %v643 = vadd.f32 0.0, %v642
  %v644 = vpop.f32.mrb[0].mxu0
  %v645 = vadd.f32 0.0, %v644
  %646 = vdwg.mxu0
  %647 = vmatprep.subr.mxu0 0.0
  %648 = vmatpush1.msra.mxu0 %v574
  %649 = vmatprep.subr.mxu0 0.0
  %650 = vmatpush1.msra.mxu0 0.0
  %651 = vmatprep.subr.mxu0 0.0
  %652 = vmatpush1.msra.mxu0 0.0
  %653 = vmatprep.subr.mxu0 0.0
  %654 = vmatpush1.msra.mxu0 0.0
  %655 = vmatprep.subr.mxu0 0.0
  %656 = vmatpush1.msra.mxu0 0.0
  %657 = vmatprep.subr.mxu0 0.0
  %658 = vmatpush1.msra.mxu0 0.0
  %659 = vmatprep.subr.mxu0 0.0
  %660 = vmatpush1.msra.mxu0 0.0
  %661 = vmatprep.subr.mxu0 0.0
  %662 = vmatpush1.msra.mxu0 0.0
  %663 = vmatprep.subr.mxu0 0.0
  %664 = vmatpush1.msra.mxu0 0.0
  %665 = vmatprep.subr.mxu0 0.0
  %666 = vmatpush1.msra.mxu0 0.0
  %667 = vmatprep.subr.mxu0 0.0
  %668 = vmatpush1.msra.mxu0 0.0
  %669 = vmatprep.subr.mxu0 0.0
  %670 = vmatpush1.msra.mxu0 0.0
  %671 = vmatprep.subr.mxu0 0.0
  %672 = vmatpush1.msra.mxu0 0.0
  %673 = vmatprep.subr.mxu0 0.0
  %674 = vmatpush1.msra.mxu0 0.0
  %675 = vmatprep.subr.mxu0 0.0
  %676 = vmatpush1.msra.mxu0 0.0
  %677 = vmatprep.subr.mxu0 0.0
  %678 = vmatpush1.msra.mxu0 0.0
  %679 = vmatprep.subr.mxu0 0.0
  %680 = vmatpush1.msra.mxu0 0.0
  %681 = vmatprep.subr.mxu0 0.0
  %682 = vmatpush1.msra.mxu0 0.0
  %683 = vmatprep.subr.mxu0 0.0
  %684 = vmatpush1.msra.mxu0 0.0
  %685 = vmatprep.subr.mxu0 0.0
  %686 = vmatpush1.msra.mxu0 0.0
  %687 = vmatprep.subr.mxu0 0.0
  %688 = vmatpush1.msra.mxu0 0.0
  %689 = vmatprep.subr.mxu0 0.0
  %690 = vmatpush1.msra.mxu0 0.0
  %691 = vmatprep.subr.mxu0 0.0
  %692 = vmatpush1.msra.mxu0 0.0
  %693 = vmatprep.subr.mxu0 0.0
  %694 = vmatpush1.msra.mxu0 0.0
  %695 = vmatprep.subr.mxu0 0.0
  %696 = vmatpush1.msra.mxu0 0.0
  %697 = vmatprep.subr.mxu0 0.0
  %698 = vmatpush1.msra.mxu0 0.0
  %699 = vmatprep.subr.mxu0 0.0
  %700 = vmatpush1.msra.mxu0 0.0
  %701 = vmatprep.subr.mxu0 0.0
  %702 = vmatpush1.msra.mxu0 0.0
  %703 = vmatprep.subr.mxu0 0.0
  %704 = vmatpush1.msra.mxu0 0.0
  %705 = vmatprep.subr.mxu0 0.0
  %706 = vmatpush1.msra.mxu0 0.0
  %707 = vmatprep.subr.mxu0 0.0
  %708 = vmatpush1.msra.mxu0 0.0
  %709 = vmatprep.subr.mxu0 0.0
  %710 = vmatpush1.msra.mxu0 0.0
  %711 = vmatprep.mubr.f32.mxu0 0.0
  %712 = vmatmul.mubr.f32.gmra.mrb[0].mxu0 %v565
  %v713 = vpop.f32.mrb[0].mxu0
  %v714 = vadd.f32 0.0, %v713
  %v715 = vpop.f32.mrb[0].mxu0
  %716 = vdwg.mxu0
  %v717 = vadd.f32 %v551, %v643
  %v718 = vadd.f32 %v552, %v645
  %v719 = vadd.f32 %v553, %v714
  %v721 = vsel %vm80, %v26, 0
  %v723 = vsel %vm84, %v52, 0
  %v725 = vsel %vm84, %v56, 0
  %v727 = vsel %vm84, %v53, 0
  %729 = vmatprep.subr.mxu0 %v725
  %730 = vmatpush1.msra.mxu0 %v723
  %731 = vmatprep.subr.mxu0 0.0
  %732 = vmatpush1.msra.mxu0 0.0
  %733 = vmatprep.subr.mxu0 0.0
  %734 = vmatpush1.msra.mxu0 0.0
  %735 = vmatprep.subr.mxu0 0.0
  %736 = vmatpush1.msra.mxu0 0.0
  %737 = vmatprep.subr.mxu0 0.0
  %738 = vmatpush1.msra.mxu0 0.0
  %739 = vmatprep.subr.mxu0 0.0
  %740 = vmatpush1.msra.mxu0 0.0
  %741 = vmatprep.subr.mxu0 0.0
  %742 = vmatpush1.msra.mxu0 0.0
  %743 = vmatprep.subr.mxu0 0.0
  %744 = vmatpush1.msra.mxu0 0.0
  %745 = vmatprep.subr.mxu0 0.0
  %746 = vmatpush1.msra.mxu0 0.0
  %747 = vmatprep.subr.mxu0 0.0
  %748 = vmatpush1.msra.mxu0 0.0
  %749 = vmatprep.subr.mxu0 0.0
  %750 = vmatpush1.msra.mxu0 0.0
  %751 = vmatprep.subr.mxu0 0.0
  %752 = vmatpush1.msra.mxu0 0.0
  %753 = vmatprep.subr.mxu0 0.0
  %754 = vmatpush1.msra.mxu0 0.0
  %755 = vmatprep.subr.mxu0 0.0
  %756 = vmatpush1.msra.mxu0 0.0
  %757 = vmatprep.subr.mxu0 0.0
  %758 = vmatpush1.msra.mxu0 0.0
  %759 = vmatprep.subr.mxu0 0.0
  %760 = vmatpush1.msra.mxu0 0.0
  %761 = vmatprep.subr.mxu0 0.0
  %762 = vmatpush1.msra.mxu0 0.0
  %763 = vmatprep.subr.mxu0 0.0
  %764 = vmatpush1.msra.mxu0 0.0
  %765 = vmatprep.subr.mxu0 0.0
  %766 = vmatpush1.msra.mxu0 0.0
  %767 = vmatprep.subr.mxu0 0.0
  %768 = vmatpush1.msra.mxu0 0.0
  %769 = vmatprep.subr.mxu0 0.0
  %770 = vmatpush1.msra.mxu0 0.0
  %771 = vmatprep.subr.mxu0 0.0
  %772 = vmatpush1.msra.mxu0 0.0
  %773 = vmatprep.subr.mxu0 0.0
  %774 = vmatpush1.msra.mxu0 0.0
  %775 = vmatprep.subr.mxu0 0.0
  %776 = vmatpush1.msra.mxu0 0.0
  %777 = vmatprep.subr.mxu0 0.0
  %778 = vmatpush1.msra.mxu0 0.0
  %779 = vmatprep.subr.mxu0 0.0
  %780 = vmatpush1.msra.mxu0 0.0
  %781 = vmatprep.subr.mxu0 0.0
  %782 = vmatpush1.msra.mxu0 0.0
  %783 = vmatprep.subr.mxu0 0.0
  %784 = vmatpush1.msra.mxu0 0.0
  %785 = vmatprep.subr.mxu0 0.0
  %786 = vmatpush1.msra.mxu0 0.0
  %787 = vmatprep.subr.mxu0 0.0
  %788 = vmatpush1.msra.mxu0 0.0
  %789 = vmatprep.subr.mxu0 0.0
  %790 = vmatpush1.msra.mxu0 0.0
  %791 = vmatprep.subr.mxu0 0.0
  %792 = vmatpush1.msra.mxu0 0.0
  %793 = vmatprep.mubr.f32.mxu0 0.0
  %794 = vmatmul.mubr.f32.gmra.mrb[0].mxu0 %v721
  %v795 = vpop.f32.mrb[0].mxu0
  %v796 = vadd.f32 0.0, %v795
  %v797 = vpop.f32.mrb[0].mxu0
  %v798 = vadd.f32 0.0, %v797
  %799 = vdwg.mxu0
  %800 = vmatprep.subr.mxu0 0.0
  %801 = vmatpush1.msra.mxu0 %v727
  %802 = vmatprep.subr.mxu0 0.0
  %803 = vmatpush1.msra.mxu0 0.0
  %804 = vmatprep.subr.mxu0 0.0
  %805 = vmatpush1.msra.mxu0 0.0
  %806 = vmatprep.subr.mxu0 0.0
  %807 = vmatpush1.msra.mxu0 0.0
  %808 = vmatprep.subr.mxu0 0.0
  %809 = vmatpush1.msra.mxu0 0.0
  %810 = vmatprep.subr.mxu0 0.0
  %811 = vmatpush1.msra.mxu0 0.0
  %812 = vmatprep.subr.mxu0 0.0
  %813 = vmatpush1.msra.mxu0 0.0
  %814 = vmatprep.subr.mxu0 0.0
  %815 = vmatpush1.msra.mxu0 0.0
  %816 = vmatprep.subr.mxu0 0.0
  %817 = vmatpush1.msra.mxu0 0.0
  %818 = vmatprep.subr.mxu0 0.0
  %819 = vmatpush1.msra.mxu0 0.0
  %820 = vmatprep.subr.mxu0 0.0
  %821 = vmatpush1.msra.mxu0 0.0
  %822 = vmatprep.subr.mxu0 0.0
  %823 = vmatpush1.msra.mxu0 0.0
  %824 = vmatprep.subr.mxu0 0.0
  %825 = vmatpush1.msra.mxu0 0.0
  %826 = vmatprep.subr.mxu0 0.0
  %827 = vmatpush1.msra.mxu0 0.0
  %828 = vmatprep.subr.mxu0 0.0
  %829 = vmatpush1.msra.mxu0 0.0
  %830 = vmatprep.subr.mxu0 0.0
  %831 = vmatpush1.msra.mxu0 0.0
  %832 = vmatprep.subr.mxu0 0.0
  %833 = vmatpush1.msra.mxu0 0.0
  %834 = vmatprep.subr.mxu0 0.0
  %835 = vmatpush1.msra.mxu0 0.0
  %836 = vmatprep.subr.mxu0 0.0
  %837 = vmatpush1.msra.mxu0 0.0
  %838 = vmatprep.subr.mxu0 0.0
  %839 = vmatpush1.msra.mxu0 0.0
  %840 = vmatprep.subr.mxu0 0.0
  %841 = vmatpush1.msra.mxu0 0.0
  %842 = vmatprep.subr.mxu0 0.0
  %843 = vmatpush1.msra.mxu0 0.0
  %844 = vmatprep.subr.mxu0 0.0
  %845 = vmatpush1.msra.mxu0 0.0
  %846 = vmatprep.subr.mxu0 0.0
  %847 = vmatpush1.msra.mxu0 0.0
  %848 = vmatprep.subr.mxu0 0.0
  %849 = vmatpush1.msra.mxu0 0.0
  %850 = vmatprep.subr.mxu0 0.0
  %851 = vmatpush1.msra.mxu0 0.0
  %852 = vmatprep.subr.mxu0 0.0
  %853 = vmatpush1.msra.mxu0 0.0
  %854 = vmatprep.subr.mxu0 0.0
  %855 = vmatpush1.msra.mxu0 0.0
  %856 = vmatprep.subr.mxu0 0.0
  %857 = vmatpush1.msra.mxu0 0.0
  %858 = vmatprep.subr.mxu0 0.0
  %859 = vmatpush1.msra.mxu0 0.0
  %860 = vmatprep.subr.mxu0 0.0
  %861 = vmatpush1.msra.mxu0 0.0
  %862 = vmatprep.subr.mxu0 0.0
  %863 = vmatpush1.msra.mxu0 0.0
  %864 = vmatprep.mubr.f32.mxu0 0.0
  %865 = vmatmul.mubr.f32.gmra.mrb[0].mxu0 %v721
  %v866 = vpop.f32.mrb[0].mxu0
  %v867 = vadd.f32 0.0, %v866
  %v868 = vpop.f32.mrb[0].mxu0
  %869 = vdwg.mxu0
  %v870 = vadd.f32 %v717, %v796
  %v871 = vadd.f32 %v718, %v798
  %v872 = vadd.f32 %v719, %v867
  %873 = vrot.lane.b32.xlu0 %v52, 127
  %v874 = vpop.permute.xlu0 %873
  %875 = vrot.lane.b32.xlu0 %v56, 127
  %v876 = vpop.permute.xlu0 %875
  %877 = vrot.lane.b32.xlu0 %v53, 127
  %v878 = vpop.permute.xlu0 %877
  %vm879 = vcmp.lt.s32.totalorder %v65, 127
  %v880 = vsel %vm879, %v876, %v878
  %v881 = vsel %vm879, %v874, %v876
  %v882 = vsel %vm879, %v878, %v874
  %v884 = vsel %vm80, %v28, 0
  %v887 = vsel %vm84, %v881, 0
  %v890 = vsel %vm84, %v880, 0
  %v893 = vsel %vm84, %v882, 0
  %895 = vmatprep.subr.mxu0 %v890
  %896 = vmatpush1.msra.mxu0 %v887
  %897 = vmatprep.subr.mxu0 0.0
  %898 = vmatpush1.msra.mxu0 0.0
  %899 = vmatprep.subr.mxu0 0.0
  %900 = vmatpush1.msra.mxu0 0.0
  %901 = vmatprep.subr.mxu0 0.0
  %902 = vmatpush1.msra.mxu0 0.0
  %903 = vmatprep.subr.mxu0 0.0
  %904 = vmatpush1.msra.mxu0 0.0
  %905 = vmatprep.subr.mxu0 0.0
  %906 = vmatpush1.msra.mxu0 0.0
  %907 = vmatprep.subr.mxu0 0.0
  %908 = vmatpush1.msra.mxu0 0.0
  %909 = vmatprep.subr.mxu0 0.0
  %910 = vmatpush1.msra.mxu0 0.0
  %911 = vmatprep.subr.mxu0 0.0
  %912 = vmatpush1.msra.mxu0 0.0
  %913 = vmatprep.subr.mxu0 0.0
  %914 = vmatpush1.msra.mxu0 0.0
  %915 = vmatprep.subr.mxu0 0.0
  %916 = vmatpush1.msra.mxu0 0.0
  %917 = vmatprep.subr.mxu0 0.0
  %918 = vmatpush1.msra.mxu0 0.0
  %919 = vmatprep.subr.mxu0 0.0
  %920 = vmatpush1.msra.mxu0 0.0
  %921 = vmatprep.subr.mxu0 0.0
  %922 = vmatpush1.msra.mxu0 0.0
  %923 = vmatprep.subr.mxu0 0.0
  %924 = vmatpush1.msra.mxu0 0.0
  %925 = vmatprep.subr.mxu0 0.0
  %926 = vmatpush1.msra.mxu0 0.0
  %927 = vmatprep.subr.mxu0 0.0
  %928 = vmatpush1.msra.mxu0 0.0
  %929 = vmatprep.subr.mxu0 0.0
  %930 = vmatpush1.msra.mxu0 0.0
  %931 = vmatprep.subr.mxu0 0.0
  %932 = vmatpush1.msra.mxu0 0.0
  %933 = vmatprep.subr.mxu0 0.0
  %934 = vmatpush1.msra.mxu0 0.0
  %935 = vmatprep.subr.mxu0 0.0
  %936 = vmatpush1.msra.mxu0 0.0
  %937 = vmatprep.subr.mxu0 0.0
  %938 = vmatpush1.msra.mxu0 0.0
  %939 = vmatprep.subr.mxu0 0.0
  %940 = vmatpush1.msra.mxu0 0.0
  %941 = vmatprep.subr.mxu0 0.0
  %942 = vmatpush1.msra.mxu0 0.0
  %943 = vmatprep.subr.mxu0 0.0
  %944 = vmatpush1.msra.mxu0 0.0
  %945 = vmatprep.subr.mxu0 0.0
  %946 = vmatpush1.msra.mxu0 0.0
  %947 = vmatprep.subr.mxu0 0.0
  %948 = vmatpush1.msra.mxu0 0.0
  %949 = vmatprep.subr.mxu0 0.0
  %950 = vmatpush1.msra.mxu0 0.0
  %951 = vmatprep.subr.mxu0 0.0
  %952 = vmatpush1.msra.mxu0 0.0
  %953 = vmatprep.subr.mxu0 0.0
  %954 = vmatpush1.msra.mxu0 0.0
  %955 = vmatprep.subr.mxu0 0.0
  %956 = vmatpush1.msra.mxu0 0.0
  %957 = vmatprep.subr.mxu0 0.0
  %958 = vmatpush1.msra.mxu0 0.0
  %959 = vmatprep.mubr.f32.mxu0 0.0
  %960 = vmatmul.mubr.f32.gmra.mrb[0].mxu0 %v884
  %v961 = vpop.f32.mrb[0].mxu0
  %v962 = vadd.f32 0.0, %v961
  %v963 = vpop.f32.mrb[0].mxu0
  %v964 = vadd.f32 0.0, %v963
  %965 = vdwg.mxu0
  %966 = vmatprep.subr.mxu0 0.0
  %967 = vmatpush1.msra.mxu0 %v893
  %968 = vmatprep.subr.mxu0 0.0
  %969 = vmatpush1.msra.mxu0 0.0
  %970 = vmatprep.subr.mxu0 0.0
  %971 = vmatpush1.msra.mxu0 0.0
  %972 = vmatprep.subr.mxu0 0.0
  %973 = vmatpush1.msra.mxu0 0.0
  %974 = vmatprep.subr.mxu0 0.0
  %975 = vmatpush1.msra.mxu0 0.0
  %976 = vmatprep.subr.mxu0 0.0
  %977 = vmatpush1.msra.mxu0 0.0
  %978 = vmatprep.subr.mxu0 0.0
  %979 = vmatpush1.msra.mxu0 0.0
  %980 = vmatprep.subr.mxu0 0.0
  %981 = vmatpush1.msra.mxu0 0.0
  %982 = vmatprep.subr.mxu0 0.0
  %983 = vmatpush1.msra.mxu0 0.0
  %984 = vmatprep.subr.mxu0 0.0
  %985 = vmatpush1.msra.mxu0 0.0
  %986 = vmatprep.subr.mxu0 0.0
  %987 = vmatpush1.msra.mxu0 0.0
  %988 = vmatprep.subr.mxu0 0.0
  %989 = vmatpush1.msra.mxu0 0.0
  %990 = vmatprep.subr.mxu0 0.0
  %991 = vmatpush1.msra.mxu0 0.0
  %992 = vmatprep.subr.mxu0 0.0
  %993 = vmatpush1.msra.mxu0 0.0
  %994 = vmatprep.subr.mxu0 0.0
  %995 = vmatpush1.msra.mxu0 0.0
  %996 = vmatprep.subr.mxu0 0.0
  %997 = vmatpush1.msra.mxu0 0.0
  %998 = vmatprep.subr.mxu0 0.0
  %999 = vmatpush1.msra.mxu0 0.0
  %1000 = vmatprep.subr.mxu0 0.0
  %1001 = vmatpush1.msra.mxu0 0.0
  %1002 = vmatprep.subr.mxu0 0.0
  %1003 = vmatpush1.msra.mxu0 0.0
  %1004 = vmatprep.subr.mxu0 0.0
  %1005 = vmatpush1.msra.mxu0 0.0
  %1006 = vmatprep.subr.mxu0 0.0
  %1007 = vmatpush1.msra.mxu0 0.0
  %1008 = vmatprep.subr.mxu0 0.0
  %1009 = vmatpush1.msra.mxu0 0.0
  %1010 = vmatprep.subr.mxu0 0.0
  %1011 = vmatpush1.msra.mxu0 0.0
  %1012 = vmatprep.subr.mxu0 0.0
  %1013 = vmatpush1.msra.mxu0 0.0
  %1014 = vmatprep.subr.mxu0 0.0
  %1015 = vmatpush1.msra.mxu0 0.0
  %1016 = vmatprep.subr.mxu0 0.0
  %1017 = vmatpush1.msra.mxu0 0.0
  %1018 = vmatprep.subr.mxu0 0.0
  %1019 = vmatpush1.msra.mxu0 0.0
  %1020 = vmatprep.subr.mxu0 0.0
  %1021 = vmatpush1.msra.mxu0 0.0
  %1022 = vmatprep.subr.mxu0 0.0
  %1023 = vmatpush1.msra.mxu0 0.0
  %1024 = vmatprep.subr.mxu0 0.0
  %1025 = vmatpush1.msra.mxu0 0.0
  %1026 = vmatprep.subr.mxu0 0.0
  %1027 = vmatpush1.msra.mxu0 0.0
  %1028 = vmatprep.subr.mxu0 0.0
  %1029 = vmatpush1.msra.mxu0 0.0
  %1030 = vmatprep.mubr.f32.mxu0 0.0
  %1031 = vmatmul.mubr.f32.gmra.mrb[0].mxu0 %v884
  %v1032 = vpop.f32.mrb[0].mxu0
  %v1033 = vadd.f32 0.0, %v1032
  %v1034 = vpop.f32.mrb[0].mxu0
  %1035 = vdwg.mxu0
  %v1036 = vadd.f32 %v870, %v962
  %v1037 = vadd.f32 %v871, %v964
  %v1038 = vadd.f32 %v872, %v1033
  %1039 = vrot.lane.b32.xlu0 %v52, 111
  %v1040 = vpop.permute.xlu0 %1039
  %1041 = vrot.lane.b32.xlu0 %v56, 111
  %v1042 = vpop.permute.xlu0 %1041
  %1043 = vrot.lane.b32.xlu0 %v53, 111
  %v1044 = vpop.permute.xlu0 %1043
  %vm1045 = vcmp.lt.s32.totalorder %v65, 111
  %v1046 = vsel %vm1045, %v1042, %v1044
  %v1047 = vsel %vm1045, %v1040, %v1042
  %v1048 = vsel %vm1045, %v1044, %v1040
  %v1050 = vsel %vm80, %v30, 0
  %v1053 = vsel %vm84, %v1047, 0
  %v1056 = vsel %vm84, %v1046, 0
  %v1059 = vsel %vm84, %v1048, 0
  %1061 = vmatprep.subr.mxu0 %v1056
  %1062 = vmatpush1.msra.mxu0 %v1053
  %1063 = vmatprep.subr.mxu0 0.0
  %1064 = vmatpush1.msra.mxu0 0.0
  %1065 = vmatprep.subr.mxu0 0.0
  %1066 = vmatpush1.msra.mxu0 0.0
  %1067 = vmatprep.subr.mxu0 0.0
  %1068 = vmatpush1.msra.mxu0 0.0
  %1069 = vmatprep.subr.mxu0 0.0
  %1070 = vmatpush1.msra.mxu0 0.0
  %1071 = vmatprep.subr.mxu0 0.0
  %1072 = vmatpush1.msra.mxu0 0.0
  %1073 = vmatprep.subr.mxu0 0.0
  %1074 = vmatpush1.msra.mxu0 0.0
  %1075 = vmatprep.subr.mxu0 0.0
  %1076 = vmatpush1.msra.mxu0 0.0
  %1077 = vmatprep.subr.mxu0 0.0
  %1078 = vmatpush1.msra.mxu0 0.0
  %1079 = vmatprep.subr.mxu0 0.0
  %1080 = vmatpush1.msra.mxu0 0.0
  %1081 = vmatprep.subr.mxu0 0.0
  %1082 = vmatpush1.msra.mxu0 0.0
  %1083 = vmatprep.subr.mxu0 0.0
  %1084 = vmatpush1.msra.mxu0 0.0
  %1085 = vmatprep.subr.mxu0 0.0
  %1086 = vmatpush1.msra.mxu0 0.0
  %1087 = vmatprep.subr.mxu0 0.0
  %1088 = vmatpush1.msra.mxu0 0.0
  %1089 = vmatprep.subr.mxu0 0.0
  %1090 = vmatpush1.msra.mxu0 0.0
  %1091 = vmatprep.subr.mxu0 0.0
  %1092 = vmatpush1.msra.mxu0 0.0
  %1093 = vmatprep.subr.mxu0 0.0
  %1094 = vmatpush1.msra.mxu0 0.0
  %1095 = vmatprep.subr.mxu0 0.0
  %1096 = vmatpush1.msra.mxu0 0.0
  %1097 = vmatprep.subr.mxu0 0.0
  %1098 = vmatpush1.msra.mxu0 0.0
  %1099 = vmatprep.subr.mxu0 0.0
  %1100 = vmatpush1.msra.mxu0 0.0
  %1101 = vmatprep.subr.mxu0 0.0
  %1102 = vmatpush1.msra.mxu0 0.0
  %1103 = vmatprep.subr.mxu0 0.0
  %1104 = vmatpush1.msra.mxu0 0.0
  %1105 = vmatprep.subr.mxu0 0.0
  %1106 = vmatpush1.msra.mxu0 0.0
  %1107 = vmatprep.subr.mxu0 0.0
  %1108 = vmatpush1.msra.mxu0 0.0
  %1109 = vmatprep.subr.mxu0 0.0
  %1110 = vmatpush1.msra.mxu0 0.0
  %1111 = vmatprep.subr.mxu0 0.0
  %1112 = vmatpush1.msra.mxu0 0.0
  %1113 = vmatprep.subr.mxu0 0.0
  %1114 = vmatpush1.msra.mxu0 0.0
  %1115 = vmatprep.subr.mxu0 0.0
  %1116 = vmatpush1.msra.mxu0 0.0
  %1117 = vmatprep.subr.mxu0 0.0
  %1118 = vmatpush1.msra.mxu0 0.0
  %1119 = vmatprep.subr.mxu0 0.0
  %1120 = vmatpush1.msra.mxu0 0.0
  %1121 = vmatprep.subr.mxu0 0.0
  %1122 = vmatpush1.msra.mxu0 0.0
  %1123 = vmatprep.subr.mxu0 0.0
  %1124 = vmatpush1.msra.mxu0 0.0
  %1125 = vmatprep.mubr.f32.mxu0 0.0
  %1126 = vmatmul.mubr.f32.gmra.mrb[0].mxu0 %v1050
  %v1127 = vpop.f32.mrb[0].mxu0
  %v1128 = vadd.f32 0.0, %v1127
  %v1129 = vpop.f32.mrb[0].mxu0
  %v1130 = vadd.f32 0.0, %v1129
  %1131 = vdwg.mxu0
  %1132 = vmatprep.subr.mxu0 0.0
  %1133 = vmatpush1.msra.mxu0 %v1059
  %1134 = vmatprep.subr.mxu0 0.0
  %1135 = vmatpush1.msra.mxu0 0.0
  %1136 = vmatprep.subr.mxu0 0.0
  %1137 = vmatpush1.msra.mxu0 0.0
  %1138 = vmatprep.subr.mxu0 0.0
  %1139 = vmatpush1.msra.mxu0 0.0
  %1140 = vmatprep.subr.mxu0 0.0
  %1141 = vmatpush1.msra.mxu0 0.0
  %1142 = vmatprep.subr.mxu0 0.0
  %1143 = vmatpush1.msra.mxu0 0.0
  %1144 = vmatprep.subr.mxu0 0.0
  %1145 = vmatpush1.msra.mxu0 0.0
  %1146 = vmatprep.subr.mxu0 0.0
  %1147 = vmatpush1.msra.mxu0 0.0
  %1148 = vmatprep.subr.mxu0 0.0
  %1149 = vmatpush1.msra.mxu0 0.0
  %1150 = vmatprep.subr.mxu0 0.0
  %1151 = vmatpush1.msra.mxu0 0.0
  %1152 = vmatprep.subr.mxu0 0.0
  %1153 = vmatpush1.msra.mxu0 0.0
  %1154 = vmatprep.subr.mxu0 0.0
  %1155 = vmatpush1.msra.mxu0 0.0
  %1156 = vmatprep.subr.mxu0 0.0
  %1157 = vmatpush1.msra.mxu0 0.0
  %1158 = vmatprep.subr.mxu0 0.0
  %1159 = vmatpush1.msra.mxu0 0.0
  %1160 = vmatprep.subr.mxu0 0.0
  %1161 = vmatpush1.msra.mxu0 0.0
  %1162 = vmatprep.subr.mxu0 0.0
  %1163 = vmatpush1.msra.mxu0 0.0
  %1164 = vmatprep.subr.mxu0 0.0
  %1165 = vmatpush1.msra.mxu0 0.0
  %1166 = vmatprep.subr.mxu0 0.0
  %1167 = vmatpush1.msra.mxu0 0.0
  %1168 = vmatprep.subr.mxu0 0.0
  %1169 = vmatpush1.msra.mxu0 0.0
  %1170 = vmatprep.subr.mxu0 0.0
  %1171 = vmatpush1.msra.mxu0 0.0
  %1172 = vmatprep.subr.mxu0 0.0
  %1173 = vmatpush1.msra.mxu0 0.0
  %1174 = vmatprep.subr.mxu0 0.0
  %1175 = vmatpush1.msra.mxu0 0.0
  %1176 = vmatprep.subr.mxu0 0.0
  %1177 = vmatpush1.msra.mxu0 0.0
  %1178 = vmatprep.subr.mxu0 0.0
  %1179 = vmatpush1.msra.mxu0 0.0
  %1180 = vmatprep.subr.mxu0 0.0
  %1181 = vmatpush1.msra.mxu0 0.0
  %1182 = vmatprep.subr.mxu0 0.0
  %1183 = vmatpush1.msra.mxu0 0.0
  %1184 = vmatprep.subr.mxu0 0.0
  %1185 = vmatpush1.msra.mxu0 0.0
  %1186 = vmatprep.subr.mxu0 0.0
  %1187 = vmatpush1.msra.mxu0 0.0
  %1188 = vmatprep.subr.mxu0 0.0
  %1189 = vmatpush1.msra.mxu0 0.0
  %1190 = vmatprep.subr.mxu0 0.0
  %1191 = vmatpush1.msra.mxu0 0.0
  %1192 = vmatprep.subr.mxu0 0.0
  %1193 = vmatpush1.msra.mxu0 0.0
  %1194 = vmatprep.subr.mxu0 0.0
  %1195 = vmatpush1.msra.mxu0 0.0
  %1196 = vmatprep.mubr.f32.mxu0 0.0
  %1197 = vmatmul.mubr.f32.gmra.mrb[0].mxu0 %v1050
  %v1198 = vpop.f32.mrb[0].mxu0
  %v1199 = vadd.f32 0.0, %v1198
  %v1200 = vpop.f32.mrb[0].mxu0
  %1201 = vdwg.mxu0
  %v1202 = vadd.f32 %v1036, %v1128
  %v1203 = vadd.f32 %v1037, %v1130
  %v1204 = vadd.f32 %v1038, %v1199
  %1205 = vrot.lane.b32.xlu0 %v52, 110
  %v1206 = vpop.permute.xlu0 %1205
  %1207 = vrot.lane.b32.xlu0 %v56, 110
  %v1208 = vpop.permute.xlu0 %1207
  %1209 = vrot.lane.b32.xlu0 %v53, 110
  %v1210 = vpop.permute.xlu0 %1209
  %vm1211 = vcmp.lt.s32.totalorder %v65, 110
  %v1212 = vsel %vm1211, %v1208, %v1210
  %v1213 = vsel %vm1211, %v1206, %v1208
  %v1214 = vsel %vm1211, %v1210, %v1206
  %v1216 = vsel %vm80, %v32, 0
  %v1219 = vsel %vm84, %v1213, 0
  %v1222 = vsel %vm84, %v1212, 0
  %v1225 = vsel %vm84, %v1214, 0
  %1227 = vmatprep.subr.mxu0 %v1222
  %1228 = vmatpush1.msra.mxu0 %v1219
  %1229 = vmatprep.subr.mxu0 0.0
  %1230 = vmatpush1.msra.mxu0 0.0
  %1231 = vmatprep.subr.mxu0 0.0
  %1232 = vmatpush1.msra.mxu0 0.0
  %1233 = vmatprep.subr.mxu0 0.0
  %1234 = vmatpush1.msra.mxu0 0.0
  %1235 = vmatprep.subr.mxu0 0.0
  %1236 = vmatpush1.msra.mxu0 0.0
  %1237 = vmatprep.subr.mxu0 0.0
  %1238 = vmatpush1.msra.mxu0 0.0
  %1239 = vmatprep.subr.mxu0 0.0
  %1240 = vmatpush1.msra.mxu0 0.0
  %1241 = vmatprep.subr.mxu0 0.0
  %1242 = vmatpush1.msra.mxu0 0.0
  %1243 = vmatprep.subr.mxu0 0.0
  %1244 = vmatpush1.msra.mxu0 0.0
  %1245 = vmatprep.subr.mxu0 0.0
  %1246 = vmatpush1.msra.mxu0 0.0
  %1247 = vmatprep.subr.mxu0 0.0
  %1248 = vmatpush1.msra.mxu0 0.0
  %1249 = vmatprep.subr.mxu0 0.0
  %1250 = vmatpush1.msra.mxu0 0.0
  %1251 = vmatprep.subr.mxu0 0.0
  %1252 = vmatpush1.msra.mxu0 0.0
  %1253 = vmatprep.subr.mxu0 0.0
  %1254 = vmatpush1.msra.mxu0 0.0
  %1255 = vmatprep.subr.mxu0 0.0
  %1256 = vmatpush1.msra.mxu0 0.0
  %1257 = vmatprep.subr.mxu0 0.0
  %1258 = vmatpush1.msra.mxu0 0.0
  %1259 = vmatprep.subr.mxu0 0.0
  %1260 = vmatpush1.msra.mxu0 0.0
  %1261 = vmatprep.subr.mxu0 0.0
  %1262 = vmatpush1.msra.mxu0 0.0
  %1263 = vmatprep.subr.mxu0 0.0
  %1264 = vmatpush1.msra.mxu0 0.0
  %1265 = vmatprep.subr.mxu0 0.0
  %1266 = vmatpush1.msra.mxu0 0.0
  %1267 = vmatprep.subr.mxu0 0.0
  %1268 = vmatpush1.msra.mxu0 0.0
  %1269 = vmatprep.subr.mxu0 0.0
  %1270 = vmatpush1.msra.mxu0 0.0
  %1271 = vmatprep.subr.mxu0 0.0
  %1272 = vmatpush1.msra.mxu0 0.0
  %1273 = vmatprep.subr.mxu0 0.0
  %1274 = vmatpush1.msra.mxu0 0.0
  %1275 = vmatprep.subr.mxu0 0.0
  %1276 = vmatpush1.msra.mxu0 0.0
  %1277 = vmatprep.subr.mxu0 0.0
  %1278 = vmatpush1.msra.mxu0 0.0
  %1279 = vmatprep.subr.mxu0 0.0
  %1280 = vmatpush1.msra.mxu0 0.0
  %1281 = vmatprep.subr.mxu0 0.0
  %1282 = vmatpush1.msra.mxu0 0.0
  %1283 = vmatprep.subr.mxu0 0.0
  %1284 = vmatpush1.msra.mxu0 0.0
  %1285 = vmatprep.subr.mxu0 0.0
  %1286 = vmatpush1.msra.mxu0 0.0
  %1287 = vmatprep.subr.mxu0 0.0
  %1288 = vmatpush1.msra.mxu0 0.0
  %1289 = vmatprep.subr.mxu0 0.0
  %1290 = vmatpush1.msra.mxu0 0.0
  %1291 = vmatprep.mubr.f32.mxu0 0.0
  %1292 = vmatmul.mubr.f32.gmra.mrb[0].mxu0 %v1216
  %v1293 = vpop.f32.mrb[0].mxu0
  %v1294 = vadd.f32 0.0, %v1293
  %v1295 = vpop.f32.mrb[0].mxu0
  %v1296 = vadd.f32 0.0, %v1295
  %1297 = vdwg.mxu0
  %1298 = vmatprep.subr.mxu0 0.0
  %1299 = vmatpush1.msra.mxu0 %v1225
  %1300 = vmatprep.subr.mxu0 0.0
  %1301 = vmatpush1.msra.mxu0 0.0
  %1302 = vmatprep.subr.mxu0 0.0
  %1303 = vmatpush1.msra.mxu0 0.0
  %1304 = vmatprep.subr.mxu0 0.0
  %1305 = vmatpush1.msra.mxu0 0.0
  %1306 = vmatprep.subr.mxu0 0.0
  %1307 = vmatpush1.msra.mxu0 0.0
  %1308 = vmatprep.subr.mxu0 0.0
  %1309 = vmatpush1.msra.mxu0 0.0
  %1310 = vmatprep.subr.mxu0 0.0
  %1311 = vmatpush1.msra.mxu0 0.0
  %1312 = vmatprep.subr.mxu0 0.0
  %1313 = vmatpush1.msra.mxu0 0.0
  %1314 = vmatprep.subr.mxu0 0.0
  %1315 = vmatpush1.msra.mxu0 0.0
  %1316 = vmatprep.subr.mxu0 0.0
  %1317 = vmatpush1.msra.mxu0 0.0
  %1318 = vmatprep.subr.mxu0 0.0
  %1319 = vmatpush1.msra.mxu0 0.0
  %1320 = vmatprep.subr.mxu0 0.0
  %1321 = vmatpush1.msra.mxu0 0.0
  %1322 = vmatprep.subr.mxu0 0.0
  %1323 = vmatpush1.msra.mxu0 0.0
  %1324 = vmatprep.subr.mxu0 0.0
  %1325 = vmatpush1.msra.mxu0 0.0
  %1326 = vmatprep.subr.mxu0 0.0
  %1327 = vmatpush1.msra.mxu0 0.0
  %1328 = vmatprep.subr.mxu0 0.0
  %1329 = vmatpush1.msra.mxu0 0.0
  %1330 = vmatprep.subr.mxu0 0.0
  %1331 = vmatpush1.msra.mxu0 0.0
  %1332 = vmatprep.subr.mxu0 0.0
  %1333 = vmatpush1.msra.mxu0 0.0
  %1334 = vmatprep.subr.mxu0 0.0
  %1335 = vmatpush1.msra.mxu0 0.0
  %1336 = vmatprep.subr.mxu0 0.0
  %1337 = vmatpush1.msra.mxu0 0.0
  %1338 = vmatprep.subr.mxu0 0.0
  %1339 = vmatpush1.msra.mxu0 0.0
  %1340 = vmatprep.subr.mxu0 0.0
  %1341 = vmatpush1.msra.mxu0 0.0
  %1342 = vmatprep.subr.mxu0 0.0
  %1343 = vmatpush1.msra.mxu0 0.0
  %1344 = vmatprep.subr.mxu0 0.0
  %1345 = vmatpush1.msra.mxu0 0.0
  %1346 = vmatprep.subr.mxu0 0.0
  %1347 = vmatpush1.msra.mxu0 0.0
  %1348 = vmatprep.subr.mxu0 0.0
  %1349 = vmatpush1.msra.mxu0 0.0
  %1350 = vmatprep.subr.mxu0 0.0
  %1351 = vmatpush1.msra.mxu0 0.0
  %1352 = vmatprep.subr.mxu0 0.0
  %1353 = vmatpush1.msra.mxu0 0.0
  %1354 = vmatprep.subr.mxu0 0.0
  %1355 = vmatpush1.msra.mxu0 0.0
  %1356 = vmatprep.subr.mxu0 0.0
  %1357 = vmatpush1.msra.mxu0 0.0
  %1358 = vmatprep.subr.mxu0 0.0
  %1359 = vmatpush1.msra.mxu0 0.0
  %1360 = vmatprep.subr.mxu0 0.0
  %1361 = vmatpush1.msra.mxu0 0.0
  %1362 = vmatprep.mubr.f32.mxu0 0.0
  %1363 = vmatmul.mubr.f32.gmra.mrb[0].mxu0 %v1216
  %v1364 = vpop.f32.mrb[0].mxu0
  %v1365 = vadd.f32 0.0, %v1364
  %v1366 = vpop.f32.mrb[0].mxu0
  %1367 = vdwg.mxu0
  %v1368 = vadd.f32 %v1202, %v1294
  %v1369 = vadd.f32 %v1203, %v1296
  %v1370 = vadd.f32 %v1204, %v1365
  %1371 = vrot.lane.b32.xlu0 %v52, 109
  %v1372 = vpop.permute.xlu0 %1371
  %1373 = vrot.lane.b32.xlu0 %v56, 109
  %v1374 = vpop.permute.xlu0 %1373
  %1375 = vrot.lane.b32.xlu0 %v53, 109
  %v1376 = vpop.permute.xlu0 %1375
  %vm1377 = vcmp.lt.s32.totalorder %v65, 109
  %v1378 = vsel %vm1377, %v1374, %v1376
  %v1379 = vsel %vm1377, %v1372, %v1374
  %v1380 = vsel %vm1377, %v1376, %v1372
  %v1382 = vsel %vm80, %v34, 0
  %v1385 = vsel %vm84, %v1379, 0
  %v1388 = vsel %vm84, %v1378, 0
  %v1391 = vsel %vm84, %v1380, 0
  %1393 = vmatprep.subr.mxu0 %v1388
  %1394 = vmatpush1.msra.mxu0 %v1385
  %1395 = vmatprep.subr.mxu0 0.0
  %1396 = vmatpush1.msra.mxu0 0.0
  %1397 = vmatprep.subr.mxu0 0.0
  %1398 = vmatpush1.msra.mxu0 0.0
  %1399 = vmatprep.subr.mxu0 0.0
  %1400 = vmatpush1.msra.mxu0 0.0
  %1401 = vmatprep.subr.mxu0 0.0
  %1402 = vmatpush1.msra.mxu0 0.0
  %1403 = vmatprep.subr.mxu0 0.0
  %1404 = vmatpush1.msra.mxu0 0.0
  %1405 = vmatprep.subr.mxu0 0.0
  %1406 = vmatpush1.msra.mxu0 0.0
  %1407 = vmatprep.subr.mxu0 0.0
  %1408 = vmatpush1.msra.mxu0 0.0
  %1409 = vmatprep.subr.mxu0 0.0
  %1410 = vmatpush1.msra.mxu0 0.0
  %1411 = vmatprep.subr.mxu0 0.0
  %1412 = vmatpush1.msra.mxu0 0.0
  %1413 = vmatprep.subr.mxu0 0.0
  %1414 = vmatpush1.msra.mxu0 0.0
  %1415 = vmatprep.subr.mxu0 0.0
  %1416 = vmatpush1.msra.mxu0 0.0
  %1417 = vmatprep.subr.mxu0 0.0
  %1418 = vmatpush1.msra.mxu0 0.0
  %1419 = vmatprep.subr.mxu0 0.0
  %1420 = vmatpush1.msra.mxu0 0.0
  %1421 = vmatprep.subr.mxu0 0.0
  %1422 = vmatpush1.msra.mxu0 0.0
  %1423 = vmatprep.subr.mxu0 0.0
  %1424 = vmatpush1.msra.mxu0 0.0
  %1425 = vmatprep.subr.mxu0 0.0
  %1426 = vmatpush1.msra.mxu0 0.0
  %1427 = vmatprep.subr.mxu0 0.0
  %1428 = vmatpush1.msra.mxu0 0.0
  %1429 = vmatprep.subr.mxu0 0.0
  %1430 = vmatpush1.msra.mxu0 0.0
  %1431 = vmatprep.subr.mxu0 0.0
  %1432 = vmatpush1.msra.mxu0 0.0
  %1433 = vmatprep.subr.mxu0 0.0
  %1434 = vmatpush1.msra.mxu0 0.0
  %1435 = vmatprep.subr.mxu0 0.0
  %1436 = vmatpush1.msra.mxu0 0.0
  %1437 = vmatprep.subr.mxu0 0.0
  %1438 = vmatpush1.msra.mxu0 0.0
  %1439 = vmatprep.subr.mxu0 0.0
  %1440 = vmatpush1.msra.mxu0 0.0
  %1441 = vmatprep.subr.mxu0 0.0
  %1442 = vmatpush1.msra.mxu0 0.0
  %1443 = vmatprep.subr.mxu0 0.0
  %1444 = vmatpush1.msra.mxu0 0.0
  %1445 = vmatprep.subr.mxu0 0.0
  %1446 = vmatpush1.msra.mxu0 0.0
  %1447 = vmatprep.subr.mxu0 0.0
  %1448 = vmatpush1.msra.mxu0 0.0
  %1449 = vmatprep.subr.mxu0 0.0
  %1450 = vmatpush1.msra.mxu0 0.0
  %1451 = vmatprep.subr.mxu0 0.0
  %1452 = vmatpush1.msra.mxu0 0.0
  %1453 = vmatprep.subr.mxu0 0.0
  %1454 = vmatpush1.msra.mxu0 0.0
  %1455 = vmatprep.subr.mxu0 0.0
  %1456 = vmatpush1.msra.mxu0 0.0
  %1457 = vmatprep.mubr.f32.mxu0 0.0
  %1458 = vmatmul.mubr.f32.gmra.mrb[0].mxu0 %v1382
  %v1459 = vpop.f32.mrb[0].mxu0
  %v1460 = vadd.f32 0.0, %v1459
  %v1461 = vpop.f32.mrb[0].mxu0
  %v1462 = vadd.f32 0.0, %v1461
  %1463 = vdwg.mxu0
  %1464 = vmatprep.subr.mxu0 0.0
  %1465 = vmatpush1.msra.mxu0 %v1391
  %1466 = vmatprep.subr.mxu0 0.0
  %1467 = vmatpush1.msra.mxu0 0.0
  %1468 = vmatprep.subr.mxu0 0.0
  %1469 = vmatpush1.msra.mxu0 0.0
  %1470 = vmatprep.subr.mxu0 0.0
  %1471 = vmatpush1.msra.mxu0 0.0
  %1472 = vmatprep.subr.mxu0 0.0
  %1473 = vmatpush1.msra.mxu0 0.0
  %1474 = vmatprep.subr.mxu0 0.0
  %1475 = vmatpush1.msra.mxu0 0.0
  %1476 = vmatprep.subr.mxu0 0.0
  %1477 = vmatpush1.msra.mxu0 0.0
  %1478 = vmatprep.subr.mxu0 0.0
  %1479 = vmatpush1.msra.mxu0 0.0
  %1480 = vmatprep.subr.mxu0 0.0
  %1481 = vmatpush1.msra.mxu0 0.0
  %1482 = vmatprep.subr.mxu0 0.0
  %1483 = vmatpush1.msra.mxu0 0.0
  %1484 = vmatprep.subr.mxu0 0.0
  %1485 = vmatpush1.msra.mxu0 0.0
  %1486 = vmatprep.subr.mxu0 0.0
  %1487 = vmatpush1.msra.mxu0 0.0
  %1488 = vmatprep.subr.mxu0 0.0
  %1489 = vmatpush1.msra.mxu0 0.0
  %1490 = vmatprep.subr.mxu0 0.0
  %1491 = vmatpush1.msra.mxu0 0.0
  %1492 = vmatprep.subr.mxu0 0.0
  %1493 = vmatpush1.msra.mxu0 0.0
  %1494 = vmatprep.subr.mxu0 0.0
  %1495 = vmatpush1.msra.mxu0 0.0
  %1496 = vmatprep.subr.mxu0 0.0
  %1497 = vmatpush1.msra.mxu0 0.0
  %1498 = vmatprep.subr.mxu0 0.0
  %1499 = vmatpush1.msra.mxu0 0.0
  %1500 = vmatprep.subr.mxu0 0.0
  %1501 = vmatpush1.msra.mxu0 0.0
  %1502 = vmatprep.subr.mxu0 0.0
  %1503 = vmatpush1.msra.mxu0 0.0
  %1504 = vmatprep.subr.mxu0 0.0
  %1505 = vmatpush1.msra.mxu0 0.0
  %1506 = vmatprep.subr.mxu0 0.0
  %1507 = vmatpush1.msra.mxu0 0.0
  %1508 = vmatprep.subr.mxu0 0.0
  %1509 = vmatpush1.msra.mxu0 0.0
  %1510 = vmatprep.subr.mxu0 0.0
  %1511 = vmatpush1.msra.mxu0 0.0
  %1512 = vmatprep.subr.mxu0 0.0
  %1513 = vmatpush1.msra.mxu0 0.0
  %1514 = vmatprep.subr.mxu0 0.0
  %1515 = vmatpush1.msra.mxu0 0.0
  %1516 = vmatprep.subr.mxu0 0.0
  %1517 = vmatpush1.msra.mxu0 0.0
  %1518 = vmatprep.subr.mxu0 0.0
  %1519 = vmatpush1.msra.mxu0 0.0
  %1520 = vmatprep.subr.mxu0 0.0
  %1521 = vmatpush1.msra.mxu0 0.0
  %1522 = vmatprep.subr.mxu0 0.0
  %1523 = vmatpush1.msra.mxu0 0.0
  %1524 = vmatprep.subr.mxu0 0.0
  %1525 = vmatpush1.msra.mxu0 0.0
  %1526 = vmatprep.subr.mxu0 0.0
  %1527 = vmatpush1.msra.mxu0 0.0
  %1528 = vmatprep.mubr.f32.mxu0 0.0
  %1529 = vmatmul.mubr.f32.gmra.mrb[0].mxu0 %v1382
  %v1530 = vpop.f32.mrb[0].mxu0
  %v1531 = vadd.f32 0.0, %v1530
  %v1532 = vpop.f32.mrb[0].mxu0
  %1533 = vdwg.mxu0
  %v1534 = vadd.f32 %v1368, %v1460
  %v1535 = vadd.f32 %v1369, %v1462
  %v1536 = vadd.f32 %v1370, %v1531
  %v1537 = vmax.f32 %v1534, 0.0
  %v1538 = vmax.f32 %v1535, 0.0
  %v1539 = vmax.f32 %v1536, 0.0
  %v1541 = vlaneseq
  %v1542 = vshrl.u32 %v1541, 7
  %v1543 = vsub.s32 0, %v1542
  %v1544 = vrot.slane %v17, %v1543
  %v1545 = vlaneseq
  %v1546 = vshrl.u32 %v1545, 7
  %v1547 = vsub.s32 1, %v1546
  %v1548 = vrot.slane %v17, %v1547
  %v1549 = vlaneseq
  %v1550 = vshrl.u32 %v1549, 7
  %v1551 = vsub.s32 2, %v1550
  %v1552 = vrot.slane %v17, %v1551
  %v1556 = vmul.f32 %v1537, %v1544
  %v1557 = vmul.f32 %v1538, %v1548
  %v1558 = vmul.f32 %v1539, %v1552
  %1559 = vrot.lane.b32.xlu0 %v1556, 19
  %v1560 = vpop.permute.xlu0 %1559
  %1561 = vrot.lane.b32.xlu0 %v1557, 19
  %v1562 = vpop.permute.xlu0 %1561
  %1563 = vrot.lane.b32.xlu0 %v1558, 19
  %v1564 = vpop.permute.xlu0 %1563
  %v1565 = vsel %vm66, %v1562, %v1564
  %v1566 = vsel %vm66, %v1560, %v1562
  %v1567 = vsel %vm66, %v1564, %v1560
  %1568 = vrot.lane.b32.xlu0 %v1556, 18
  %v1569 = vpop.permute.xlu0 %1568
  %1570 = vrot.lane.b32.xlu0 %v1557, 18
  %v1571 = vpop.permute.xlu0 %1570
  %1572 = vrot.lane.b32.xlu0 %v1558, 18
  %v1573 = vpop.permute.xlu0 %1572
  %v1574 = vsel %vm76, %v1571, %v1573
  %v1575 = vsel %vm76, %v1569, %v1571
  %v1576 = vsel %vm76, %v1573, %v1569
  %vm1577 = vcmask 64512
  %v1579 = vsel %vm1577, %v37, 0
  %1581 = vmatprep.subr.mxu0 %v1575
  %1582 = vmatpush1.msra.mxu0 %v1576
  %1583 = vmatprep.subr.mxu0 0.0
  %1584 = vmatpush1.msra.mxu0 0.0
  %1585 = vmatprep.subr.mxu0 0.0
  %1586 = vmatpush1.msra.mxu0 0.0
  %1587 = vmatprep.subr.mxu0 0.0
  %1588 = vmatpush1.msra.mxu0 0.0
  %1589 = vmatprep.subr.mxu0 0.0
  %1590 = vmatpush1.msra.mxu0 0.0
  %1591 = vmatprep.subr.mxu0 0.0
  %1592 = vmatpush1.msra.mxu0 0.0
  %1593 = vmatprep.subr.mxu0 0.0
  %1594 = vmatpush1.msra.mxu0 0.0
  %1595 = vmatprep.subr.mxu0 0.0
  %1596 = vmatpush1.msra.mxu0 0.0
  %1597 = vmatprep.subr.mxu0 0.0
  %1598 = vmatpush1.msra.mxu0 0.0
  %1599 = vmatprep.subr.mxu0 0.0
  %1600 = vmatpush1.msra.mxu0 0.0
  %1601 = vmatprep.subr.mxu0 0.0
  %1602 = vmatpush1.msra.mxu0 0.0
  %1603 = vmatprep.subr.mxu0 0.0
  %1604 = vmatpush1.msra.mxu0 0.0
  %1605 = vmatprep.subr.mxu0 0.0
  %1606 = vmatpush1.msra.mxu0 0.0
  %1607 = vmatprep.subr.mxu0 0.0
  %1608 = vmatpush1.msra.mxu0 0.0
  %1609 = vmatprep.subr.mxu0 0.0
  %1610 = vmatpush1.msra.mxu0 0.0
  %1611 = vmatprep.subr.mxu0 0.0
  %1612 = vmatpush1.msra.mxu0 0.0
  %1613 = vmatprep.subr.mxu0 0.0
  %1614 = vmatpush1.msra.mxu0 0.0
  %1615 = vmatprep.subr.mxu0 0.0
  %1616 = vmatpush1.msra.mxu0 0.0
  %1617 = vmatprep.subr.mxu0 0.0
  %1618 = vmatpush1.msra.mxu0 0.0
  %1619 = vmatprep.subr.mxu0 0.0
  %1620 = vmatpush1.msra.mxu0 0.0
  %1621 = vmatprep.subr.mxu0 0.0
  %1622 = vmatpush1.msra.mxu0 0.0
  %1623 = vmatprep.subr.mxu0 0.0
  %1624 = vmatpush1.msra.mxu0 0.0
  %1625 = vmatprep.subr.mxu0 0.0
  %1626 = vmatpush1.msra.mxu0 0.0
  %1627 = vmatprep.subr.mxu0 0.0
  %1628 = vmatpush1.msra.mxu0 0.0
  %1629 = vmatprep.subr.mxu0 0.0
  %1630 = vmatpush1.msra.mxu0 0.0
  %1631 = vmatprep.subr.mxu0 0.0
  %1632 = vmatpush1.msra.mxu0 0.0
  %1633 = vmatprep.subr.mxu0 0.0
  %1634 = vmatpush1.msra.mxu0 0.0
  %1635 = vmatprep.subr.mxu0 0.0
  %1636 = vmatpush1.msra.mxu0 0.0
  %1637 = vmatprep.subr.mxu0 0.0
  %1638 = vmatpush1.msra.mxu0 0.0
  %1639 = vmatprep.subr.mxu0 0.0
  %1640 = vmatpush1.msra.mxu0 0.0
  %1641 = vmatprep.subr.mxu0 0.0
  %1642 = vmatpush1.msra.mxu0 0.0
  %1643 = vmatprep.subr.mxu0 0.0
  %1644 = vmatpush1.msra.mxu0 0.0
  %1645 = vmatprep.mubr.f32.mxu0 0.0
  %1646 = vmatmul.mubr.f32.gmra.mrb[0].mxu0 %v1579
  %v1647 = vpop.f32.mrb[0].mxu0
  %v1648 = vadd.f32 0.0, %v1647
  %v1649 = vpop.f32.mrb[0].mxu0
  %v1650 = vadd.f32 0.0, %v1649
  %1651 = vdwg.mxu0
  %1652 = vmatprep.subr.mxu0 0.0
  %1653 = vmatpush1.msra.mxu0 %v1574
  %1654 = vmatprep.subr.mxu0 0.0
  %1655 = vmatpush1.msra.mxu0 0.0
  %1656 = vmatprep.subr.mxu0 0.0
  %1657 = vmatpush1.msra.mxu0 0.0
  %1658 = vmatprep.subr.mxu0 0.0
  %1659 = vmatpush1.msra.mxu0 0.0
  %1660 = vmatprep.subr.mxu0 0.0
  %1661 = vmatpush1.msra.mxu0 0.0
  %1662 = vmatprep.subr.mxu0 0.0
  %1663 = vmatpush1.msra.mxu0 0.0
  %1664 = vmatprep.subr.mxu0 0.0
  %1665 = vmatpush1.msra.mxu0 0.0
  %1666 = vmatprep.subr.mxu0 0.0
  %1667 = vmatpush1.msra.mxu0 0.0
  %1668 = vmatprep.subr.mxu0 0.0
  %1669 = vmatpush1.msra.mxu0 0.0
  %1670 = vmatprep.subr.mxu0 0.0
  %1671 = vmatpush1.msra.mxu0 0.0
  %1672 = vmatprep.subr.mxu0 0.0
  %1673 = vmatpush1.msra.mxu0 0.0
  %1674 = vmatprep.subr.mxu0 0.0
  %1675 = vmatpush1.msra.mxu0 0.0
  %1676 = vmatprep.subr.mxu0 0.0
  %1677 = vmatpush1.msra.mxu0 0.0
  %1678 = vmatprep.subr.mxu0 0.0
  %1679 = vmatpush1.msra.mxu0 0.0
  %1680 = vmatprep.subr.mxu0 0.0
  %1681 = vmatpush1.msra.mxu0 0.0
  %1682 = vmatprep.subr.mxu0 0.0
  %1683 = vmatpush1.msra.mxu0 0.0
  %1684 = vmatprep.subr.mxu0 0.0
  %1685 = vmatpush1.msra.mxu0 0.0
  %1686 = vmatprep.subr.mxu0 0.0
  %1687 = vmatpush1.msra.mxu0 0.0
  %1688 = vmatprep.subr.mxu0 0.0
  %1689 = vmatpush1.msra.mxu0 0.0
  %1690 = vmatprep.subr.mxu0 0.0
  %1691 = vmatpush1.msra.mxu0 0.0
  %1692 = vmatprep.subr.mxu0 0.0
  %1693 = vmatpush1.msra.mxu0 0.0
  %1694 = vmatprep.subr.mxu0 0.0
  %1695 = vmatpush1.msra.mxu0 0.0
  %1696 = vmatprep.subr.mxu0 0.0
  %1697 = vmatpush1.msra.mxu0 0.0
  %1698 = vmatprep.subr.mxu0 0.0
  %1699 = vmatpush1.msra.mxu0 0.0
  %1700 = vmatprep.subr.mxu0 0.0
  %1701 = vmatpush1.msra.mxu0 0.0
  %1702 = vmatprep.subr.mxu0 0.0
  %1703 = vmatpush1.msra.mxu0 0.0
  %1704 = vmatprep.subr.mxu0 0.0
  %1705 = vmatpush1.msra.mxu0 0.0
  %1706 = vmatprep.subr.mxu0 0.0
  %1707 = vmatpush1.msra.mxu0 0.0
  %1708 = vmatprep.subr.mxu0 0.0
  %1709 = vmatpush1.msra.mxu0 0.0
  %1710 = vmatprep.subr.mxu0 0.0
  %1711 = vmatpush1.msra.mxu0 0.0
  %1712 = vmatprep.subr.mxu0 0.0
  %1713 = vmatpush1.msra.mxu0 0.0
  %1714 = vmatprep.subr.mxu0 0.0
  %1715 = vmatpush1.msra.mxu0 0.0
  %1716 = vmatprep.mubr.f32.mxu0 0.0
  %1717 = vmatmul.mubr.f32.gmra.mrb[0].mxu0 %v1579
  %v1718 = vpop.f32.mrb[0].mxu0
  %v1719 = vadd.f32 0.0, %v1718
  %v1720 = vpop.f32.mrb[0].mxu0
  %1721 = vdwg.mxu0
  %v1723 = vsel %vm1577, %v35, 0
  %1725 = vmatprep.subr.mxu0 %v1566
  %1726 = vmatpush1.msra.mxu0 %v1567
  %1727 = vmatprep.subr.mxu0 0.0
  %1728 = vmatpush1.msra.mxu0 0.0
  %1729 = vmatprep.subr.mxu0 0.0
  %1730 = vmatpush1.msra.mxu0 0.0
  %1731 = vmatprep.subr.mxu0 0.0
  %1732 = vmatpush1.msra.mxu0 0.0
  %1733 = vmatprep.subr.mxu0 0.0
  %1734 = vmatpush1.msra.mxu0 0.0
  %1735 = vmatprep.subr.mxu0 0.0
  %1736 = vmatpush1.msra.mxu0 0.0
  %1737 = vmatprep.subr.mxu0 0.0
  %1738 = vmatpush1.msra.mxu0 0.0
  %1739 = vmatprep.subr.mxu0 0.0
  %1740 = vmatpush1.msra.mxu0 0.0
  %1741 = vmatprep.subr.mxu0 0.0
  %1742 = vmatpush1.msra.mxu0 0.0
  %1743 = vmatprep.subr.mxu0 0.0
  %1744 = vmatpush1.msra.mxu0 0.0
  %1745 = vmatprep.subr.mxu0 0.0
  %1746 = vmatpush1.msra.mxu0 0.0
  %1747 = vmatprep.subr.mxu0 0.0
  %1748 = vmatpush1.msra.mxu0 0.0
  %1749 = vmatprep.subr.mxu0 0.0
  %1750 = vmatpush1.msra.mxu0 0.0
  %1751 = vmatprep.subr.mxu0 0.0
  %1752 = vmatpush1.msra.mxu0 0.0
  %1753 = vmatprep.subr.mxu0 0.0
  %1754 = vmatpush1.msra.mxu0 0.0
  %1755 = vmatprep.subr.mxu0 0.0
  %1756 = vmatpush1.msra.mxu0 0.0
  %1757 = vmatprep.subr.mxu0 0.0
  %1758 = vmatpush1.msra.mxu0 0.0
  %1759 = vmatprep.subr.mxu0 0.0
  %1760 = vmatpush1.msra.mxu0 0.0
  %1761 = vmatprep.subr.mxu0 0.0
  %1762 = vmatpush1.msra.mxu0 0.0
  %1763 = vmatprep.subr.mxu0 0.0
  %1764 = vmatpush1.msra.mxu0 0.0
  %1765 = vmatprep.subr.mxu0 0.0
  %1766 = vmatpush1.msra.mxu0 0.0
  %1767 = vmatprep.subr.mxu0 0.0
  %1768 = vmatpush1.msra.mxu0 0.0
  %1769 = vmatprep.subr.mxu0 0.0
  %1770 = vmatpush1.msra.mxu0 0.0
  %1771 = vmatprep.subr.mxu0 0.0
  %1772 = vmatpush1.msra.mxu0 0.0
  %1773 = vmatprep.subr.mxu0 0.0
  %1774 = vmatpush1.msra.mxu0 0.0
  %1775 = vmatprep.subr.mxu0 0.0
  %1776 = vmatpush1.msra.mxu0 0.0
  %1777 = vmatprep.subr.mxu0 0.0
  %1778 = vmatpush1.msra.mxu0 0.0
  %1779 = vmatprep.subr.mxu0 0.0
  %1780 = vmatpush1.msra.mxu0 0.0
  %1781 = vmatprep.subr.mxu0 0.0
  %1782 = vmatpush1.msra.mxu0 0.0
  %1783 = vmatprep.subr.mxu0 0.0
  %1784 = vmatpush1.msra.mxu0 0.0
  %1785 = vmatprep.subr.mxu0 0.0
  %1786 = vmatpush1.msra.mxu0 0.0
  %1787 = vmatprep.subr.mxu0 0.0
  %1788 = vmatpush1.msra.mxu0 0.0
  %1789 = vmatprep.mubr.f32.mxu0 0.0
  %1790 = vmatmul.mubr.f32.gmra.mrb[0].mxu0 %v1723
  %v1791 = vpop.f32.mrb[0].mxu0
  %v1792 = vadd.f32 %v1648, %v1791
  %v1793 = vpop.f32.mrb[0].mxu0
  %v1794 = vadd.f32 %v1650, %v1793
  %1795 = vdwg.mxu0
  %1796 = vmatprep.subr.mxu0 0.0
  %1797 = vmatpush1.msra.mxu0 %v1565
  %1798 = vmatprep.subr.mxu0 0.0
  %1799 = vmatpush1.msra.mxu0 0.0
  %1800 = vmatprep.subr.mxu0 0.0
  %1801 = vmatpush1.msra.mxu0 0.0
  %1802 = vmatprep.subr.mxu0 0.0
  %1803 = vmatpush1.msra.mxu0 0.0
  %1804 = vmatprep.subr.mxu0 0.0
  %1805 = vmatpush1.msra.mxu0 0.0
  %1806 = vmatprep.subr.mxu0 0.0
  %1807 = vmatpush1.msra.mxu0 0.0
  %1808 = vmatprep.subr.mxu0 0.0
  %1809 = vmatpush1.msra.mxu0 0.0
  %1810 = vmatprep.subr.mxu0 0.0
  %1811 = vmatpush1.msra.mxu0 0.0
  %1812 = vmatprep.subr.mxu0 0.0
  %1813 = vmatpush1.msra.mxu0 0.0
  %1814 = vmatprep.subr.mxu0 0.0
  %1815 = vmatpush1.msra.mxu0 0.0
  %1816 = vmatprep.subr.mxu0 0.0
  %1817 = vmatpush1.msra.mxu0 0.0
  %1818 = vmatprep.subr.mxu0 0.0
  %1819 = vmatpush1.msra.mxu0 0.0
  %1820 = vmatprep.subr.mxu0 0.0
  %1821 = vmatpush1.msra.mxu0 0.0
  %1822 = vmatprep.subr.mxu0 0.0
  %1823 = vmatpush1.msra.mxu0 0.0
  %1824 = vmatprep.subr.mxu0 0.0
  %1825 = vmatpush1.msra.mxu0 0.0
  %1826 = vmatprep.subr.mxu0 0.0
  %1827 = vmatpush1.msra.mxu0 0.0
  %1828 = vmatprep.subr.mxu0 0.0
  %1829 = vmatpush1.msra.mxu0 0.0
  %1830 = vmatprep.subr.mxu0 0.0
  %1831 = vmatpush1.msra.mxu0 0.0
  %1832 = vmatprep.subr.mxu0 0.0
  %1833 = vmatpush1.msra.mxu0 0.0
  %1834 = vmatprep.subr.mxu0 0.0
  %1835 = vmatpush1.msra.mxu0 0.0
  %1836 = vmatprep.subr.mxu0 0.0
  %1837 = vmatpush1.msra.mxu0 0.0
  %1838 = vmatprep.subr.mxu0 0.0
  %1839 = vmatpush1.msra.mxu0 0.0
  %1840 = vmatprep.subr.mxu0 0.0
  %1841 = vmatpush1.msra.mxu0 0.0
  %1842 = vmatprep.subr.mxu0 0.0
  %1843 = vmatpush1.msra.mxu0 0.0
  %1844 = vmatprep.subr.mxu0 0.0
  %1845 = vmatpush1.msra.mxu0 0.0
  %1846 = vmatprep.subr.mxu0 0.0
  %1847 = vmatpush1.msra.mxu0 0.0
  %1848 = vmatprep.subr.mxu0 0.0
  %1849 = vmatpush1.msra.mxu0 0.0
  %1850 = vmatprep.subr.mxu0 0.0
  %1851 = vmatpush1.msra.mxu0 0.0
  %1852 = vmatprep.subr.mxu0 0.0
  %1853 = vmatpush1.msra.mxu0 0.0
  %1854 = vmatprep.subr.mxu0 0.0
  %1855 = vmatpush1.msra.mxu0 0.0
  %1856 = vmatprep.subr.mxu0 0.0
  %1857 = vmatpush1.msra.mxu0 0.0
  %1858 = vmatprep.subr.mxu0 0.0
  %1859 = vmatpush1.msra.mxu0 0.0
  %1860 = vmatprep.mubr.f32.mxu0 0.0
  %1861 = vmatmul.mubr.f32.gmra.mrb[0].mxu0 %v1723
  %v1862 = vpop.f32.mrb[0].mxu0
  %v1863 = vadd.f32 %v1719, %v1862
  %v1864 = vpop.f32.mrb[0].mxu0
  %1865 = vdwg.mxu0
  %1866 = vrot.lane.b32.xlu0 %v1556, 17
  %v1867 = vpop.permute.xlu0 %1866
  %1868 = vrot.lane.b32.xlu0 %v1557, 17
  %v1869 = vpop.permute.xlu0 %1868
  %1870 = vrot.lane.b32.xlu0 %v1558, 17
  %v1871 = vpop.permute.xlu0 %1870
  %v1872 = vsel %vm394, %v1869, %v1871
  %v1873 = vsel %vm394, %v1867, %v1869
  %v1874 = vsel %vm394, %v1871, %v1867
  %v1876 = vsel %vm1577, %v39, 0
  %1878 = vmatprep.subr.mxu0 %v1873
  %1879 = vmatpush1.msra.mxu0 %v1874
  %1880 = vmatprep.subr.mxu0 0.0
  %1881 = vmatpush1.msra.mxu0 0.0
  %1882 = vmatprep.subr.mxu0 0.0
  %1883 = vmatpush1.msra.mxu0 0.0
  %1884 = vmatprep.subr.mxu0 0.0
  %1885 = vmatpush1.msra.mxu0 0.0
  %1886 = vmatprep.subr.mxu0 0.0
  %1887 = vmatpush1.msra.mxu0 0.0
  %1888 = vmatprep.subr.mxu0 0.0
  %1889 = vmatpush1.msra.mxu0 0.0
  %1890 = vmatprep.subr.mxu0 0.0
  %1891 = vmatpush1.msra.mxu0 0.0
  %1892 = vmatprep.subr.mxu0 0.0
  %1893 = vmatpush1.msra.mxu0 0.0
  %1894 = vmatprep.subr.mxu0 0.0
  %1895 = vmatpush1.msra.mxu0 0.0
  %1896 = vmatprep.subr.mxu0 0.0
  %1897 = vmatpush1.msra.mxu0 0.0
  %1898 = vmatprep.subr.mxu0 0.0
  %1899 = vmatpush1.msra.mxu0 0.0
  %1900 = vmatprep.subr.mxu0 0.0
  %1901 = vmatpush1.msra.mxu0 0.0
  %1902 = vmatprep.subr.mxu0 0.0
  %1903 = vmatpush1.msra.mxu0 0.0
  %1904 = vmatprep.subr.mxu0 0.0
  %1905 = vmatpush1.msra.mxu0 0.0
  %1906 = vmatprep.subr.mxu0 0.0
  %1907 = vmatpush1.msra.mxu0 0.0
  %1908 = vmatprep.subr.mxu0 0.0
  %1909 = vmatpush1.msra.mxu0 0.0
  %1910 = vmatprep.subr.mxu0 0.0
  %1911 = vmatpush1.msra.mxu0 0.0
  %1912 = vmatprep.subr.mxu0 0.0
  %1913 = vmatpush1.msra.mxu0 0.0
  %1914 = vmatprep.subr.mxu0 0.0
  %1915 = vmatpush1.msra.mxu0 0.0
  %1916 = vmatprep.subr.mxu0 0.0
  %1917 = vmatpush1.msra.mxu0 0.0
  %1918 = vmatprep.subr.mxu0 0.0
  %1919 = vmatpush1.msra.mxu0 0.0
  %1920 = vmatprep.subr.mxu0 0.0
  %1921 = vmatpush1.msra.mxu0 0.0
  %1922 = vmatprep.subr.mxu0 0.0
  %1923 = vmatpush1.msra.mxu0 0.0
  %1924 = vmatprep.subr.mxu0 0.0
  %1925 = vmatpush1.msra.mxu0 0.0
  %1926 = vmatprep.subr.mxu0 0.0
  %1927 = vmatpush1.msra.mxu0 0.0
  %1928 = vmatprep.subr.mxu0 0.0
  %1929 = vmatpush1.msra.mxu0 0.0
  %1930 = vmatprep.subr.mxu0 0.0
  %1931 = vmatpush1.msra.mxu0 0.0
  %1932 = vmatprep.subr.mxu0 0.0
  %1933 = vmatpush1.msra.mxu0 0.0
  %1934 = vmatprep.subr.mxu0 0.0
  %1935 = vmatpush1.msra.mxu0 0.0
  %1936 = vmatprep.subr.mxu0 0.0
  %1937 = vmatpush1.msra.mxu0 0.0
  %1938 = vmatprep.subr.mxu0 0.0
  %1939 = vmatpush1.msra.mxu0 0.0
  %1940 = vmatprep.subr.mxu0 0.0
  %1941 = vmatpush1.msra.mxu0 0.0
  %1942 = vmatprep.mubr.f32.mxu0 0.0
  %1943 = vmatmul.mubr.f32.gmra.mrb[0].mxu0 %v1876
  %v1944 = vpop.f32.mrb[0].mxu0
  %v1945 = vadd.f32 0.0, %v1944
  %v1946 = vpop.f32.mrb[0].mxu0
  %v1947 = vadd.f32 0.0, %v1946
  %1948 = vdwg.mxu0
  %1949 = vmatprep.subr.mxu0 0.0
  %1950 = vmatpush1.msra.mxu0 %v1872
  %1951 = vmatprep.subr.mxu0 0.0
  %1952 = vmatpush1.msra.mxu0 0.0
  %1953 = vmatprep.subr.mxu0 0.0
  %1954 = vmatpush1.msra.mxu0 0.0
  %1955 = vmatprep.subr.mxu0 0.0
  %1956 = vmatpush1.msra.mxu0 0.0
  %1957 = vmatprep.subr.mxu0 0.0
  %1958 = vmatpush1.msra.mxu0 0.0
  %1959 = vmatprep.subr.mxu0 0.0
  %1960 = vmatpush1.msra.mxu0 0.0
  %1961 = vmatprep.subr.mxu0 0.0
  %1962 = vmatpush1.msra.mxu0 0.0
  %1963 = vmatprep.subr.mxu0 0.0
  %1964 = vmatpush1.msra.mxu0 0.0
  %1965 = vmatprep.subr.mxu0 0.0
  %1966 = vmatpush1.msra.mxu0 0.0
  %1967 = vmatprep.subr.mxu0 0.0
  %1968 = vmatpush1.msra.mxu0 0.0
  %1969 = vmatprep.subr.mxu0 0.0
  %1970 = vmatpush1.msra.mxu0 0.0
  %1971 = vmatprep.subr.mxu0 0.0
  %1972 = vmatpush1.msra.mxu0 0.0
  %1973 = vmatprep.subr.mxu0 0.0
  %1974 = vmatpush1.msra.mxu0 0.0
  %1975 = vmatprep.subr.mxu0 0.0
  %1976 = vmatpush1.msra.mxu0 0.0
  %1977 = vmatprep.subr.mxu0 0.0
  %1978 = vmatpush1.msra.mxu0 0.0
  %1979 = vmatprep.subr.mxu0 0.0
  %1980 = vmatpush1.msra.mxu0 0.0
  %1981 = vmatprep.subr.mxu0 0.0
  %1982 = vmatpush1.msra.mxu0 0.0
  %1983 = vmatprep.subr.mxu0 0.0
  %1984 = vmatpush1.msra.mxu0 0.0
  %1985 = vmatprep.subr.mxu0 0.0
  %1986 = vmatpush1.msra.mxu0 0.0
  %1987 = vmatprep.subr.mxu0 0.0
  %1988 = vmatpush1.msra.mxu0 0.0
  %1989 = vmatprep.subr.mxu0 0.0
  %1990 = vmatpush1.msra.mxu0 0.0
  %1991 = vmatprep.subr.mxu0 0.0
  %1992 = vmatpush1.msra.mxu0 0.0
  %1993 = vmatprep.subr.mxu0 0.0
  %1994 = vmatpush1.msra.mxu0 0.0
  %1995 = vmatprep.subr.mxu0 0.0
  %1996 = vmatpush1.msra.mxu0 0.0
  %1997 = vmatprep.subr.mxu0 0.0
  %1998 = vmatpush1.msra.mxu0 0.0
  %1999 = vmatprep.subr.mxu0 0.0
  %2000 = vmatpush1.msra.mxu0 0.0
  %2001 = vmatprep.subr.mxu0 0.0
  %2002 = vmatpush1.msra.mxu0 0.0
  %2003 = vmatprep.subr.mxu0 0.0
  %2004 = vmatpush1.msra.mxu0 0.0
  %2005 = vmatprep.subr.mxu0 0.0
  %2006 = vmatpush1.msra.mxu0 0.0
  %2007 = vmatprep.subr.mxu0 0.0
  %2008 = vmatpush1.msra.mxu0 0.0
  %2009 = vmatprep.subr.mxu0 0.0
  %2010 = vmatpush1.msra.mxu0 0.0
  %2011 = vmatprep.subr.mxu0 0.0
  %2012 = vmatpush1.msra.mxu0 0.0
  %2013 = vmatprep.mubr.f32.mxu0 0.0
  %2014 = vmatmul.mubr.f32.gmra.mrb[0].mxu0 %v1876
  %v2015 = vpop.f32.mrb[0].mxu0
  %v2016 = vadd.f32 0.0, %v2015
  %v2017 = vpop.f32.mrb[0].mxu0
  %2018 = vdwg.mxu0
  %v2019 = vadd.f32 %v1792, %v1945
  %v2020 = vadd.f32 %v1794, %v1947
  %v2021 = vadd.f32 %v1863, %v2016
  %2022 = vrot.lane.b32.xlu0 %v1556, 1
  %v2023 = vpop.permute.xlu0 %2022
  %2024 = vrot.lane.b32.xlu0 %v1557, 1
  %v2025 = vpop.permute.xlu0 %2024
  %2026 = vrot.lane.b32.xlu0 %v1558, 1
  %v2027 = vpop.permute.xlu0 %2026
  %v2028 = vsel %vm560, %v2025, %v2027
  %v2029 = vsel %vm560, %v2023, %v2025
  %v2030 = vsel %vm560, %v2027, %v2023
  %v2032 = vsel %vm1577, %v41, 0
  %2034 = vmatprep.subr.mxu0 %v2029
  %2035 = vmatpush1.msra.mxu0 %v2030
  %2036 = vmatprep.subr.mxu0 0.0
  %2037 = vmatpush1.msra.mxu0 0.0
  %2038 = vmatprep.subr.mxu0 0.0
  %2039 = vmatpush1.msra.mxu0 0.0
  %2040 = vmatprep.subr.mxu0 0.0
  %2041 = vmatpush1.msra.mxu0 0.0
  %2042 = vmatprep.subr.mxu0 0.0
  %2043 = vmatpush1.msra.mxu0 0.0
  %2044 = vmatprep.subr.mxu0 0.0
  %2045 = vmatpush1.msra.mxu0 0.0
  %2046 = vmatprep.subr.mxu0 0.0
  %2047 = vmatpush1.msra.mxu0 0.0
  %2048 = vmatprep.subr.mxu0 0.0
  %2049 = vmatpush1.msra.mxu0 0.0
  %2050 = vmatprep.subr.mxu0 0.0
  %2051 = vmatpush1.msra.mxu0 0.0
  %2052 = vmatprep.subr.mxu0 0.0
  %2053 = vmatpush1.msra.mxu0 0.0
  %2054 = vmatprep.subr.mxu0 0.0
  %2055 = vmatpush1.msra.mxu0 0.0
  %2056 = vmatprep.subr.mxu0 0.0
  %2057 = vmatpush1.msra.mxu0 0.0
  %2058 = vmatprep.subr.mxu0 0.0
  %2059 = vmatpush1.msra.mxu0 0.0
  %2060 = vmatprep.subr.mxu0 0.0
  %2061 = vmatpush1.msra.mxu0 0.0
  %2062 = vmatprep.subr.mxu0 0.0
  %2063 = vmatpush1.msra.mxu0 0.0
  %2064 = vmatprep.subr.mxu0 0.0
  %2065 = vmatpush1.msra.mxu0 0.0
  %2066 = vmatprep.subr.mxu0 0.0
  %2067 = vmatpush1.msra.mxu0 0.0
  %2068 = vmatprep.subr.mxu0 0.0
  %2069 = vmatpush1.msra.mxu0 0.0
  %2070 = vmatprep.subr.mxu0 0.0
  %2071 = vmatpush1.msra.mxu0 0.0
  %2072 = vmatprep.subr.mxu0 0.0
  %2073 = vmatpush1.msra.mxu0 0.0
  %2074 = vmatprep.subr.mxu0 0.0
  %2075 = vmatpush1.msra.mxu0 0.0
  %2076 = vmatprep.subr.mxu0 0.0
  %2077 = vmatpush1.msra.mxu0 0.0
  %2078 = vmatprep.subr.mxu0 0.0
  %2079 = vmatpush1.msra.mxu0 0.0
  %2080 = vmatprep.subr.mxu0 0.0
  %2081 = vmatpush1.msra.mxu0 0.0
  %2082 = vmatprep.subr.mxu0 0.0
  %2083 = vmatpush1.msra.mxu0 0.0
  %2084 = vmatprep.subr.mxu0 0.0
  %2085 = vmatpush1.msra.mxu0 0.0
  %2086 = vmatprep.subr.mxu0 0.0
  %2087 = vmatpush1.msra.mxu0 0.0
  %2088 = vmatprep.subr.mxu0 0.0
  %2089 = vmatpush1.msra.mxu0 0.0
  %2090 = vmatprep.subr.mxu0 0.0
  %2091 = vmatpush1.msra.mxu0 0.0
  %2092 = vmatprep.subr.mxu0 0.0
  %2093 = vmatpush1.msra.mxu0 0.0
  %2094 = vmatprep.subr.mxu0 0.0
  %2095 = vmatpush1.msra.mxu0 0.0
  %2096 = vmatprep.subr.mxu0 0.0
  %2097 = vmatpush1.msra.mxu0 0.0
  %2098 = vmatprep.mubr.f32.mxu0 0.0
  %2099 = vmatmul.mubr.f32.gmra.mrb[0].mxu0 %v2032
  %v2100 = vpop.f32.mrb[0].mxu0
  %v2101 = vadd.f32 0.0, %v2100
  %v2102 = vpop.f32.mrb[0].mxu0
  %v2103 = vadd.f32 0.0, %v2102
  %2104 = vdwg.mxu0
  %2105 = vmatprep.subr.mxu0 0.0
  %2106 = vmatpush1.msra.mxu0 %v2028
  %2107 = vmatprep.subr.mxu0 0.0
  %2108 = vmatpush1.msra.mxu0 0.0
  %2109 = vmatprep.subr.mxu0 0.0
  %2110 = vmatpush1.msra.mxu0 0.0
  %2111 = vmatprep.subr.mxu0 0.0
  %2112 = vmatpush1.msra.mxu0 0.0
  %2113 = vmatprep.subr.mxu0 0.0
  %2114 = vmatpush1.msra.mxu0 0.0
  %2115 = vmatprep.subr.mxu0 0.0
  %2116 = vmatpush1.msra.mxu0 0.0
  %2117 = vmatprep.subr.mxu0 0.0
  %2118 = vmatpush1.msra.mxu0 0.0
  %2119 = vmatprep.subr.mxu0 0.0
  %2120 = vmatpush1.msra.mxu0 0.0
  %2121 = vmatprep.subr.mxu0 0.0
  %2122 = vmatpush1.msra.mxu0 0.0
  %2123 = vmatprep.subr.mxu0 0.0
  %2124 = vmatpush1.msra.mxu0 0.0
  %2125 = vmatprep.subr.mxu0 0.0
  %2126 = vmatpush1.msra.mxu0 0.0
  %2127 = vmatprep.subr.mxu0 0.0
  %2128 = vmatpush1.msra.mxu0 0.0
  %2129 = vmatprep.subr.mxu0 0.0
  %2130 = vmatpush1.msra.mxu0 0.0
  %2131 = vmatprep.subr.mxu0 0.0
  %2132 = vmatpush1.msra.mxu0 0.0
  %2133 = vmatprep.subr.mxu0 0.0
  %2134 = vmatpush1.msra.mxu0 0.0
  %2135 = vmatprep.subr.mxu0 0.0
  %2136 = vmatpush1.msra.mxu0 0.0
  %2137 = vmatprep.subr.mxu0 0.0
  %2138 = vmatpush1.msra.mxu0 0.0
  %2139 = vmatprep.subr.mxu0 0.0
  %2140 = vmatpush1.msra.mxu0 0.0
  %2141 = vmatprep.subr.mxu0 0.0
  %2142 = vmatpush1.msra.mxu0 0.0
  %2143 = vmatprep.subr.mxu0 0.0
  %2144 = vmatpush1.msra.mxu0 0.0
  %2145 = vmatprep.subr.mxu0 0.0
  %2146 = vmatpush1.msra.mxu0 0.0
  %2147 = vmatprep.subr.mxu0 0.0
  %2148 = vmatpush1.msra.mxu0 0.0
  %2149 = vmatprep.subr.mxu0 0.0
  %2150 = vmatpush1.msra.mxu0 0.0
  %2151 = vmatprep.subr.mxu0 0.0
  %2152 = vmatpush1.msra.mxu0 0.0
  %2153 = vmatprep.subr.mxu0 0.0
  %2154 = vmatpush1.msra.mxu0 0.0
  %2155 = vmatprep.subr.mxu0 0.0
  %2156 = vmatpush1.msra.mxu0 0.0
  %2157 = vmatprep.subr.mxu0 0.0
  %2158 = vmatpush1.msra.mxu0 0.0
  %2159 = vmatprep.subr.mxu0 0.0
  %2160 = vmatpush1.msra.mxu0 0.0
  %2161 = vmatprep.subr.mxu0 0.0
  %2162 = vmatpush1.msra.mxu0 0.0
  %2163 = vmatprep.subr.mxu0 0.0
  %2164 = vmatpush1.msra.mxu0 0.0
  %2165 = vmatprep.subr.mxu0 0.0
  %2166 = vmatpush1.msra.mxu0 0.0
  %2167 = vmatprep.subr.mxu0 0.0
  %2168 = vmatpush1.msra.mxu0 0.0
  %2169 = vmatprep.mubr.f32.mxu0 0.0
  %2170 = vmatmul.mubr.f32.gmra.mrb[0].mxu0 %v2032
  %v2171 = vpop.f32.mrb[0].mxu0
  %v2172 = vadd.f32 0.0, %v2171
  %v2173 = vpop.f32.mrb[0].mxu0
  %2174 = vdwg.mxu0
  %v2175 = vadd.f32 %v2019, %v2101
  %v2176 = vadd.f32 %v2020, %v2103
  %v2177 = vadd.f32 %v2021, %v2172
  %v2179 = vsel %vm1577, %v43, 0
  %2181 = vmatprep.subr.mxu0 %v1557
  %2182 = vmatpush1.msra.mxu0 %v1556
  %2183 = vmatprep.subr.mxu0 0.0
  %2184 = vmatpush1.msra.mxu0 0.0
  %2185 = vmatprep.subr.mxu0 0.0
  %2186 = vmatpush1.msra.mxu0 0.0
  %2187 = vmatprep.subr.mxu0 0.0
  %2188 = vmatpush1.msra.mxu0 0.0
  %2189 = vmatprep.subr.mxu0 0.0
  %2190 = vmatpush1.msra.mxu0 0.0
  %2191 = vmatprep.subr.mxu0 0.0
  %2192 = vmatpush1.msra.mxu0 0.0
  %2193 = vmatprep.subr.mxu0 0.0
  %2194 = vmatpush1.msra.mxu0 0.0
  %2195 = vmatprep.subr.mxu0 0.0
  %2196 = vmatpush1.msra.mxu0 0.0
  %2197 = vmatprep.subr.mxu0 0.0
  %2198 = vmatpush1.msra.mxu0 0.0
  %2199 = vmatprep.subr.mxu0 0.0
  %2200 = vmatpush1.msra.mxu0 0.0
  %2201 = vmatprep.subr.mxu0 0.0
  %2202 = vmatpush1.msra.mxu0 0.0
  %2203 = vmatprep.subr.mxu0 0.0
  %2204 = vmatpush1.msra.mxu0 0.0
  %2205 = vmatprep.subr.mxu0 0.0
  %2206 = vmatpush1.msra.mxu0 0.0
  %2207 = vmatprep.subr.mxu0 0.0
  %2208 = vmatpush1.msra.mxu0 0.0
  %2209 = vmatprep.subr.mxu0 0.0
  %2210 = vmatpush1.msra.mxu0 0.0
  %2211 = vmatprep.subr.mxu0 0.0
  %2212 = vmatpush1.msra.mxu0 0.0
  %2213 = vmatprep.subr.mxu0 0.0
  %2214 = vmatpush1.msra.mxu0 0.0
  %2215 = vmatprep.subr.mxu0 0.0
  %2216 = vmatpush1.msra.mxu0 0.0
  %2217 = vmatprep.subr.mxu0 0.0
  %2218 = vmatpush1.msra.mxu0 0.0
  %2219 = vmatprep.subr.mxu0 0.0
  %2220 = vmatpush1.msra.mxu0 0.0
  %2221 = vmatprep.subr.mxu0 0.0
  %2222 = vmatpush1.msra.mxu0 0.0
  %2223 = vmatprep.subr.mxu0 0.0
  %2224 = vmatpush1.msra.mxu0 0.0
  %2225 = vmatprep.subr.mxu0 0.0
  %2226 = vmatpush1.msra.mxu0 0.0
  %2227 = vmatprep.subr.mxu0 0.0
  %2228 = vmatpush1.msra.mxu0 0.0
  %2229 = vmatprep.subr.mxu0 0.0
  %2230 = vmatpush1.msra.mxu0 0.0
  %2231 = vmatprep.subr.mxu0 0.0
  %2232 = vmatpush1.msra.mxu0 0.0
  %2233 = vmatprep.subr.mxu0 0.0
  %2234 = vmatpush1.msra.mxu0 0.0
  %2235 = vmatprep.subr.mxu0 0.0
  %2236 = vmatpush1.msra.mxu0 0.0
  %2237 = vmatprep.subr.mxu0 0.0
  %2238 = vmatpush1.msra.mxu0 0.0
  %2239 = vmatprep.subr.mxu0 0.0
  %2240 = vmatpush1.msra.mxu0 0.0
  %2241 = vmatprep.subr.mxu0 0.0
  %2242 = vmatpush1.msra.mxu0 0.0
  %2243 = vmatprep.subr.mxu0 0.0
  %2244 = vmatpush1.msra.mxu0 0.0
  %2245 = vmatprep.mubr.f32.mxu0 0.0
  %2246 = vmatmul.mubr.f32.gmra.mrb[0].mxu0 %v2179
  %v2247 = vpop.f32.mrb[0].mxu0
  %v2248 = vadd.f32 0.0, %v2247
  %v2249 = vpop.f32.mrb[0].mxu0
  %v2250 = vadd.f32 0.0, %v2249
  %2251 = vdwg.mxu0
  %2252 = vmatprep.subr.mxu0 0.0
  %2253 = vmatpush1.msra.mxu0 %v1558
  %2254 = vmatprep.subr.mxu0 0.0
  %2255 = vmatpush1.msra.mxu0 0.0
  %2256 = vmatprep.subr.mxu0 0.0
  %2257 = vmatpush1.msra.mxu0 0.0
  %2258 = vmatprep.subr.mxu0 0.0
  %2259 = vmatpush1.msra.mxu0 0.0
  %2260 = vmatprep.subr.mxu0 0.0
  %2261 = vmatpush1.msra.mxu0 0.0
  %2262 = vmatprep.subr.mxu0 0.0
  %2263 = vmatpush1.msra.mxu0 0.0
  %2264 = vmatprep.subr.mxu0 0.0
  %2265 = vmatpush1.msra.mxu0 0.0
  %2266 = vmatprep.subr.mxu0 0.0
  %2267 = vmatpush1.msra.mxu0 0.0
  %2268 = vmatprep.subr.mxu0 0.0
  %2269 = vmatpush1.msra.mxu0 0.0
  %2270 = vmatprep.subr.mxu0 0.0
  %2271 = vmatpush1.msra.mxu0 0.0
  %2272 = vmatprep.subr.mxu0 0.0
  %2273 = vmatpush1.msra.mxu0 0.0
  %2274 = vmatprep.subr.mxu0 0.0
  %2275 = vmatpush1.msra.mxu0 0.0
  %2276 = vmatprep.subr.mxu0 0.0
  %2277 = vmatpush1.msra.mxu0 0.0
  %2278 = vmatprep.subr.mxu0 0.0
  %2279 = vmatpush1.msra.mxu0 0.0
  %2280 = vmatprep.subr.mxu0 0.0
  %2281 = vmatpush1.msra.mxu0 0.0
  %2282 = vmatprep.subr.mxu0 0.0
  %2283 = vmatpush1.msra.mxu0 0.0
  %2284 = vmatprep.subr.mxu0 0.0
  %2285 = vmatpush1.msra.mxu0 0.0
  %2286 = vmatprep.subr.mxu0 0.0
  %2287 = vmatpush1.msra.mxu0 0.0
  %2288 = vmatprep.subr.mxu0 0.0
  %2289 = vmatpush1.msra.mxu0 0.0
  %2290 = vmatprep.subr.mxu0 0.0
  %2291 = vmatpush1.msra.mxu0 0.0
  %2292 = vmatprep.subr.mxu0 0.0
  %2293 = vmatpush1.msra.mxu0 0.0
  %2294 = vmatprep.subr.mxu0 0.0
  %2295 = vmatpush1.msra.mxu0 0.0
  %2296 = vmatprep.subr.mxu0 0.0
  %2297 = vmatpush1.msra.mxu0 0.0
  %2298 = vmatprep.subr.mxu0 0.0
  %2299 = vmatpush1.msra.mxu0 0.0
  %2300 = vmatprep.subr.mxu0 0.0
  %2301 = vmatpush1.msra.mxu0 0.0
  %2302 = vmatprep.subr.mxu0 0.0
  %2303 = vmatpush1.msra.mxu0 0.0
  %2304 = vmatprep.subr.mxu0 0.0
  %2305 = vmatpush1.msra.mxu0 0.0
  %2306 = vmatprep.subr.mxu0 0.0
  %2307 = vmatpush1.msra.mxu0 0.0
  %2308 = vmatprep.subr.mxu0 0.0
  %2309 = vmatpush1.msra.mxu0 0.0
  %2310 = vmatprep.subr.mxu0 0.0
  %2311 = vmatpush1.msra.mxu0 0.0
  %2312 = vmatprep.subr.mxu0 0.0
  %2313 = vmatpush1.msra.mxu0 0.0
  %2314 = vmatprep.subr.mxu0 0.0
  %2315 = vmatpush1.msra.mxu0 0.0
  %2316 = vmatprep.mubr.f32.mxu0 0.0
  %2317 = vmatmul.mubr.f32.gmra.mrb[0].mxu0 %v2179
  %v2318 = vpop.f32.mrb[0].mxu0
  %v2319 = vadd.f32 0.0, %v2318
  %v2320 = vpop.f32.mrb[0].mxu0
  %2321 = vdwg.mxu0
  %v2322 = vadd.f32 %v2175, %v2248
  %v2323 = vadd.f32 %v2176, %v2250
  %v2324 = vadd.f32 %v2177, %v2319
  %2325 = vrot.lane.b32.xlu0 %v1556, 127
  %v2326 = vpop.permute.xlu0 %2325
  %2327 = vrot.lane.b32.xlu0 %v1557, 127
  %v2328 = vpop.permute.xlu0 %2327
  %2329 = vrot.lane.b32.xlu0 %v1558, 127
  %v2330 = vpop.permute.xlu0 %2329
  %v2331 = vsel %vm879, %v2328, %v2330
  %v2332 = vsel %vm879, %v2326, %v2328
  %v2333 = vsel %vm879, %v2330, %v2326
  %v2335 = vsel %vm1577, %v45, 0
  %2337 = vmatprep.subr.mxu0 %v2331
  %2338 = vmatpush1.msra.mxu0 %v2332
  %2339 = vmatprep.subr.mxu0 0.0
  %2340 = vmatpush1.msra.mxu0 0.0
  %2341 = vmatprep.subr.mxu0 0.0
  %2342 = vmatpush1.msra.mxu0 0.0
  %2343 = vmatprep.subr.mxu0 0.0
  %2344 = vmatpush1.msra.mxu0 0.0
  %2345 = vmatprep.subr.mxu0 0.0
  %2346 = vmatpush1.msra.mxu0 0.0
  %2347 = vmatprep.subr.mxu0 0.0
  %2348 = vmatpush1.msra.mxu0 0.0
  %2349 = vmatprep.subr.mxu0 0.0
  %2350 = vmatpush1.msra.mxu0 0.0
  %2351 = vmatprep.subr.mxu0 0.0
  %2352 = vmatpush1.msra.mxu0 0.0
  %2353 = vmatprep.subr.mxu0 0.0
  %2354 = vmatpush1.msra.mxu0 0.0
  %2355 = vmatprep.subr.mxu0 0.0
  %2356 = vmatpush1.msra.mxu0 0.0
  %2357 = vmatprep.subr.mxu0 0.0
  %2358 = vmatpush1.msra.mxu0 0.0
  %2359 = vmatprep.subr.mxu0 0.0
  %2360 = vmatpush1.msra.mxu0 0.0
  %2361 = vmatprep.subr.mxu0 0.0
  %2362 = vmatpush1.msra.mxu0 0.0
  %2363 = vmatprep.subr.mxu0 0.0
  %2364 = vmatpush1.msra.mxu0 0.0
  %2365 = vmatprep.subr.mxu0 0.0
  %2366 = vmatpush1.msra.mxu0 0.0
  %2367 = vmatprep.subr.mxu0 0.0
  %2368 = vmatpush1.msra.mxu0 0.0
  %2369 = vmatprep.subr.mxu0 0.0
  %2370 = vmatpush1.msra.mxu0 0.0
  %2371 = vmatprep.subr.mxu0 0.0
  %2372 = vmatpush1.msra.mxu0 0.0
  %2373 = vmatprep.subr.mxu0 0.0
  %2374 = vmatpush1.msra.mxu0 0.0
  %2375 = vmatprep.subr.mxu0 0.0
  %2376 = vmatpush1.msra.mxu0 0.0
  %2377 = vmatprep.subr.mxu0 0.0
  %2378 = vmatpush1.msra.mxu0 0.0
  %2379 = vmatprep.subr.mxu0 0.0
  %2380 = vmatpush1.msra.mxu0 0.0
  %2381 = vmatprep.subr.mxu0 0.0
  %2382 = vmatpush1.msra.mxu0 0.0
  %2383 = vmatprep.subr.mxu0 0.0
  %2384 = vmatpush1.msra.mxu0 0.0
  %2385 = vmatprep.subr.mxu0 0.0
  %2386 = vmatpush1.msra.mxu0 0.0
  %2387 = vmatprep.subr.mxu0 0.0
  %2388 = vmatpush1.msra.mxu0 0.0
  %2389 = vmatprep.subr.mxu0 0.0
  %2390 = vmatpush1.msra.mxu0 0.0
  %2391 = vmatprep.subr.mxu0 0.0
  %2392 = vmatpush1.msra.mxu0 0.0
  %2393 = vmatprep.subr.mxu0 0.0
  %2394 = vmatpush1.msra.mxu0 0.0
  %2395 = vmatprep.subr.mxu0 0.0
  %2396 = vmatpush1.msra.mxu0 0.0
  %2397 = vmatprep.subr.mxu0 0.0
  %2398 = vmatpush1.msra.mxu0 0.0
  %2399 = vmatprep.subr.mxu0 0.0
  %2400 = vmatpush1.msra.mxu0 0.0
  %2401 = vmatprep.mubr.f32.mxu0 0.0
  %2402 = vmatmul.mubr.f32.gmra.mrb[0].mxu0 %v2335
  %v2403 = vpop.f32.mrb[0].mxu0
  %v2404 = vadd.f32 0.0, %v2403
  %v2405 = vpop.f32.mrb[0].mxu0
  %v2406 = vadd.f32 0.0, %v2405
  %2407 = vdwg.mxu0
  %2408 = vmatprep.subr.mxu0 0.0
  %2409 = vmatpush1.msra.mxu0 %v2333
  %2410 = vmatprep.subr.mxu0 0.0
  %2411 = vmatpush1.msra.mxu0 0.0
  %2412 = vmatprep.subr.mxu0 0.0
  %2413 = vmatpush1.msra.mxu0 0.0
  %2414 = vmatprep.subr.mxu0 0.0
  %2415 = vmatpush1.msra.mxu0 0.0
  %2416 = vmatprep.subr.mxu0 0.0
  %2417 = vmatpush1.msra.mxu0 0.0
  %2418 = vmatprep.subr.mxu0 0.0
  %2419 = vmatpush1.msra.mxu0 0.0
  %2420 = vmatprep.subr.mxu0 0.0
  %2421 = vmatpush1.msra.mxu0 0.0
  %2422 = vmatprep.subr.mxu0 0.0
  %2423 = vmatpush1.msra.mxu0 0.0
  %2424 = vmatprep.subr.mxu0 0.0
  %2425 = vmatpush1.msra.mxu0 0.0
  %2426 = vmatprep.subr.mxu0 0.0
  %2427 = vmatpush1.msra.mxu0 0.0
  %2428 = vmatprep.subr.mxu0 0.0
  %2429 = vmatpush1.msra.mxu0 0.0
  %2430 = vmatprep.subr.mxu0 0.0
  %2431 = vmatpush1.msra.mxu0 0.0
  %2432 = vmatprep.subr.mxu0 0.0
  %2433 = vmatpush1.msra.mxu0 0.0
  %2434 = vmatprep.subr.mxu0 0.0
  %2435 = vmatpush1.msra.mxu0 0.0
  %2436 = vmatprep.subr.mxu0 0.0
  %2437 = vmatpush1.msra.mxu0 0.0
  %2438 = vmatprep.subr.mxu0 0.0
  %2439 = vmatpush1.msra.mxu0 0.0
  %2440 = vmatprep.subr.mxu0 0.0
  %2441 = vmatpush1.msra.mxu0 0.0
  %2442 = vmatprep.subr.mxu0 0.0
  %2443 = vmatpush1.msra.mxu0 0.0
  %2444 = vmatprep.subr.mxu0 0.0
  %2445 = vmatpush1.msra.mxu0 0.0
  %2446 = vmatprep.subr.mxu0 0.0
  %2447 = vmatpush1.msra.mxu0 0.0
  %2448 = vmatprep.subr.mxu0 0.0
  %2449 = vmatpush1.msra.mxu0 0.0
  %2450 = vmatprep.subr.mxu0 0.0
  %2451 = vmatpush1.msra.mxu0 0.0
  %2452 = vmatprep.subr.mxu0 0.0
  %2453 = vmatpush1.msra.mxu0 0.0
  %2454 = vmatprep.subr.mxu0 0.0
  %2455 = vmatpush1.msra.mxu0 0.0
  %2456 = vmatprep.subr.mxu0 0.0
  %2457 = vmatpush1.msra.mxu0 0.0
  %2458 = vmatprep.subr.mxu0 0.0
  %2459 = vmatpush1.msra.mxu0 0.0
  %2460 = vmatprep.subr.mxu0 0.0
  %2461 = vmatpush1.msra.mxu0 0.0
  %2462 = vmatprep.subr.mxu0 0.0
  %2463 = vmatpush1.msra.mxu0 0.0
  %2464 = vmatprep.subr.mxu0 0.0
  %2465 = vmatpush1.msra.mxu0 0.0
  %2466 = vmatprep.subr.mxu0 0.0
  %2467 = vmatpush1.msra.mxu0 0.0
  %2468 = vmatprep.subr.mxu0 0.0
  %2469 = vmatpush1.msra.mxu0 0.0
  %2470 = vmatprep.subr.mxu0 0.0
  %2471 = vmatpush1.msra.mxu0 0.0
  %2472 = vmatprep.mubr.f32.mxu0 0.0
  %2473 = vmatmul.mubr.f32.gmra.mrb[0].mxu0 %v2335
  %v2474 = vpop.f32.mrb[0].mxu0
  %v2475 = vadd.f32 0.0, %v2474
  %v2476 = vpop.f32.mrb[0].mxu0
  %2477 = vdwg.mxu0
  %v2478 = vadd.f32 %v2322, %v2404
  %v2479 = vadd.f32 %v2323, %v2406
  %v2480 = vadd.f32 %v2324, %v2475
  %2481 = vrot.lane.b32.xlu0 %v1556, 111
  %v2482 = vpop.permute.xlu0 %2481
  %2483 = vrot.lane.b32.xlu0 %v1557, 111
  %v2484 = vpop.permute.xlu0 %2483
  %2485 = vrot.lane.b32.xlu0 %v1558, 111
  %v2486 = vpop.permute.xlu0 %2485
  %v2487 = vsel %vm1045, %v2484, %v2486
  %v2488 = vsel %vm1045, %v2482, %v2484
  %v2489 = vsel %vm1045, %v2486, %v2482
  %v2491 = vsel %vm1577, %v47, 0
  %2493 = vmatprep.subr.mxu0 %v2487
  %2494 = vmatpush1.msra.mxu0 %v2488
  %2495 = vmatprep.subr.mxu0 0.0
  %2496 = vmatpush1.msra.mxu0 0.0
  %2497 = vmatprep.subr.mxu0 0.0
  %2498 = vmatpush1.msra.mxu0 0.0
  %2499 = vmatprep.subr.mxu0 0.0
  %2500 = vmatpush1.msra.mxu0 0.0
  %2501 = vmatprep.subr.mxu0 0.0
  %2502 = vmatpush1.msra.mxu0 0.0
  %2503 = vmatprep.subr.mxu0 0.0
  %2504 = vmatpush1.msra.mxu0 0.0
  %2505 = vmatprep.subr.mxu0 0.0
  %2506 = vmatpush1.msra.mxu0 0.0
  %2507 = vmatprep.subr.mxu0 0.0
  %2508 = vmatpush1.msra.mxu0 0.0
  %2509 = vmatprep.subr.mxu0 0.0
  %2510 = vmatpush1.msra.mxu0 0.0
  %2511 = vmatprep.subr.mxu0 0.0
  %2512 = vmatpush1.msra.mxu0 0.0
  %2513 = vmatprep.subr.mxu0 0.0
  %2514 = vmatpush1.msra.mxu0 0.0
  %2515 = vmatprep.subr.mxu0 0.0
  %2516 = vmatpush1.msra.mxu0 0.0
  %2517 = vmatprep.subr.mxu0 0.0
  %2518 = vmatpush1.msra.mxu0 0.0
  %2519 = vmatprep.subr.mxu0 0.0
  %2520 = vmatpush1.msra.mxu0 0.0
  %2521 = vmatprep.subr.mxu0 0.0
  %2522 = vmatpush1.msra.mxu0 0.0
  %2523 = vmatprep.subr.mxu0 0.0
  %2524 = vmatpush1.msra.mxu0 0.0
  %2525 = vmatprep.subr.mxu0 0.0
  %2526 = vmatpush1.msra.mxu0 0.0
  %2527 = vmatprep.subr.mxu0 0.0
  %2528 = vmatpush1.msra.mxu0 0.0
  %2529 = vmatprep.subr.mxu0 0.0
  %2530 = vmatpush1.msra.mxu0 0.0
  %2531 = vmatprep.subr.mxu0 0.0
  %2532 = vmatpush1.msra.mxu0 0.0
  %2533 = vmatprep.subr.mxu0 0.0
  %2534 = vmatpush1.msra.mxu0 0.0
  %2535 = vmatprep.subr.mxu0 0.0
  %2536 = vmatpush1.msra.mxu0 0.0
  %2537 = vmatprep.subr.mxu0 0.0
  %2538 = vmatpush1.msra.mxu0 0.0
  %2539 = vmatprep.subr.mxu0 0.0
  %2540 = vmatpush1.msra.mxu0 0.0
  %2541 = vmatprep.subr.mxu0 0.0
  %2542 = vmatpush1.msra.mxu0 0.0
  %2543 = vmatprep.subr.mxu0 0.0
  %2544 = vmatpush1.msra.mxu0 0.0
  %2545 = vmatprep.subr.mxu0 0.0
  %2546 = vmatpush1.msra.mxu0 0.0
  %2547 = vmatprep.subr.mxu0 0.0
  %2548 = vmatpush1.msra.mxu0 0.0
  %2549 = vmatprep.subr.mxu0 0.0
  %2550 = vmatpush1.msra.mxu0 0.0
  %2551 = vmatprep.subr.mxu0 0.0
  %2552 = vmatpush1.msra.mxu0 0.0
  %2553 = vmatprep.subr.mxu0 0.0
  %2554 = vmatpush1.msra.mxu0 0.0
  %2555 = vmatprep.subr.mxu0 0.0
  %2556 = vmatpush1.msra.mxu0 0.0
  %2557 = vmatprep.mubr.f32.mxu0 0.0
  %2558 = vmatmul.mubr.f32.gmra.mrb[0].mxu0 %v2491
  %v2559 = vpop.f32.mrb[0].mxu0
  %v2560 = vadd.f32 0.0, %v2559
  %v2561 = vpop.f32.mrb[0].mxu0
  %v2562 = vadd.f32 0.0, %v2561
  %2563 = vdwg.mxu0
  %2564 = vmatprep.subr.mxu0 0.0
  %2565 = vmatpush1.msra.mxu0 %v2489
  %2566 = vmatprep.subr.mxu0 0.0
  %2567 = vmatpush1.msra.mxu0 0.0
  %2568 = vmatprep.subr.mxu0 0.0
  %2569 = vmatpush1.msra.mxu0 0.0
  %2570 = vmatprep.subr.mxu0 0.0
  %2571 = vmatpush1.msra.mxu0 0.0
  %2572 = vmatprep.subr.mxu0 0.0
  %2573 = vmatpush1.msra.mxu0 0.0
  %2574 = vmatprep.subr.mxu0 0.0
  %2575 = vmatpush1.msra.mxu0 0.0
  %2576 = vmatprep.subr.mxu0 0.0
  %2577 = vmatpush1.msra.mxu0 0.0
  %2578 = vmatprep.subr.mxu0 0.0
  %2579 = vmatpush1.msra.mxu0 0.0
  %2580 = vmatprep.subr.mxu0 0.0
  %2581 = vmatpush1.msra.mxu0 0.0
  %2582 = vmatprep.subr.mxu0 0.0
  %2583 = vmatpush1.msra.mxu0 0.0
  %2584 = vmatprep.subr.mxu0 0.0
  %2585 = vmatpush1.msra.mxu0 0.0
  %2586 = vmatprep.subr.mxu0 0.0
  %2587 = vmatpush1.msra.mxu0 0.0
  %2588 = vmatprep.subr.mxu0 0.0
  %2589 = vmatpush1.msra.mxu0 0.0
  %2590 = vmatprep.subr.mxu0 0.0
  %2591 = vmatpush1.msra.mxu0 0.0
  %2592 = vmatprep.subr.mxu0 0.0
  %2593 = vmatpush1.msra.mxu0 0.0
  %2594 = vmatprep.subr.mxu0 0.0
  %2595 = vmatpush1.msra.mxu0 0.0
  %2596 = vmatprep.subr.mxu0 0.0
  %2597 = vmatpush1.msra.mxu0 0.0
  %2598 = vmatprep.subr.mxu0 0.0
  %2599 = vmatpush1.msra.mxu0 0.0
  %2600 = vmatprep.subr.mxu0 0.0
  %2601 = vmatpush1.msra.mxu0 0.0
  %2602 = vmatprep.subr.mxu0 0.0
  %2603 = vmatpush1.msra.mxu0 0.0
  %2604 = vmatprep.subr.mxu0 0.0
  %2605 = vmatpush1.msra.mxu0 0.0
  %2606 = vmatprep.subr.mxu0 0.0
  %2607 = vmatpush1.msra.mxu0 0.0
  %2608 = vmatprep.subr.mxu0 0.0
  %2609 = vmatpush1.msra.mxu0 0.0
  %2610 = vmatprep.subr.mxu0 0.0
  %2611 = vmatpush1.msra.mxu0 0.0
  %2612 = vmatprep.subr.mxu0 0.0
  %2613 = vmatpush1.msra.mxu0 0.0
  %2614 = vmatprep.subr.mxu0 0.0
  %2615 = vmatpush1.msra.mxu0 0.0
  %2616 = vmatprep.subr.mxu0 0.0
  %2617 = vmatpush1.msra.mxu0 0.0
  %2618 = vmatprep.subr.mxu0 0.0
  %2619 = vmatpush1.msra.mxu0 0.0
  %2620 = vmatprep.subr.mxu0 0.0
  %2621 = vmatpush1.msra.mxu0 0.0
  %2622 = vmatprep.subr.mxu0 0.0
  %2623 = vmatpush1.msra.mxu0 0.0
  %2624 = vmatprep.subr.mxu0 0.0
  %2625 = vmatpush1.msra.mxu0 0.0
  %2626 = vmatprep.subr.mxu0 0.0
  %2627 = vmatpush1.msra.mxu0 0.0
  %2628 = vmatprep.mubr.f32.mxu0 0.0
  %2629 = vmatmul.mubr.f32.gmra.mrb[0].mxu0 %v2491
  %v2630 = vpop.f32.mrb[0].mxu0
  %v2631 = vadd.f32 0.0, %v2630
  %v2632 = vpop.f32.mrb[0].mxu0
  %2633 = vdwg.mxu0
  %v2634 = vadd.f32 %v2478, %v2560
  %v2635 = vadd.f32 %v2479, %v2562
  %v2636 = vadd.f32 %v2480, %v2631
  %2637 = vrot.lane.b32.xlu0 %v1556, 110
  %v2638 = vpop.permute.xlu0 %2637
  %2639 = vrot.lane.b32.xlu0 %v1557, 110
  %v2640 = vpop.permute.xlu0 %2639
  %2641 = vrot.lane.b32.xlu0 %v1558, 110
  %v2642 = vpop.permute.xlu0 %2641
  %v2643 = vsel %vm1211, %v2640, %v2642
  %v2644 = vsel %vm1211, %v2638, %v2640
  %v2645 = vsel %vm1211, %v2642, %v2638
  %v2647 = vsel %vm1577, %v49, 0
  %2649 = vmatprep.subr.mxu0 %v2643
  %2650 = vmatpush1.msra.mxu0 %v2644
  %2651 = vmatprep.subr.mxu0 0.0
  %2652 = vmatpush1.msra.mxu0 0.0
  %2653 = vmatprep.subr.mxu0 0.0
  %2654 = vmatpush1.msra.mxu0 0.0
  %2655 = vmatprep.subr.mxu0 0.0
  %2656 = vmatpush1.msra.mxu0 0.0
  %2657 = vmatprep.subr.mxu0 0.0
  %2658 = vmatpush1.msra.mxu0 0.0
  %2659 = vmatprep.subr.mxu0 0.0
  %2660 = vmatpush1.msra.mxu0 0.0
  %2661 = vmatprep.subr.mxu0 0.0
  %2662 = vmatpush1.msra.mxu0 0.0
  %2663 = vmatprep.subr.mxu0 0.0
  %2664 = vmatpush1.msra.mxu0 0.0
  %2665 = vmatprep.subr.mxu0 0.0
  %2666 = vmatpush1.msra.mxu0 0.0
  %2667 = vmatprep.subr.mxu0 0.0
  %2668 = vmatpush1.msra.mxu0 0.0
  %2669 = vmatprep.subr.mxu0 0.0
  %2670 = vmatpush1.msra.mxu0 0.0
  %2671 = vmatprep.subr.mxu0 0.0
  %2672 = vmatpush1.msra.mxu0 0.0
  %2673 = vmatprep.subr.mxu0 0.0
  %2674 = vmatpush1.msra.mxu0 0.0
  %2675 = vmatprep.subr.mxu0 0.0
  %2676 = vmatpush1.msra.mxu0 0.0
  %2677 = vmatprep.subr.mxu0 0.0
  %2678 = vmatpush1.msra.mxu0 0.0
  %2679 = vmatprep.subr.mxu0 0.0
  %2680 = vmatpush1.msra.mxu0 0.0
  %2681 = vmatprep.subr.mxu0 0.0
  %2682 = vmatpush1.msra.mxu0 0.0
  %2683 = vmatprep.subr.mxu0 0.0
  %2684 = vmatpush1.msra.mxu0 0.0
  %2685 = vmatprep.subr.mxu0 0.0
  %2686 = vmatpush1.msra.mxu0 0.0
  %2687 = vmatprep.subr.mxu0 0.0
  %2688 = vmatpush1.msra.mxu0 0.0
  %2689 = vmatprep.subr.mxu0 0.0
  %2690 = vmatpush1.msra.mxu0 0.0
  %2691 = vmatprep.subr.mxu0 0.0
  %2692 = vmatpush1.msra.mxu0 0.0
  %2693 = vmatprep.subr.mxu0 0.0
  %2694 = vmatpush1.msra.mxu0 0.0
  %2695 = vmatprep.subr.mxu0 0.0
  %2696 = vmatpush1.msra.mxu0 0.0
  %2697 = vmatprep.subr.mxu0 0.0
  %2698 = vmatpush1.msra.mxu0 0.0
  %2699 = vmatprep.subr.mxu0 0.0
  %2700 = vmatpush1.msra.mxu0 0.0
  %2701 = vmatprep.subr.mxu0 0.0
  %2702 = vmatpush1.msra.mxu0 0.0
  %2703 = vmatprep.subr.mxu0 0.0
  %2704 = vmatpush1.msra.mxu0 0.0
  %2705 = vmatprep.subr.mxu0 0.0
  %2706 = vmatpush1.msra.mxu0 0.0
  %2707 = vmatprep.subr.mxu0 0.0
  %2708 = vmatpush1.msra.mxu0 0.0
  %2709 = vmatprep.subr.mxu0 0.0
  %2710 = vmatpush1.msra.mxu0 0.0
  %2711 = vmatprep.subr.mxu0 0.0
  %2712 = vmatpush1.msra.mxu0 0.0
  %2713 = vmatprep.mubr.f32.mxu0 0.0
  %2714 = vmatmul.mubr.f32.gmra.mrb[0].mxu0 %v2647
  %v2715 = vpop.f32.mrb[0].mxu0
  %v2716 = vadd.f32 0.0, %v2715
  %v2717 = vpop.f32.mrb[0].mxu0
  %v2718 = vadd.f32 0.0, %v2717
  %2719 = vdwg.mxu0
  %2720 = vmatprep.subr.mxu0 0.0
  %2721 = vmatpush1.msra.mxu0 %v2645
  %2722 = vmatprep.subr.mxu0 0.0
  %2723 = vmatpush1.msra.mxu0 0.0
  %2724 = vmatprep.subr.mxu0 0.0
  %2725 = vmatpush1.msra.mxu0 0.0
  %2726 = vmatprep.subr.mxu0 0.0
  %2727 = vmatpush1.msra.mxu0 0.0
  %2728 = vmatprep.subr.mxu0 0.0
  %2729 = vmatpush1.msra.mxu0 0.0
  %2730 = vmatprep.subr.mxu0 0.0
  %2731 = vmatpush1.msra.mxu0 0.0
  %2732 = vmatprep.subr.mxu0 0.0
  %2733 = vmatpush1.msra.mxu0 0.0
  %2734 = vmatprep.subr.mxu0 0.0
  %2735 = vmatpush1.msra.mxu0 0.0
  %2736 = vmatprep.subr.mxu0 0.0
  %2737 = vmatpush1.msra.mxu0 0.0
  %2738 = vmatprep.subr.mxu0 0.0
  %2739 = vmatpush1.msra.mxu0 0.0
  %2740 = vmatprep.subr.mxu0 0.0
  %2741 = vmatpush1.msra.mxu0 0.0
  %2742 = vmatprep.subr.mxu0 0.0
  %2743 = vmatpush1.msra.mxu0 0.0
  %2744 = vmatprep.subr.mxu0 0.0
  %2745 = vmatpush1.msra.mxu0 0.0
  %2746 = vmatprep.subr.mxu0 0.0
  %2747 = vmatpush1.msra.mxu0 0.0
  %2748 = vmatprep.subr.mxu0 0.0
  %2749 = vmatpush1.msra.mxu0 0.0
  %2750 = vmatprep.subr.mxu0 0.0
  %2751 = vmatpush1.msra.mxu0 0.0
  %2752 = vmatprep.subr.mxu0 0.0
  %2753 = vmatpush1.msra.mxu0 0.0
  %2754 = vmatprep.subr.mxu0 0.0
  %2755 = vmatpush1.msra.mxu0 0.0
  %2756 = vmatprep.subr.mxu0 0.0
  %2757 = vmatpush1.msra.mxu0 0.0
  %2758 = vmatprep.subr.mxu0 0.0
  %2759 = vmatpush1.msra.mxu0 0.0
  %2760 = vmatprep.subr.mxu0 0.0
  %2761 = vmatpush1.msra.mxu0 0.0
  %2762 = vmatprep.subr.mxu0 0.0
  %2763 = vmatpush1.msra.mxu0 0.0
  %2764 = vmatprep.subr.mxu0 0.0
  %2765 = vmatpush1.msra.mxu0 0.0
  %2766 = vmatprep.subr.mxu0 0.0
  %2767 = vmatpush1.msra.mxu0 0.0
  %2768 = vmatprep.subr.mxu0 0.0
  %2769 = vmatpush1.msra.mxu0 0.0
  %2770 = vmatprep.subr.mxu0 0.0
  %2771 = vmatpush1.msra.mxu0 0.0
  %2772 = vmatprep.subr.mxu0 0.0
  %2773 = vmatpush1.msra.mxu0 0.0
  %2774 = vmatprep.subr.mxu0 0.0
  %2775 = vmatpush1.msra.mxu0 0.0
  %2776 = vmatprep.subr.mxu0 0.0
  %2777 = vmatpush1.msra.mxu0 0.0
  %2778 = vmatprep.subr.mxu0 0.0
  %2779 = vmatpush1.msra.mxu0 0.0
  %2780 = vmatprep.subr.mxu0 0.0
  %2781 = vmatpush1.msra.mxu0 0.0
  %2782 = vmatprep.subr.mxu0 0.0
  %2783 = vmatpush1.msra.mxu0 0.0
  %2784 = vmatprep.mubr.f32.mxu0 0.0
  %2785 = vmatmul.mubr.f32.gmra.mrb[0].mxu0 %v2647
  %v2786 = vpop.f32.mrb[0].mxu0
  %v2787 = vadd.f32 0.0, %v2786
  %v2788 = vpop.f32.mrb[0].mxu0
  %2789 = vdwg.mxu0
  %v2790 = vadd.f32 %v2634, %v2716
  %v2791 = vadd.f32 %v2635, %v2718
  %v2792 = vadd.f32 %v2636, %v2787
  %2793 = vrot.lane.b32.xlu0 %v1556, 109
  %v2794 = vpop.permute.xlu0 %2793
  %2795 = vrot.lane.b32.xlu0 %v1557, 109
  %v2796 = vpop.permute.xlu0 %2795
  %2797 = vrot.lane.b32.xlu0 %v1558, 109
  %v2798 = vpop.permute.xlu0 %2797
  %v2799 = vsel %vm1377, %v2796, %v2798
  %v2800 = vsel %vm1377, %v2794, %v2796
  %v2801 = vsel %vm1377, %v2798, %v2794
  %v2803 = vsel %vm1577, %v51, 0
  %2805 = vmatprep.subr.mxu0 %v2799
  %2806 = vmatpush1.msra.mxu0 %v2800
  %2807 = vmatprep.subr.mxu0 0.0
  %2808 = vmatpush1.msra.mxu0 0.0
  %2809 = vmatprep.subr.mxu0 0.0
  %2810 = vmatpush1.msra.mxu0 0.0
  %2811 = vmatprep.subr.mxu0 0.0
  %2812 = vmatpush1.msra.mxu0 0.0
  %2813 = vmatprep.subr.mxu0 0.0
  %2814 = vmatpush1.msra.mxu0 0.0
  %2815 = vmatprep.subr.mxu0 0.0
  %2816 = vmatpush1.msra.mxu0 0.0
  %2817 = vmatprep.subr.mxu0 0.0
  %2818 = vmatpush1.msra.mxu0 0.0
  %2819 = vmatprep.subr.mxu0 0.0
  %2820 = vmatpush1.msra.mxu0 0.0
  %2821 = vmatprep.subr.mxu0 0.0
  %2822 = vmatpush1.msra.mxu0 0.0
  %2823 = vmatprep.subr.mxu0 0.0
  %2824 = vmatpush1.msra.mxu0 0.0
  %2825 = vmatprep.subr.mxu0 0.0
  %2826 = vmatpush1.msra.mxu0 0.0
  %2827 = vmatprep.subr.mxu0 0.0
  %2828 = vmatpush1.msra.mxu0 0.0
  %2829 = vmatprep.subr.mxu0 0.0
  %2830 = vmatpush1.msra.mxu0 0.0
  %2831 = vmatprep.subr.mxu0 0.0
  %2832 = vmatpush1.msra.mxu0 0.0
  %2833 = vmatprep.subr.mxu0 0.0
  %2834 = vmatpush1.msra.mxu0 0.0
  %2835 = vmatprep.subr.mxu0 0.0
  %2836 = vmatpush1.msra.mxu0 0.0
  %2837 = vmatprep.subr.mxu0 0.0
  %2838 = vmatpush1.msra.mxu0 0.0
  %2839 = vmatprep.subr.mxu0 0.0
  %2840 = vmatpush1.msra.mxu0 0.0
  %2841 = vmatprep.subr.mxu0 0.0
  %2842 = vmatpush1.msra.mxu0 0.0
  %2843 = vmatprep.subr.mxu0 0.0
  %2844 = vmatpush1.msra.mxu0 0.0
  %2845 = vmatprep.subr.mxu0 0.0
  %2846 = vmatpush1.msra.mxu0 0.0
  %2847 = vmatprep.subr.mxu0 0.0
  %2848 = vmatpush1.msra.mxu0 0.0
  %2849 = vmatprep.subr.mxu0 0.0
  %2850 = vmatpush1.msra.mxu0 0.0
  %2851 = vmatprep.subr.mxu0 0.0
  %2852 = vmatpush1.msra.mxu0 0.0
  %2853 = vmatprep.subr.mxu0 0.0
  %2854 = vmatpush1.msra.mxu0 0.0
  %2855 = vmatprep.subr.mxu0 0.0
  %2856 = vmatpush1.msra.mxu0 0.0
  %2857 = vmatprep.subr.mxu0 0.0
  %2858 = vmatpush1.msra.mxu0 0.0
  %2859 = vmatprep.subr.mxu0 0.0
  %2860 = vmatpush1.msra.mxu0 0.0
  %2861 = vmatprep.subr.mxu0 0.0
  %2862 = vmatpush1.msra.mxu0 0.0
  %2863 = vmatprep.subr.mxu0 0.0
  %2864 = vmatpush1.msra.mxu0 0.0
  %2865 = vmatprep.subr.mxu0 0.0
  %2866 = vmatpush1.msra.mxu0 0.0
  %2867 = vmatprep.subr.mxu0 0.0
  %2868 = vmatpush1.msra.mxu0 0.0
  %2869 = vmatprep.mubr.f32.mxu0 0.0
  %2870 = vmatmul.mubr.f32.gmra.mrb[0].mxu0 %v2803
  %v2871 = vpop.f32.mrb[0].mxu0
  %v2872 = vadd.f32 0.0, %v2871
  %v2873 = vpop.f32.mrb[0].mxu0
  %v2874 = vadd.f32 0.0, %v2873
  %2875 = vdwg.mxu0
  %2876 = vmatprep.subr.mxu0 0.0
  %2877 = vmatpush1.msra.mxu0 %v2801
  %2878 = vmatprep.subr.mxu0 0.0
  %2879 = vmatpush1.msra.mxu0 0.0
  %2880 = vmatprep.subr.mxu0 0.0
  %2881 = vmatpush1.msra.mxu0 0.0
  %2882 = vmatprep.subr.mxu0 0.0
  %2883 = vmatpush1.msra.mxu0 0.0
  %2884 = vmatprep.subr.mxu0 0.0
  %2885 = vmatpush1.msra.mxu0 0.0
  %2886 = vmatprep.subr.mxu0 0.0
  %2887 = vmatpush1.msra.mxu0 0.0
  %2888 = vmatprep.subr.mxu0 0.0
  %2889 = vmatpush1.msra.mxu0 0.0
  %2890 = vmatprep.subr.mxu0 0.0
  %2891 = vmatpush1.msra.mxu0 0.0
  %2892 = vmatprep.subr.mxu0 0.0
  %2893 = vmatpush1.msra.mxu0 0.0
  %2894 = vmatprep.subr.mxu0 0.0
  %2895 = vmatpush1.msra.mxu0 0.0
  %2896 = vmatprep.subr.mxu0 0.0
  %2897 = vmatpush1.msra.mxu0 0.0
  %2898 = vmatprep.subr.mxu0 0.0
  %2899 = vmatpush1.msra.mxu0 0.0
  %2900 = vmatprep.subr.mxu0 0.0
  %2901 = vmatpush1.msra.mxu0 0.0
  %2902 = vmatprep.subr.mxu0 0.0
  %2903 = vmatpush1.msra.mxu0 0.0
  %2904 = vmatprep.subr.mxu0 0.0
  %2905 = vmatpush1.msra.mxu0 0.0
  %2906 = vmatprep.subr.mxu0 0.0
  %2907 = vmatpush1.msra.mxu0 0.0
  %2908 = vmatprep.subr.mxu0 0.0
  %2909 = vmatpush1.msra.mxu0 0.0
  %2910 = vmatprep.subr.mxu0 0.0
  %2911 = vmatpush1.msra.mxu0 0.0
  %2912 = vmatprep.subr.mxu0 0.0
  %2913 = vmatpush1.msra.mxu0 0.0
  %2914 = vmatprep.subr.mxu0 0.0
  %2915 = vmatpush1.msra.mxu0 0.0
  %2916 = vmatprep.subr.mxu0 0.0
  %2917 = vmatpush1.msra.mxu0 0.0
  %2918 = vmatprep.subr.mxu0 0.0
  %2919 = vmatpush1.msra.mxu0 0.0
  %2920 = vmatprep.subr.mxu0 0.0
  %2921 = vmatpush1.msra.mxu0 0.0
  %2922 = vmatprep.subr.mxu0 0.0
  %2923 = vmatpush1.msra.mxu0 0.0
  %2924 = vmatprep.subr.mxu0 0.0
  %2925 = vmatpush1.msra.mxu0 0.0
  %2926 = vmatprep.subr.mxu0 0.0
  %2927 = vmatpush1.msra.mxu0 0.0
  %2928 = vmatprep.subr.mxu0 0.0
  %2929 = vmatpush1.msra.mxu0 0.0
  %2930 = vmatprep.subr.mxu0 0.0
  %2931 = vmatpush1.msra.mxu0 0.0
  %2932 = vmatprep.subr.mxu0 0.0
  %2933 = vmatpush1.msra.mxu0 0.0
  %2934 = vmatprep.subr.mxu0 0.0
  %2935 = vmatpush1.msra.mxu0 0.0
  %2936 = vmatprep.subr.mxu0 0.0
  %2937 = vmatpush1.msra.mxu0 0.0
  %2938 = vmatprep.subr.mxu0 0.0
  %2939 = vmatpush1.msra.mxu0 0.0
  %2940 = vmatprep.mubr.f32.mxu0 0.0
  %2941 = vmatmul.mubr.f32.gmra.mrb[0].mxu0 %v2803
  %v2942 = vpop.f32.mrb[0].mxu0
  %v2943 = vadd.f32 0.0, %v2942
  %v2944 = vpop.f32.mrb[0].mxu0
  %2945 = vdwg.mxu0
  %v2946 = vadd.f32 %v2790, %v2872
  %v2947 = vadd.f32 %v2791, %v2874
  %v2948 = vadd.f32 %v2792, %v2943
  %v2949 = vmax.f32 %v2946, 0.0
  %v2950 = vmax.f32 %v2947, 0.0
  %v2951 = vmax.f32 %v2948, 0.0
  %v2954 = vcombine.low %v2949, %v2950
  %2956 = vst [vmem:[%s4] sm:$0xff] %v2954
  %2957 = vst [vmem:[%s4 + $0x8] sm:$0xf] %v2951
  %s2958 = scalar_lea.vmem %s0, 12
  %v2959 = vld [vmem:[%s2958] sm:$0xff]
  %v2960 = vld [vmem:[%s2958 + $0x8] sm:$0xf]
  %v2963 = vcombine.high %v2959, %v2959
  %2965 = vrot.lane.b32.xlu0 %v2959, 19
  %v2966 = vpop.permute.xlu0 %2965
  %2967 = vrot.lane.b32.xlu0 %v2963, 19
  %v2968 = vpop.permute.xlu0 %2967
  %2969 = vrot.lane.b32.xlu0 %v2960, 19
  %v2970 = vpop.permute.xlu0 %2969
  %v2971 = vsel %vm66, %v2968, %v2970
  %v2972 = vsel %vm66, %v2966, %v2968
  %v2973 = vsel %vm66, %v2970, %v2966
  %2974 = vrot.lane.b32.xlu0 %v2959, 18
  %v2975 = vpop.permute.xlu0 %2974
  %2976 = vrot.lane.b32.xlu0 %v2963, 18
  %v2977 = vpop.permute.xlu0 %2976
  %2978 = vrot.lane.b32.xlu0 %v2960, 18
  %v2979 = vpop.permute.xlu0 %2978
  %v2980 = vsel %vm76, %v2977, %v2979
  %v2981 = vsel %vm76, %v2975, %v2977
  %v2982 = vsel %vm76, %v2979, %v2975
  %v2984 = vsel %vm84, %v2982, 0
  %v2987 = vsel %vm84, %v2981, 0
  %v2990 = vsel %vm84, %v2980, 0
  %2992 = vmatprep.subr.mxu0 %v2987
  %2993 = vmatpush1.msra.mxu0 %v2984
  %2994 = vmatprep.subr.mxu0 0.0
  %2995 = vmatpush1.msra.mxu0 0.0
  %2996 = vmatprep.subr.mxu0 0.0
  %2997 = vmatpush1.msra.mxu0 0.0
  %2998 = vmatprep.subr.mxu0 0.0
  %2999 = vmatpush1.msra.mxu0 0.0
  %3000 = vmatprep.subr.mxu0 0.0
  %3001 = vmatpush1.msra.mxu0 0.0
  %3002 = vmatprep.subr.mxu0 0.0
  %3003 = vmatpush1.msra.mxu0 0.0
  %3004 = vmatprep.subr.mxu0 0.0
  %3005 = vmatpush1.msra.mxu0 0.0
  %3006 = vmatprep.subr.mxu0 0.0
  %3007 = vmatpush1.msra.mxu0 0.0
  %3008 = vmatprep.subr.mxu0 0.0
  %3009 = vmatpush1.msra.mxu0 0.0
  %3010 = vmatprep.subr.mxu0 0.0
  %3011 = vmatpush1.msra.mxu0 0.0
  %3012 = vmatprep.subr.mxu0 0.0
  %3013 = vmatpush1.msra.mxu0 0.0
  %3014 = vmatprep.subr.mxu0 0.0
  %3015 = vmatpush1.msra.mxu0 0.0
  %3016 = vmatprep.subr.mxu0 0.0
  %3017 = vmatpush1.msra.mxu0 0.0
  %3018 = vmatprep.subr.mxu0 0.0
  %3019 = vmatpush1.msra.mxu0 0.0
  %3020 = vmatprep.subr.mxu0 0.0
  %3021 = vmatpush1.msra.mxu0 0.0
  %3022 = vmatprep.subr.mxu0 0.0
  %3023 = vmatpush1.msra.mxu0 0.0
  %3024 = vmatprep.subr.mxu0 0.0
  %3025 = vmatpush1.msra.mxu0 0.0
  %3026 = vmatprep.subr.mxu0 0.0
  %3027 = vmatpush1.msra.mxu0 0.0
  %3028 = vmatprep.subr.mxu0 0.0
  %3029 = vmatpush1.msra.mxu0 0.0
  %3030 = vmatprep.subr.mxu0 0.0
  %3031 = vmatpush1.msra.mxu0 0.0
  %3032 = vmatprep.subr.mxu0 0.0
  %3033 = vmatpush1.msra.mxu0 0.0
  %3034 = vmatprep.subr.mxu0 0.0
  %3035 = vmatpush1.msra.mxu0 0.0
  %3036 = vmatprep.subr.mxu0 0.0
  %3037 = vmatpush1.msra.mxu0 0.0
  %3038 = vmatprep.subr.mxu0 0.0
  %3039 = vmatpush1.msra.mxu0 0.0
  %3040 = vmatprep.subr.mxu0 0.0
  %3041 = vmatpush1.msra.mxu0 0.0
  %3042 = vmatprep.subr.mxu0 0.0
  %3043 = vmatpush1.msra.mxu0 0.0
  %3044 = vmatprep.subr.mxu0 0.0
  %3045 = vmatpush1.msra.mxu0 0.0
  %3046 = vmatprep.subr.mxu0 0.0
  %3047 = vmatpush1.msra.mxu0 0.0
  %3048 = vmatprep.subr.mxu0 0.0
  %3049 = vmatpush1.msra.mxu0 0.0
  %3050 = vmatprep.subr.mxu0 0.0
  %3051 = vmatpush1.msra.mxu0 0.0
  %3052 = vmatprep.subr.mxu0 0.0
  %3053 = vmatpush1.msra.mxu0 0.0
  %3054 = vmatprep.subr.mxu0 0.0
  %3055 = vmatpush1.msra.mxu0 0.0
  %3056 = vmatprep.mubr.f32.mxu0 0.0
  %3057 = vmatmul.mubr.f32.gmra.mrb[0].mxu0 %v82
  %v3058 = vpop.f32.mrb[0].mxu0
  %v3059 = vadd.f32 0.0, %v3058
  %v3060 = vpop.f32.mrb[0].mxu0
  %v3061 = vadd.f32 0.0, %v3060
  %3062 = vdwg.mxu0
  %3063 = vmatprep.subr.mxu0 0.0
  %3064 = vmatpush1.msra.mxu0 %v2990
  %3065 = vmatprep.subr.mxu0 0.0
  %3066 = vmatpush1.msra.mxu0 0.0
  %3067 = vmatprep.subr.mxu0 0.0
  %3068 = vmatpush1.msra.mxu0 0.0
  %3069 = vmatprep.subr.mxu0 0.0
  %3070 = vmatpush1.msra.mxu0 0.0
  %3071 = vmatprep.subr.mxu0 0.0
  %3072 = vmatpush1.msra.mxu0 0.0
  %3073 = vmatprep.subr.mxu0 0.0
  %3074 = vmatpush1.msra.mxu0 0.0
  %3075 = vmatprep.subr.mxu0 0.0
  %3076 = vmatpush1.msra.mxu0 0.0
  %3077 = vmatprep.subr.mxu0 0.0
  %3078 = vmatpush1.msra.mxu0 0.0
  %3079 = vmatprep.subr.mxu0 0.0
  %3080 = vmatpush1.msra.mxu0 0.0
  %3081 = vmatprep.subr.mxu0 0.0
  %3082 = vmatpush1.msra.mxu0 0.0
  %3083 = vmatprep.subr.mxu0 0.0
  %3084 = vmatpush1.msra.mxu0 0.0
  %3085 = vmatprep.subr.mxu0 0.0
  %3086 = vmatpush1.msra.mxu0 0.0
  %3087 = vmatprep.subr.mxu0 0.0
  %3088 = vmatpush1.msra.mxu0 0.0
  %3089 = vmatprep.subr.mxu0 0.0
  %3090 = vmatpush1.msra.mxu0 0.0
  %3091 = vmatprep.subr.mxu0 0.0
  %3092 = vmatpush1.msra.mxu0 0.0
  %3093 = vmatprep.subr.mxu0 0.0
  %3094 = vmatpush1.msra.mxu0 0.0
  %3095 = vmatprep.subr.mxu0 0.0
  %3096 = vmatpush1.msra.mxu0 0.0
  %3097 = vmatprep.subr.mxu0 0.0
  %3098 = vmatpush1.msra.mxu0 0.0
  %3099 = vmatprep.subr.mxu0 0.0
  %3100 = vmatpush1.msra.mxu0 0.0
  %3101 = vmatprep.subr.mxu0 0.0
  %3102 = vmatpush1.msra.mxu0 0.0
  %3103 = vmatprep.subr.mxu0 0.0
  %3104 = vmatpush1.msra.mxu0 0.0
  %3105 = vmatprep.subr.mxu0 0.0
  %3106 = vmatpush1.msra.mxu0 0.0
  %3107 = vmatprep.subr.mxu0 0.0
  %3108 = vmatpush1.msra.mxu0 0.0
  %3109 = vmatprep.subr.mxu0 0.0
  %3110 = vmatpush1.msra.mxu0 0.0
  %3111 = vmatprep.subr.mxu0 0.0
  %3112 = vmatpush1.msra.mxu0 0.0
  %3113 = vmatprep.subr.mxu0 0.0
  %3114 = vmatpush1.msra.mxu0 0.0
  %3115 = vmatprep.subr.mxu0 0.0
  %3116 = vmatpush1.msra.mxu0 0.0
  %3117 = vmatprep.subr.mxu0 0.0
  %3118 = vmatpush1.msra.mxu0 0.0
  %3119 = vmatprep.subr.mxu0 0.0
  %3120 = vmatpush1.msra.mxu0 0.0
  %3121 = vmatprep.subr.mxu0 0.0
  %3122 = vmatpush1.msra.mxu0 0.0
  %3123 = vmatprep.subr.mxu0 0.0
  %3124 = vmatpush1.msra.mxu0 0.0
  %3125 = vmatprep.subr.mxu0 0.0
  %3126 = vmatpush1.msra.mxu0 0.0
  %3127 = vmatprep.mubr.f32.mxu0 0.0
  %3128 = vmatmul.mubr.f32.gmra.mrb[0].mxu0 %v82
  %v3129 = vpop.f32.mrb[0].mxu0
  %v3130 = vadd.f32 0.0, %v3129
  %v3131 = vpop.f32.mrb[0].mxu0
  %3132 = vdwg.mxu0
  %v3134 = vsel %vm84, %v2973, 0
  %v3137 = vsel %vm84, %v2972, 0
  %v3140 = vsel %vm84, %v2971, 0
  %3142 = vmatprep.subr.mxu0 %v3137
  %3143 = vmatpush1.msra.mxu0 %v3134
  %3144 = vmatprep.subr.mxu0 0.0
  %3145 = vmatpush1.msra.mxu0 0.0
  %3146 = vmatprep.subr.mxu0 0.0
  %3147 = vmatpush1.msra.mxu0 0.0
  %3148 = vmatprep.subr.mxu0 0.0
  %3149 = vmatpush1.msra.mxu0 0.0
  %3150 = vmatprep.subr.mxu0 0.0
  %3151 = vmatpush1.msra.mxu0 0.0
  %3152 = vmatprep.subr.mxu0 0.0
  %3153 = vmatpush1.msra.mxu0 0.0
  %3154 = vmatprep.subr.mxu0 0.0
  %3155 = vmatpush1.msra.mxu0 0.0
  %3156 = vmatprep.subr.mxu0 0.0
  %3157 = vmatpush1.msra.mxu0 0.0
  %3158 = vmatprep.subr.mxu0 0.0
  %3159 = vmatpush1.msra.mxu0 0.0
  %3160 = vmatprep.subr.mxu0 0.0
  %3161 = vmatpush1.msra.mxu0 0.0
  %3162 = vmatprep.subr.mxu0 0.0
  %3163 = vmatpush1.msra.mxu0 0.0
  %3164 = vmatprep.subr.mxu0 0.0
  %3165 = vmatpush1.msra.mxu0 0.0
  %3166 = vmatprep.subr.mxu0 0.0
  %3167 = vmatpush1.msra.mxu0 0.0
  %3168 = vmatprep.subr.mxu0 0.0
  %3169 = vmatpush1.msra.mxu0 0.0
  %3170 = vmatprep.subr.mxu0 0.0
  %3171 = vmatpush1.msra.mxu0 0.0
  %3172 = vmatprep.subr.mxu0 0.0
  %3173 = vmatpush1.msra.mxu0 0.0
  %3174 = vmatprep.subr.mxu0 0.0
  %3175 = vmatpush1.msra.mxu0 0.0
  %3176 = vmatprep.subr.mxu0 0.0
  %3177 = vmatpush1.msra.mxu0 0.0
  %3178 = vmatprep.subr.mxu0 0.0
  %3179 = vmatpush1.msra.mxu0 0.0
  %3180 = vmatprep.subr.mxu0 0.0
  %3181 = vmatpush1.msra.mxu0 0.0
  %3182 = vmatprep.subr.mxu0 0.0
  %3183 = vmatpush1.msra.mxu0 0.0
  %3184 = vmatprep.subr.mxu0 0.0
  %3185 = vmatpush1.msra.mxu0 0.0
  %3186 = vmatprep.subr.mxu0 0.0
  %3187 = vmatpush1.msra.mxu0 0.0
  %3188 = vmatprep.subr.mxu0 0.0
  %3189 = vmatpush1.msra.mxu0 0.0
  %3190 = vmatprep.subr.mxu0 0.0
  %3191 = vmatpush1.msra.mxu0 0.0
  %3192 = vmatprep.subr.mxu0 0.0
  %3193 = vmatpush1.msra.mxu0 0.0
  %3194 = vmatprep.subr.mxu0 0.0
  %3195 = vmatpush1.msra.mxu0 0.0
  %3196 = vmatprep.subr.mxu0 0.0
  %3197 = vmatpush1.msra.mxu0 0.0
  %3198 = vmatprep.subr.mxu0 0.0
  %3199 = vmatpush1.msra.mxu0 0.0
  %3200 = vmatprep.subr.mxu0 0.0
  %3201 = vmatpush1.msra.mxu0 0.0
  %3202 = vmatprep.subr.mxu0 0.0
  %3203 = vmatpush1.msra.mxu0 0.0
  %3204 = vmatprep.subr.mxu0 0.0
  %3205 = vmatpush1.msra.mxu0 0.0
  %3206 = vmatprep.mubr.f32.mxu0 0.0
  %3207 = vmatmul.mubr.f32.gmra.mrb[0].mxu0 %v236
  %v3208 = vpop.f32.mrb[0].mxu0
  %v3209 = vadd.f32 %v3059, %v3208
  %v3210 = vpop.f32.mrb[0].mxu0
  %v3211 = vadd.f32 %v3061, %v3210
  %3212 = vdwg.mxu0
  %3213 = vmatprep.subr.mxu0 0.0
  %3214 = vmatpush1.msra.mxu0 %v3140
  %3215 = vmatprep.subr.mxu0 0.0
  %3216 = vmatpush1.msra.mxu0 0.0
  %3217 = vmatprep.subr.mxu0 0.0
  %3218 = vmatpush1.msra.mxu0 0.0
  %3219 = vmatprep.subr.mxu0 0.0
  %3220 = vmatpush1.msra.mxu0 0.0
  %3221 = vmatprep.subr.mxu0 0.0
  %3222 = vmatpush1.msra.mxu0 0.0
  %3223 = vmatprep.subr.mxu0 0.0
  %3224 = vmatpush1.msra.mxu0 0.0
  %3225 = vmatprep.subr.mxu0 0.0
  %3226 = vmatpush1.msra.mxu0 0.0
  %3227 = vmatprep.subr.mxu0 0.0
  %3228 = vmatpush1.msra.mxu0 0.0
  %3229 = vmatprep.subr.mxu0 0.0
  %3230 = vmatpush1.msra.mxu0 0.0
  %3231 = vmatprep.subr.mxu0 0.0
  %3232 = vmatpush1.msra.mxu0 0.0
  %3233 = vmatprep.subr.mxu0 0.0
  %3234 = vmatpush1.msra.mxu0 0.0
  %3235 = vmatprep.subr.mxu0 0.0
  %3236 = vmatpush1.msra.mxu0 0.0
  %3237 = vmatprep.subr.mxu0 0.0
  %3238 = vmatpush1.msra.mxu0 0.0
  %3239 = vmatprep.subr.mxu0 0.0
  %3240 = vmatpush1.msra.mxu0 0.0
  %3241 = vmatprep.subr.mxu0 0.0
  %3242 = vmatpush1.msra.mxu0 0.0
  %3243 = vmatprep.subr.mxu0 0.0
  %3244 = vmatpush1.msra.mxu0 0.0
  %3245 = vmatprep.subr.mxu0 0.0
  %3246 = vmatpush1.msra.mxu0 0.0
  %3247 = vmatprep.subr.mxu0 0.0
  %3248 = vmatpush1.msra.mxu0 0.0
  %3249 = vmatprep.subr.mxu0 0.0
  %3250 = vmatpush1.msra.mxu0 0.0
  %3251 = vmatprep.subr.mxu0 0.0
  %3252 = vmatpush1.msra.mxu0 0.0
  %3253 = vmatprep.subr.mxu0 0.0
  %3254 = vmatpush1.msra.mxu0 0.0
  %3255 = vmatprep.subr.mxu0 0.0
  %3256 = vmatpush1.msra.mxu0 0.0
  %3257 = vmatprep.subr.mxu0 0.0
  %3258 = vmatpush1.msra.mxu0 0.0
  %3259 = vmatprep.subr.mxu0 0.0
  %3260 = vmatpush1.msra.mxu0 0.0
  %3261 = vmatprep.subr.mxu0 0.0
  %3262 = vmatpush1.msra.mxu0 0.0
  %3263 = vmatprep.subr.mxu0 0.0
  %3264 = vmatpush1.msra.mxu0 0.0
  %3265 = vmatprep.subr.mxu0 0.0
  %3266 = vmatpush1.msra.mxu0 0.0
  %3267 = vmatprep.subr.mxu0 0.0
  %3268 = vmatpush1.msra.mxu0 0.0
  %3269 = vmatprep.subr.mxu0 0.0
  %3270 = vmatpush1.msra.mxu0 0.0
  %3271 = vmatprep.subr.mxu0 0.0
  %3272 = vmatpush1.msra.mxu0 0.0
  %3273 = vmatprep.subr.mxu0 0.0
  %3274 = vmatpush1.msra.mxu0 0.0
  %3275 = vmatprep.subr.mxu0 0.0
  %3276 = vmatpush1.msra.mxu0 0.0
  %3277 = vmatprep.mubr.f32.mxu0 0.0
  %3278 = vmatmul.mubr.f32.gmra.mrb[0].mxu0 %v236
  %v3279 = vpop.f32.mrb[0].mxu0
  %v3280 = vadd.f32 %v3130, %v3279
  %v3281 = vpop.f32.mrb[0].mxu0
  %3282 = vdwg.mxu0
  %3283 = vrot.lane.b32.xlu0 %v2959, 17
  %v3284 = vpop.permute.xlu0 %3283
  %3285 = vrot.lane.b32.xlu0 %v2963, 17
  %v3286 = vpop.permute.xlu0 %3285
  %3287 = vrot.lane.b32.xlu0 %v2960, 17
  %v3288 = vpop.permute.xlu0 %3287
  %v3289 = vsel %vm394, %v3286, %v3288
  %v3290 = vsel %vm394, %v3284, %v3286
  %v3291 = vsel %vm394, %v3288, %v3284
  %v3293 = vsel %vm84, %v3291, 0
  %v3296 = vsel %vm84, %v3290, 0
  %v3299 = vsel %vm84, %v3289, 0
  %3301 = vmatprep.subr.mxu0 %v3296
  %3302 = vmatpush1.msra.mxu0 %v3293
  %3303 = vmatprep.subr.mxu0 0.0
  %3304 = vmatpush1.msra.mxu0 0.0
  %3305 = vmatprep.subr.mxu0 0.0
  %3306 = vmatpush1.msra.mxu0 0.0
  %3307 = vmatprep.subr.mxu0 0.0
  %3308 = vmatpush1.msra.mxu0 0.0
  %3309 = vmatprep.subr.mxu0 0.0
  %3310 = vmatpush1.msra.mxu0 0.0
  %3311 = vmatprep.subr.mxu0 0.0
  %3312 = vmatpush1.msra.mxu0 0.0
  %3313 = vmatprep.subr.mxu0 0.0
  %3314 = vmatpush1.msra.mxu0 0.0
  %3315 = vmatprep.subr.mxu0 0.0
  %3316 = vmatpush1.msra.mxu0 0.0
  %3317 = vmatprep.subr.mxu0 0.0
  %3318 = vmatpush1.msra.mxu0 0.0
  %3319 = vmatprep.subr.mxu0 0.0
  %3320 = vmatpush1.msra.mxu0 0.0
  %3321 = vmatprep.subr.mxu0 0.0
  %3322 = vmatpush1.msra.mxu0 0.0
  %3323 = vmatprep.subr.mxu0 0.0
  %3324 = vmatpush1.msra.mxu0 0.0
  %3325 = vmatprep.subr.mxu0 0.0
  %3326 = vmatpush1.msra.mxu0 0.0
  %3327 = vmatprep.subr.mxu0 0.0
  %3328 = vmatpush1.msra.mxu0 0.0
  %3329 = vmatprep.subr.mxu0 0.0
  %3330 = vmatpush1.msra.mxu0 0.0
  %3331 = vmatprep.subr.mxu0 0.0
  %3332 = vmatpush1.msra.mxu0 0.0
  %3333 = vmatprep.subr.mxu0 0.0
  %3334 = vmatpush1.msra.mxu0 0.0
  %3335 = vmatprep.subr.mxu0 0.0
  %3336 = vmatpush1.msra.mxu0 0.0
  %3337 = vmatprep.subr.mxu0 0.0
  %3338 = vmatpush1.msra.mxu0 0.0
  %3339 = vmatprep.subr.mxu0 0.0
  %3340 = vmatpush1.msra.mxu0 0.0
  %3341 = vmatprep.subr.mxu0 0.0
  %3342 = vmatpush1.msra.mxu0 0.0
  %3343 = vmatprep.subr.mxu0 0.0
  %3344 = vmatpush1.msra.mxu0 0.0
  %3345 = vmatprep.subr.mxu0 0.0
  %3346 = vmatpush1.msra.mxu0 0.0
  %3347 = vmatprep.subr.mxu0 0.0
  %3348 = vmatpush1.msra.mxu0 0.0
  %3349 = vmatprep.subr.mxu0 0.0
  %3350 = vmatpush1.msra.mxu0 0.0
  %3351 = vmatprep.subr.mxu0 0.0
  %3352 = vmatpush1.msra.mxu0 0.0
  %3353 = vmatprep.subr.mxu0 0.0
  %3354 = vmatpush1.msra.mxu0 0.0
  %3355 = vmatprep.subr.mxu0 0.0
  %3356 = vmatpush1.msra.mxu0 0.0
  %3357 = vmatprep.subr.mxu0 0.0
  %3358 = vmatpush1.msra.mxu0 0.0
  %3359 = vmatprep.subr.mxu0 0.0
  %3360 = vmatpush1.msra.mxu0 0.0
  %3361 = vmatprep.subr.mxu0 0.0
  %3362 = vmatpush1.msra.mxu0 0.0
  %3363 = vmatprep.subr.mxu0 0.0
  %3364 = vmatpush1.msra.mxu0 0.0
  %3365 = vmatprep.mubr.f32.mxu0 0.0
  %3366 = vmatmul.mubr.f32.gmra.mrb[0].mxu0 %v399
  %v3367 = vpop.f32.mrb[0].mxu0
  %v3368 = vadd.f32 0.0, %v3367
  %v3369 = vpop.f32.mrb[0].mxu0
  %v3370 = vadd.f32 0.0, %v3369
  %3371 = vdwg.mxu0
  %3372 = vmatprep.subr.mxu0 0.0
  %3373 = vmatpush1.msra.mxu0 %v3299
  %3374 = vmatprep.subr.mxu0 0.0
  %3375 = vmatpush1.msra.mxu0 0.0
  %3376 = vmatprep.subr.mxu0 0.0
  %3377 = vmatpush1.msra.mxu0 0.0
  %3378 = vmatprep.subr.mxu0 0.0
  %3379 = vmatpush1.msra.mxu0 0.0
  %3380 = vmatprep.subr.mxu0 0.0
  %3381 = vmatpush1.msra.mxu0 0.0
  %3382 = vmatprep.subr.mxu0 0.0
  %3383 = vmatpush1.msra.mxu0 0.0
  %3384 = vmatprep.subr.mxu0 0.0
  %3385 = vmatpush1.msra.mxu0 0.0
  %3386 = vmatprep.subr.mxu0 0.0
  %3387 = vmatpush1.msra.mxu0 0.0
  %3388 = vmatprep.subr.mxu0 0.0
  %3389 = vmatpush1.msra.mxu0 0.0
  %3390 = vmatprep.subr.mxu0 0.0
  %3391 = vmatpush1.msra.mxu0 0.0
  %3392 = vmatprep.subr.mxu0 0.0
  %3393 = vmatpush1.msra.mxu0 0.0
  %3394 = vmatprep.subr.mxu0 0.0
  %3395 = vmatpush1.msra.mxu0 0.0
  %3396 = vmatprep.subr.mxu0 0.0
  %3397 = vmatpush1.msra.mxu0 0.0
  %3398 = vmatprep.subr.mxu0 0.0
  %3399 = vmatpush1.msra.mxu0 0.0
  %3400 = vmatprep.subr.mxu0 0.0
  %3401 = vmatpush1.msra.mxu0 0.0
  %3402 = vmatprep.subr.mxu0 0.0
  %3403 = vmatpush1.msra.mxu0 0.0
  %3404 = vmatprep.subr.mxu0 0.0
  %3405 = vmatpush1.msra.mxu0 0.0
  %3406 = vmatprep.subr.mxu0 0.0
  %3407 = vmatpush1.msra.mxu0 0.0
  %3408 = vmatprep.subr.mxu0 0.0
  %3409 = vmatpush1.msra.mxu0 0.0
  %3410 = vmatprep.subr.mxu0 0.0
  %3411 = vmatpush1.msra.mxu0 0.0
  %3412 = vmatprep.subr.mxu0 0.0
  %3413 = vmatpush1.msra.mxu0 0.0
  %3414 = vmatprep.subr.mxu0 0.0
  %3415 = vmatpush1.msra.mxu0 0.0
  %3416 = vmatprep.subr.mxu0 0.0
  %3417 = vmatpush1.msra.mxu0 0.0
  %3418 = vmatprep.subr.mxu0 0.0
  %3419 = vmatpush1.msra.mxu0 0.0
  %3420 = vmatprep.subr.mxu0 0.0
  %3421 = vmatpush1.msra.mxu0 0.0
  %3422 = vmatprep.subr.mxu0 0.0
  %3423 = vmatpush1.msra.mxu0 0.0
  %3424 = vmatprep.subr.mxu0 0.0
  %3425 = vmatpush1.msra.mxu0 0.0
  %3426 = vmatprep.subr.mxu0 0.0
  %3427 = vmatpush1.msra.mxu0 0.0
  %3428 = vmatprep.subr.mxu0 0.0
  %3429 = vmatpush1.msra.mxu0 0.0
  %3430 = vmatprep.subr.mxu0 0.0
  %3431 = vmatpush1.msra.mxu0 0.0
  %3432 = vmatprep.subr.mxu0 0.0
  %3433 = vmatpush1.msra.mxu0 0.0
  %3434 = vmatprep.subr.mxu0 0.0
  %3435 = vmatpush1.msra.mxu0 0.0
  %3436 = vmatprep.mubr.f32.mxu0 0.0
  %3437 = vmatmul.mubr.f32.gmra.mrb[0].mxu0 %v399
  %v3438 = vpop.f32.mrb[0].mxu0
  %v3439 = vadd.f32 0.0, %v3438
  %v3440 = vpop.f32.mrb[0].mxu0
  %3441 = vdwg.mxu0
  %v3442 = vadd.f32 %v3209, %v3368
  %v3443 = vadd.f32 %v3211, %v3370
  %v3444 = vadd.f32 %v3280, %v3439
  %3445 = vrot.lane.b32.xlu0 %v2959, 1
  %v3446 = vpop.permute.xlu0 %3445
  %3447 = vrot.lane.b32.xlu0 %v2963, 1
  %v3448 = vpop.permute.xlu0 %3447
  %3449 = vrot.lane.b32.xlu0 %v2960, 1
  %v3450 = vpop.permute.xlu0 %3449
  %v3451 = vsel %vm560, %v3448, %v3450
  %v3452 = vsel %vm560, %v3446, %v3448
  %v3453 = vsel %vm560, %v3450, %v3446
  %v3455 = vsel %vm84, %v3453, 0
  %v3458 = vsel %vm84, %v3452, 0
  %v3461 = vsel %vm84, %v3451, 0
  %3463 = vmatprep.subr.mxu0 %v3458
  %3464 = vmatpush1.msra.mxu0 %v3455
  %3465 = vmatprep.subr.mxu0 0.0
  %3466 = vmatpush1.msra.mxu0 0.0
  %3467 = vmatprep.subr.mxu0 0.0
  %3468 = vmatpush1.msra.mxu0 0.0
  %3469 = vmatprep.subr.mxu0 0.0
  %3470 = vmatpush1.msra.mxu0 0.0
  %3471 = vmatprep.subr.mxu0 0.0
  %3472 = vmatpush1.msra.mxu0 0.0
  %3473 = vmatprep.subr.mxu0 0.0
  %3474 = vmatpush1.msra.mxu0 0.0
  %3475 = vmatprep.subr.mxu0 0.0
  %3476 = vmatpush1.msra.mxu0 0.0
  %3477 = vmatprep.subr.mxu0 0.0
  %3478 = vmatpush1.msra.mxu0 0.0
  %3479 = vmatprep.subr.mxu0 0.0
  %3480 = vmatpush1.msra.mxu0 0.0
  %3481 = vmatprep.subr.mxu0 0.0
  %3482 = vmatpush1.msra.mxu0 0.0
  %3483 = vmatprep.subr.mxu0 0.0
  %3484 = vmatpush1.msra.mxu0 0.0
  %3485 = vmatprep.subr.mxu0 0.0
  %3486 = vmatpush1.msra.mxu0 0.0
  %3487 = vmatprep.subr.mxu0 0.0
  %3488 = vmatpush1.msra.mxu0 0.0
  %3489 = vmatprep.subr.mxu0 0.0
  %3490 = vmatpush1.msra.mxu0 0.0
  %3491 = vmatprep.subr.mxu0 0.0
  %3492 = vmatpush1.msra.mxu0 0.0
  %3493 = vmatprep.subr.mxu0 0.0
  %3494 = vmatpush1.msra.mxu0 0.0
  %3495 = vmatprep.subr.mxu0 0.0
  %3496 = vmatpush1.msra.mxu0 0.0
  %3497 = vmatprep.subr.mxu0 0.0
  %3498 = vmatpush1.msra.mxu0 0.0
  %3499 = vmatprep.subr.mxu0 0.0
  %3500 = vmatpush1.msra.mxu0 0.0
  %3501 = vmatprep.subr.mxu0 0.0
  %3502 = vmatpush1.msra.mxu0 0.0
  %3503 = vmatprep.subr.mxu0 0.0
  %3504 = vmatpush1.msra.mxu0 0.0
  %3505 = vmatprep.subr.mxu0 0.0
  %3506 = vmatpush1.msra.mxu0 0.0
  %3507 = vmatprep.subr.mxu0 0.0
  %3508 = vmatpush1.msra.mxu0 0.0
  %3509 = vmatprep.subr.mxu0 0.0
  %3510 = vmatpush1.msra.mxu0 0.0
  %3511 = vmatprep.subr.mxu0 0.0
  %3512 = vmatpush1.msra.mxu0 0.0
  %3513 = vmatprep.subr.mxu0 0.0
  %3514 = vmatpush1.msra.mxu0 0.0
  %3515 = vmatprep.subr.mxu0 0.0
  %3516 = vmatpush1.msra.mxu0 0.0
  %3517 = vmatprep.subr.mxu0 0.0
  %3518 = vmatpush1.msra.mxu0 0.0
  %3519 = vmatprep.subr.mxu0 0.0
  %3520 = vmatpush1.msra.mxu0 0.0
  %3521 = vmatprep.subr.mxu0 0.0
  %3522 = vmatpush1.msra.mxu0 0.0
  %3523 = vmatprep.subr.mxu0 0.0
  %3524 = vmatpush1.msra.mxu0 0.0
  %3525 = vmatprep.subr.mxu0 0.0
  %3526 = vmatpush1.msra.mxu0 0.0
  %3527 = vmatprep.mubr.f32.mxu0 0.0
  %3528 = vmatmul.mubr.f32.gmra.mrb[0].mxu0 %v565
  %v3529 = vpop.f32.mrb[0].mxu0
  %v3530 = vadd.f32 0.0, %v3529
  %v3531 = vpop.f32.mrb[0].mxu0
  %v3532 = vadd.f32 0.0, %v3531
  %3533 = vdwg.mxu0
  %3534 = vmatprep.subr.mxu0 0.0
  %3535 = vmatpush1.msra.mxu0 %v3461
  %3536 = vmatprep.subr.mxu0 0.0
  %3537 = vmatpush1.msra.mxu0 0.0
  %3538 = vmatprep.subr.mxu0 0.0
  %3539 = vmatpush1.msra.mxu0 0.0
  %3540 = vmatprep.subr.mxu0 0.0
  %3541 = vmatpush1.msra.mxu0 0.0
  %3542 = vmatprep.subr.mxu0 0.0
  %3543 = vmatpush1.msra.mxu0 0.0
  %3544 = vmatprep.subr.mxu0 0.0
  %3545 = vmatpush1.msra.mxu0 0.0
  %3546 = vmatprep.subr.mxu0 0.0
  %3547 = vmatpush1.msra.mxu0 0.0
  %3548 = vmatprep.subr.mxu0 0.0
  %3549 = vmatpush1.msra.mxu0 0.0
  %3550 = vmatprep.subr.mxu0 0.0
  %3551 = vmatpush1.msra.mxu0 0.0
  %3552 = vmatprep.subr.mxu0 0.0
  %3553 = vmatpush1.msra.mxu0 0.0
  %3554 = vmatprep.subr.mxu0 0.0
  %3555 = vmatpush1.msra.mxu0 0.0
  %3556 = vmatprep.subr.mxu0 0.0
  %3557 = vmatpush1.msra.mxu0 0.0
  %3558 = vmatprep.subr.mxu0 0.0
  %3559 = vmatpush1.msra.mxu0 0.0
  %3560 = vmatprep.subr.mxu0 0.0
  %3561 = vmatpush1.msra.mxu0 0.0
  %3562 = vmatprep.subr.mxu0 0.0
  %3563 = vmatpush1.msra.mxu0 0.0
  %3564 = vmatprep.subr.mxu0 0.0
  %3565 = vmatpush1.msra.mxu0 0.0
  %3566 = vmatprep.subr.mxu0 0.0
  %3567 = vmatpush1.msra.mxu0 0.0
  %3568 = vmatprep.subr.mxu0 0.0
  %3569 = vmatpush1.msra.mxu0 0.0
  %3570 = vmatprep.subr.mxu0 0.0
  %3571 = vmatpush1.msra.mxu0 0.0
  %3572 = vmatprep.subr.mxu0 0.0
  %3573 = vmatpush1.msra.mxu0 0.0
  %3574 = vmatprep.subr.mxu0 0.0
  %3575 = vmatpush1.msra.mxu0 0.0
  %3576 = vmatprep.subr.mxu0 0.0
  %3577 = vmatpush1.msra.mxu0 0.0
  %3578 = vmatprep.subr.mxu0 0.0
  %3579 = vmatpush1.msra.mxu0 0.0
  %3580 = vmatprep.subr.mxu0 0.0
  %3581 = vmatpush1.msra.mxu0 0.0
  %3582 = vmatprep.subr.mxu0 0.0
  %3583 = vmatpush1.msra.mxu0 0.0
  %3584 = vmatprep.subr.mxu0 0.0
  %3585 = vmatpush1.msra.mxu0 0.0
  %3586 = vmatprep.subr.mxu0 0.0
  %3587 = vmatpush1.msra.mxu0 0.0
  %3588 = vmatprep.subr.mxu0 0.0
  %3589 = vmatpush1.msra.mxu0 0.0
  %3590 = vmatprep.subr.mxu0 0.0
  %3591 = vmatpush1.msra.mxu0 0.0
  %3592 = vmatprep.subr.mxu0 0.0
  %3593 = vmatpush1.msra.mxu0 0.0
  %3594 = vmatprep.subr.mxu0 0.0
  %3595 = vmatpush1.msra.mxu0 0.0
  %3596 = vmatprep.subr.mxu0 0.0
  %3597 = vmatpush1.msra.mxu0 0.0
  %3598 = vmatprep.mubr.f32.mxu0 0.0
  %3599 = vmatmul.mubr.f32.gmra.mrb[0].mxu0 %v565
  %v3600 = vpop.f32.mrb[0].mxu0
  %v3601 = vadd.f32 0.0, %v3600
  %v3602 = vpop.f32.mrb[0].mxu0
  %3603 = vdwg.mxu0
  %v3604 = vadd.f32 %v3442, %v3530
  %v3605 = vadd.f32 %v3443, %v3532
  %v3606 = vadd.f32 %v3444, %v3601
  %v3607 = vsel %vm84, %v2959, 0
  %v3609 = vsel %vm84, %v2963, 0
  %v3611 = vsel %vm84, %v2960, 0
  %3613 = vmatprep.subr.mxu0 %v3609
  %3614 = vmatpush1.msra.mxu0 %v3607
  %3615 = vmatprep.subr.mxu0 0.0
  %3616 = vmatpush1.msra.mxu0 0.0
  %3617 = vmatprep.subr.mxu0 0.0
  %3618 = vmatpush1.msra.mxu0 0.0
  %3619 = vmatprep.subr.mxu0 0.0
  %3620 = vmatpush1.msra.mxu0 0.0
  %3621 = vmatprep.subr.mxu0 0.0
  %3622 = vmatpush1.msra.mxu0 0.0
  %3623 = vmatprep.subr.mxu0 0.0
  %3624 = vmatpush1.msra.mxu0 0.0
  %3625 = vmatprep.subr.mxu0 0.0
  %3626 = vmatpush1.msra.mxu0 0.0
  %3627 = vmatprep.subr.mxu0 0.0
  %3628 = vmatpush1.msra.mxu0 0.0
  %3629 = vmatprep.subr.mxu0 0.0
  %3630 = vmatpush1.msra.mxu0 0.0
  %3631 = vmatprep.subr.mxu0 0.0
  %3632 = vmatpush1.msra.mxu0 0.0
  %3633 = vmatprep.subr.mxu0 0.0
  %3634 = vmatpush1.msra.mxu0 0.0
  %3635 = vmatprep.subr.mxu0 0.0
  %3636 = vmatpush1.msra.mxu0 0.0
  %3637 = vmatprep.subr.mxu0 0.0
  %3638 = vmatpush1.msra.mxu0 0.0
  %3639 = vmatprep.subr.mxu0 0.0
  %3640 = vmatpush1.msra.mxu0 0.0
  %3641 = vmatprep.subr.mxu0 0.0
  %3642 = vmatpush1.msra.mxu0 0.0
  %3643 = vmatprep.subr.mxu0 0.0
  %3644 = vmatpush1.msra.mxu0 0.0
  %3645 = vmatprep.subr.mxu0 0.0
  %3646 = vmatpush1.msra.mxu0 0.0
  %3647 = vmatprep.subr.mxu0 0.0
  %3648 = vmatpush1.msra.mxu0 0.0
  %3649 = vmatprep.subr.mxu0 0.0
  %3650 = vmatpush1.msra.mxu0 0.0
  %3651 = vmatprep.subr.mxu0 0.0
  %3652 = vmatpush1.msra.mxu0 0.0
  %3653 = vmatprep.subr.mxu0 0.0
  %3654 = vmatpush1.msra.mxu0 0.0
  %3655 = vmatprep.subr.mxu0 0.0
  %3656 = vmatpush1.msra.mxu0 0.0
  %3657 = vmatprep.subr.mxu0 0.0
  %3658 = vmatpush1.msra.mxu0 0.0
  %3659 = vmatprep.subr.mxu0 0.0
  %3660 = vmatpush1.msra.mxu0 0.0
  %3661 = vmatprep.subr.mxu0 0.0
  %3662 = vmatpush1.msra.mxu0 0.0
  %3663 = vmatprep.subr.mxu0 0.0
  %3664 = vmatpush1.msra.mxu0 0.0
  %3665 = vmatprep.subr.mxu0 0.0
  %3666 = vmatpush1.msra.mxu0 0.0
  %3667 = vmatprep.subr.mxu0 0.0
  %3668 = vmatpush1.msra.mxu0 0.0
  %3669 = vmatprep.subr.mxu0 0.0
  %3670 = vmatpush1.msra.mxu0 0.0
  %3671 = vmatprep.subr.mxu0 0.0
  %3672 = vmatpush1.msra.mxu0 0.0
  %3673 = vmatprep.subr.mxu0 0.0
  %3674 = vmatpush1.msra.mxu0 0.0
  %3675 = vmatprep.subr.mxu0 0.0
  %3676 = vmatpush1.msra.mxu0 0.0
  %3677 = vmatprep.mubr.f32.mxu0 0.0
  %3678 = vmatmul.mubr.f32.gmra.mrb[0].mxu0 %v721
  %v3679 = vpop.f32.mrb[0].mxu0
  %v3680 = vadd.f32 0.0, %v3679
  %v3681 = vpop.f32.mrb[0].mxu0
  %v3682 = vadd.f32 0.0, %v3681
  %3683 = vdwg.mxu0
  %3684 = vmatprep.subr.mxu0 0.0
  %3685 = vmatpush1.msra.mxu0 %v3611
  %3686 = vmatprep.subr.mxu0 0.0
  %3687 = vmatpush1.msra.mxu0 0.0
  %3688 = vmatprep.subr.mxu0 0.0
  %3689 = vmatpush1.msra.mxu0 0.0
  %3690 = vmatprep.subr.mxu0 0.0
  %3691 = vmatpush1.msra.mxu0 0.0
  %3692 = vmatprep.subr.mxu0 0.0
  %3693 = vmatpush1.msra.mxu0 0.0
  %3694 = vmatprep.subr.mxu0 0.0
  %3695 = vmatpush1.msra.mxu0 0.0
  %3696 = vmatprep.subr.mxu0 0.0
  %3697 = vmatpush1.msra.mxu0 0.0
  %3698 = vmatprep.subr.mxu0 0.0
  %3699 = vmatpush1.msra.mxu0 0.0
  %3700 = vmatprep.subr.mxu0 0.0
  %3701 = vmatpush1.msra.mxu0 0.0
  %3702 = vmatprep.subr.mxu0 0.0
  %3703 = vmatpush1.msra.mxu0 0.0
  %3704 = vmatprep.subr.mxu0 0.0
  %3705 = vmatpush1.msra.mxu0 0.0
  %3706 = vmatprep.subr.mxu0 0.0
  %3707 = vmatpush1.msra.mxu0 0.0
  %3708 = vmatprep.subr.mxu0 0.0
  %3709 = vmatpush1.msra.mxu0 0.0
  %3710 = vmatprep.subr.mxu0 0.0
  %3711 = vmatpush1.msra.mxu0 0.0
  %3712 = vmatprep.subr.mxu0 0.0
  %3713 = vmatpush1.msra.mxu0 0.0
  %3714 = vmatprep.subr.mxu0 0.0
  %3715 = vmatpush1.msra.mxu0 0.0
  %3716 = vmatprep.subr.mxu0 0.0
  %3717 = vmatpush1.msra.mxu0 0.0
  %3718 = vmatprep.subr.mxu0 0.0
  %3719 = vmatpush1.msra.mxu0 0.0
  %3720 = vmatprep.subr.mxu0 0.0
  %3721 = vmatpush1.msra.mxu0 0.0
  %3722 = vmatprep.subr.mxu0 0.0
  %3723 = vmatpush1.msra.mxu0 0.0
  %3724 = vmatprep.subr.mxu0 0.0
  %3725 = vmatpush1.msra.mxu0 0.0
  %3726 = vmatprep.subr.mxu0 0.0
  %3727 = vmatpush1.msra.mxu0 0.0
  %3728 = vmatprep.subr.mxu0 0.0
  %3729 = vmatpush1.msra.mxu0 0.0
  %3730 = vmatprep.subr.mxu0 0.0
  %3731 = vmatpush1.msra.mxu0 0.0
  %3732 = vmatprep.subr.mxu0 0.0
  %3733 = vmatpush1.msra.mxu0 0.0
  %3734 = vmatprep.subr.mxu0 0.0
  %3735 = vmatpush1.msra.mxu0 0.0
  %3736 = vmatprep.subr.mxu0 0.0
  %3737 = vmatpush1.msra.mxu0 0.0
  %3738 = vmatprep.subr.mxu0 0.0
  %3739 = vmatpush1.msra.mxu0 0.0
  %3740 = vmatprep.subr.mxu0 0.0
  %3741 = vmatpush1.msra.mxu0 0.0
  %3742 = vmatprep.subr.mxu0 0.0
  %3743 = vmatpush1.msra.mxu0 0.0
  %3744 = vmatprep.subr.mxu0 0.0
  %3745 = vmatpush1.msra.mxu0 0.0
  %3746 = vmatprep.subr.mxu0 0.0
  %3747 = vmatpush1.msra.mxu0 0.0
  %3748 = vmatprep.mubr.f32.mxu0 0.0
  %3749 = vmatmul.mubr.f32.gmra.mrb[0].mxu0 %v721
  %v3750 = vpop.f32.mrb[0].mxu0
  %v3751 = vadd.f32 0.0, %v3750
  %v3752 = vpop.f32.mrb[0].mxu0
  %3753 = vdwg.mxu0
  %v3754 = vadd.f32 %v3604, %v3680
  %v3755 = vadd.f32 %v3605, %v3682
  %v3756 = vadd.f32 %v3606, %v3751
  %3757 = vrot.lane.b32.xlu0 %v2959, 127
  %v3758 = vpop.permute.xlu0 %3757
  %3759 = vrot.lane.b32.xlu0 %v2963, 127
  %v3760 = vpop.permute.xlu0 %3759
  %3761 = vrot.lane.b32.xlu0 %v2960, 127
  %v3762 = vpop.permute.xlu0 %3761
  %v3763 = vsel %vm879, %v3760, %v3762
  %v3764 = vsel %vm879, %v3758, %v3760
  %v3765 = vsel %vm879, %v3762, %v3758
  %v3767 = vsel %vm84, %v3764, 0
  %v3770 = vsel %vm84, %v3763, 0
  %v3773 = vsel %vm84, %v3765, 0
  %3775 = vmatprep.subr.mxu0 %v3770
  %3776 = vmatpush1.msra.mxu0 %v3767
  %3777 = vmatprep.subr.mxu0 0.0
  %3778 = vmatpush1.msra.mxu0 0.0
  %3779 = vmatprep.subr.mxu0 0.0
  %3780 = vmatpush1.msra.mxu0 0.0
  %3781 = vmatprep.subr.mxu0 0.0
  %3782 = vmatpush1.msra.mxu0 0.0
  %3783 = vmatprep.subr.mxu0 0.0
  %3784 = vmatpush1.msra.mxu0 0.0
  %3785 = vmatprep.subr.mxu0 0.0
  %3786 = vmatpush1.msra.mxu0 0.0
  %3787 = vmatprep.subr.mxu0 0.0
  %3788 = vmatpush1.msra.mxu0 0.0
  %3789 = vmatprep.subr.mxu0 0.0
  %3790 = vmatpush1.msra.mxu0 0.0
  %3791 = vmatprep.subr.mxu0 0.0
  %3792 = vmatpush1.msra.mxu0 0.0
  %3793 = vmatprep.subr.mxu0 0.0
  %3794 = vmatpush1.msra.mxu0 0.0
  %3795 = vmatprep.subr.mxu0 0.0
  %3796 = vmatpush1.msra.mxu0 0.0
  %3797 = vmatprep.subr.mxu0 0.0
  %3798 = vmatpush1.msra.mxu0 0.0
  %3799 = vmatprep.subr.mxu0 0.0
  %3800 = vmatpush1.msra.mxu0 0.0
  %3801 = vmatprep.subr.mxu0 0.0
  %3802 = vmatpush1.msra.mxu0 0.0
  %3803 = vmatprep.subr.mxu0 0.0
  %3804 = vmatpush1.msra.mxu0 0.0
  %3805 = vmatprep.subr.mxu0 0.0
  %3806 = vmatpush1.msra.mxu0 0.0
  %3807 = vmatprep.subr.mxu0 0.0
  %3808 = vmatpush1.msra.mxu0 0.0
  %3809 = vmatprep.subr.mxu0 0.0
  %3810 = vmatpush1.msra.mxu0 0.0
  %3811 = vmatprep.subr.mxu0 0.0
  %3812 = vmatpush1.msra.mxu0 0.0
  %3813 = vmatprep.subr.mxu0 0.0
  %3814 = vmatpush1.msra.mxu0 0.0
  %3815 = vmatprep.subr.mxu0 0.0
  %3816 = vmatpush1.msra.mxu0 0.0
  %3817 = vmatprep.subr.mxu0 0.0
  %3818 = vmatpush1.msra.mxu0 0.0
  %3819 = vmatprep.subr.mxu0 0.0
  %3820 = vmatpush1.msra.mxu0 0.0
  %3821 = vmatprep.subr.mxu0 0.0
  %3822 = vmatpush1.msra.mxu0 0.0
  %3823 = vmatprep.subr.mxu0 0.0
  %3824 = vmatpush1.msra.mxu0 0.0
  %3825 = vmatprep.subr.mxu0 0.0
  %3826 = vmatpush1.msra.mxu0 0.0
  %3827 = vmatprep.subr.mxu0 0.0
  %3828 = vmatpush1.msra.mxu0 0.0
  %3829 = vmatprep.subr.mxu0 0.0
  %3830 = vmatpush1.msra.mxu0 0.0
  %3831 = vmatprep.subr.mxu0 0.0
  %3832 = vmatpush1.msra.mxu0 0.0
  %3833 = vmatprep.subr.mxu0 0.0
  %3834 = vmatpush1.msra.mxu0 0.0
  %3835 = vmatprep.subr.mxu0 0.0
  %3836 = vmatpush1.msra.mxu0 0.0
  %3837 = vmatprep.subr.mxu0 0.0
  %3838 = vmatpush1.msra.mxu0 0.0
  %3839 = vmatprep.mubr.f32.mxu0 0.0
  %3840 = vmatmul.mubr.f32.gmra.mrb[0].mxu0 %v884
  %v3841 = vpop.f32.mrb[0].mxu0
  %v3842 = vadd.f32 0.0, %v3841
  %v3843 = vpop.f32.mrb[0].mxu0
  %v3844 = vadd.f32 0.0, %v3843
  %3845 = vdwg.mxu0
  %3846 = vmatprep.subr.mxu0 0.0
  %3847 = vmatpush1.msra.mxu0 %v3773
  %3848 = vmatprep.subr.mxu0 0.0
  %3849 = vmatpush1.msra.mxu0 0.0
  %3850 = vmatprep.subr.mxu0 0.0
  %3851 = vmatpush1.msra.mxu0 0.0
  %3852 = vmatprep.subr.mxu0 0.0
  %3853 = vmatpush1.msra.mxu0 0.0
  %3854 = vmatprep.subr.mxu0 0.0
  %3855 = vmatpush1.msra.mxu0 0.0
  %3856 = vmatprep.subr.mxu0 0.0
  %3857 = vmatpush1.msra.mxu0 0.0
  %3858 = vmatprep.subr.mxu0 0.0
  %3859 = vmatpush1.msra.mxu0 0.0
  %3860 = vmatprep.subr.mxu0 0.0
  %3861 = vmatpush1.msra.mxu0 0.0
  %3862 = vmatprep.subr.mxu0 0.0
  %3863 = vmatpush1.msra.mxu0 0.0
  %3864 = vmatprep.subr.mxu0 0.0
  %3865 = vmatpush1.msra.mxu0 0.0
  %3866 = vmatprep.subr.mxu0 0.0
  %3867 = vmatpush1.msra.mxu0 0.0
  %3868 = vmatprep.subr.mxu0 0.0
  %3869 = vmatpush1.msra.mxu0 0.0
  %3870 = vmatprep.subr.mxu0 0.0
  %3871 = vmatpush1.msra.mxu0 0.0
  %3872 = vmatprep.subr.mxu0 0.0
  %3873 = vmatpush1.msra.mxu0 0.0
  %3874 = vmatprep.subr.mxu0 0.0
  %3875 = vmatpush1.msra.mxu0 0.0
  %3876 = vmatprep.subr.mxu0 0.0
  %3877 = vmatpush1.msra.mxu0 0.0
  %3878 = vmatprep.subr.mxu0 0.0
  %3879 = vmatpush1.msra.mxu0 0.0
  %3880 = vmatprep.subr.mxu0 0.0
  %3881 = vmatpush1.msra.mxu0 0.0
  %3882 = vmatprep.subr.mxu0 0.0
  %3883 = vmatpush1.msra.mxu0 0.0
  %3884 = vmatprep.subr.mxu0 0.0
  %3885 = vmatpush1.msra.mxu0 0.0
  %3886 = vmatprep.subr.mxu0 0.0
  %3887 = vmatpush1.msra.mxu0 0.0
  %3888 = vmatprep.subr.mxu0 0.0
  %3889 = vmatpush1.msra.mxu0 0.0
  %3890 = vmatprep.subr.mxu0 0.0
  %3891 = vmatpush1.msra.mxu0 0.0
  %3892 = vmatprep.subr.mxu0 0.0
  %3893 = vmatpush1.msra.mxu0 0.0
  %3894 = vmatprep.subr.mxu0 0.0
  %3895 = vmatpush1.msra.mxu0 0.0
  %3896 = vmatprep.subr.mxu0 0.0
  %3897 = vmatpush1.msra.mxu0 0.0
  %3898 = vmatprep.subr.mxu0 0.0
  %3899 = vmatpush1.msra.mxu0 0.0
  %3900 = vmatprep.subr.mxu0 0.0
  %3901 = vmatpush1.msra.mxu0 0.0
  %3902 = vmatprep.subr.mxu0 0.0
  %3903 = vmatpush1.msra.mxu0 0.0
  %3904 = vmatprep.subr.mxu0 0.0
  %3905 = vmatpush1.msra.mxu0 0.0
  %3906 = vmatprep.subr.mxu0 0.0
  %3907 = vmatpush1.msra.mxu0 0.0
  %3908 = vmatprep.subr.mxu0 0.0
  %3909 = vmatpush1.msra.mxu0 0.0
  %3910 = vmatprep.mubr.f32.mxu0 0.0
  %3911 = vmatmul.mubr.f32.gmra.mrb[0].mxu0 %v884
  %v3912 = vpop.f32.mrb[0].mxu0
  %v3913 = vadd.f32 0.0, %v3912
  %v3914 = vpop.f32.mrb[0].mxu0
  %3915 = vdwg.mxu0
  %v3916 = vadd.f32 %v3754, %v3842
  %v3917 = vadd.f32 %v3755, %v3844
  %v3918 = vadd.f32 %v3756, %v3913
  %3919 = vrot.lane.b32.xlu0 %v2959, 111
  %v3920 = vpop.permute.xlu0 %3919
  %3921 = vrot.lane.b32.xlu0 %v2963, 111
  %v3922 = vpop.permute.xlu0 %3921
  %3923 = vrot.lane.b32.xlu0 %v2960, 111
  %v3924 = vpop.permute.xlu0 %3923
  %v3925 = vsel %vm1045, %v3922, %v3924
  %v3926 = vsel %vm1045, %v3920, %v3922
  %v3927 = vsel %vm1045, %v3924, %v3920
  %v3929 = vsel %vm84, %v3926, 0
  %v3932 = vsel %vm84, %v3925, 0
  %v3935 = vsel %vm84, %v3927, 0
  %3937 = vmatprep.subr.mxu0 %v3932
  %3938 = vmatpush1.msra.mxu0 %v3929
  %3939 = vmatprep.subr.mxu0 0.0
  %3940 = vmatpush1.msra.mxu0 0.0
  %3941 = vmatprep.subr.mxu0 0.0
  %3942 = vmatpush1.msra.mxu0 0.0
  %3943 = vmatprep.subr.mxu0 0.0
  %3944 = vmatpush1.msra.mxu0 0.0
  %3945 = vmatprep.subr.mxu0 0.0
  %3946 = vmatpush1.msra.mxu0 0.0
  %3947 = vmatprep.subr.mxu0 0.0
  %3948 = vmatpush1.msra.mxu0 0.0
  %3949 = vmatprep.subr.mxu0 0.0
  %3950 = vmatpush1.msra.mxu0 0.0
  %3951 = vmatprep.subr.mxu0 0.0
  %3952 = vmatpush1.msra.mxu0 0.0
  %3953 = vmatprep.subr.mxu0 0.0
  %3954 = vmatpush1.msra.mxu0 0.0
  %3955 = vmatprep.subr.mxu0 0.0
  %3956 = vmatpush1.msra.mxu0 0.0
  %3957 = vmatprep.subr.mxu0 0.0
  %3958 = vmatpush1.msra.mxu0 0.0
  %3959 = vmatprep.subr.mxu0 0.0
  %3960 = vmatpush1.msra.mxu0 0.0
  %3961 = vmatprep.subr.mxu0 0.0
  %3962 = vmatpush1.msra.mxu0 0.0
  %3963 = vmatprep.subr.mxu0 0.0
  %3964 = vmatpush1.msra.mxu0 0.0
  %3965 = vmatprep.subr.mxu0 0.0
  %3966 = vmatpush1.msra.mxu0 0.0
  %3967 = vmatprep.subr.mxu0 0.0
  %3968 = vmatpush1.msra.mxu0 0.0
  %3969 = vmatprep.subr.mxu0 0.0
  %3970 = vmatpush1.msra.mxu0 0.0
  %3971 = vmatprep.subr.mxu0 0.0
  %3972 = vmatpush1.msra.mxu0 0.0
  %3973 = vmatprep.subr.mxu0 0.0
  %3974 = vmatpush1.msra.mxu0 0.0
  %3975 = vmatprep.subr.mxu0 0.0
  %3976 = vmatpush1.msra.mxu0 0.0
  %3977 = vmatprep.subr.mxu0 0.0
  %3978 = vmatpush1.msra.mxu0 0.0
  %3979 = vmatprep.subr.mxu0 0.0
  %3980 = vmatpush1.msra.mxu0 0.0
  %3981 = vmatprep.subr.mxu0 0.0
  %3982 = vmatpush1.msra.mxu0 0.0
  %3983 = vmatprep.subr.mxu0 0.0
  %3984 = vmatpush1.msra.mxu0 0.0
  %3985 = vmatprep.subr.mxu0 0.0
  %3986 = vmatpush1.msra.mxu0 0.0
  %3987 = vmatprep.subr.mxu0 0.0
  %3988 = vmatpush1.msra.mxu0 0.0
  %3989 = vmatprep.subr.mxu0 0.0
  %3990 = vmatpush1.msra.mxu0 0.0
  %3991 = vmatprep.subr.mxu0 0.0
  %3992 = vmatpush1.msra.mxu0 0.0
  %3993 = vmatprep.subr.mxu0 0.0
  %3994 = vmatpush1.msra.mxu0 0.0
  %3995 = vmatprep.subr.mxu0 0.0
  %3996 = vmatpush1.msra.mxu0 0.0
  %3997 = vmatprep.subr.mxu0 0.0
  %3998 = vmatpush1.msra.mxu0 0.0
  %3999 = vmatprep.subr.mxu0 0.0
  %4000 = vmatpush1.msra.mxu0 0.0
  %4001 = vmatprep.mubr.f32.mxu0 0.0
  %4002 = vmatmul.mubr.f32.gmra.mrb[0].mxu0 %v1050
  %v4003 = vpop.f32.mrb[0].mxu0
  %v4004 = vadd.f32 0.0, %v4003
  %v4005 = vpop.f32.mrb[0].mxu0
  %v4006 = vadd.f32 0.0, %v4005
  %4007 = vdwg.mxu0
  %4008 = vmatprep.subr.mxu0 0.0
  %4009 = vmatpush1.msra.mxu0 %v3935
  %4010 = vmatprep.subr.mxu0 0.0
  %4011 = vmatpush1.msra.mxu0 0.0
  %4012 = vmatprep.subr.mxu0 0.0
  %4013 = vmatpush1.msra.mxu0 0.0
  %4014 = vmatprep.subr.mxu0 0.0
  %4015 = vmatpush1.msra.mxu0 0.0
  %4016 = vmatprep.subr.mxu0 0.0
  %4017 = vmatpush1.msra.mxu0 0.0
  %4018 = vmatprep.subr.mxu0 0.0
  %4019 = vmatpush1.msra.mxu0 0.0
  %4020 = vmatprep.subr.mxu0 0.0
  %4021 = vmatpush1.msra.mxu0 0.0
  %4022 = vmatprep.subr.mxu0 0.0
  %4023 = vmatpush1.msra.mxu0 0.0
  %4024 = vmatprep.subr.mxu0 0.0
  %4025 = vmatpush1.msra.mxu0 0.0
  %4026 = vmatprep.subr.mxu0 0.0
  %4027 = vmatpush1.msra.mxu0 0.0
  %4028 = vmatprep.subr.mxu0 0.0
  %4029 = vmatpush1.msra.mxu0 0.0
  %4030 = vmatprep.subr.mxu0 0.0
  %4031 = vmatpush1.msra.mxu0 0.0
  %4032 = vmatprep.subr.mxu0 0.0
  %4033 = vmatpush1.msra.mxu0 0.0
  %4034 = vmatprep.subr.mxu0 0.0
  %4035 = vmatpush1.msra.mxu0 0.0
  %4036 = vmatprep.subr.mxu0 0.0
  %4037 = vmatpush1.msra.mxu0 0.0
  %4038 = vmatprep.subr.mxu0 0.0
  %4039 = vmatpush1.msra.mxu0 0.0
  %4040 = vmatprep.subr.mxu0 0.0
  %4041 = vmatpush1.msra.mxu0 0.0
  %4042 = vmatprep.subr.mxu0 0.0
  %4043 = vmatpush1.msra.mxu0 0.0
  %4044 = vmatprep.subr.mxu0 0.0
  %4045 = vmatpush1.msra.mxu0 0.0
  %4046 = vmatprep.subr.mxu0 0.0
  %4047 = vmatpush1.msra.mxu0 0.0
  %4048 = vmatprep.subr.mxu0 0.0
  %4049 = vmatpush1.msra.mxu0 0.0
  %4050 = vmatprep.subr.mxu0 0.0
  %4051 = vmatpush1.msra.mxu0 0.0
  %4052 = vmatprep.subr.mxu0 0.0
  %4053 = vmatpush1.msra.mxu0 0.0
  %4054 = vmatprep.subr.mxu0 0.0
  %4055 = vmatpush1.msra.mxu0 0.0
  %4056 = vmatprep.subr.mxu0 0.0
  %4057 = vmatpush1.msra.mxu0 0.0
  %4058 = vmatprep.subr.mxu0 0.0
  %4059 = vmatpush1.msra.mxu0 0.0
  %4060 = vmatprep.subr.mxu0 0.0
  %4061 = vmatpush1.msra.mxu0 0.0
  %4062 = vmatprep.subr.mxu0 0.0
  %4063 = vmatpush1.msra.mxu0 0.0
  %4064 = vmatprep.subr.mxu0 0.0
  %4065 = vmatpush1.msra.mxu0 0.0
  %4066 = vmatprep.subr.mxu0 0.0
  %4067 = vmatpush1.msra.mxu0 0.0
  %4068 = vmatprep.subr.mxu0 0.0
  %4069 = vmatpush1.msra.mxu0 0.0
  %4070 = vmatprep.subr.mxu0 0.0
  %4071 = vmatpush1.msra.mxu0 0.0
  %4072 = vmatprep.mubr.f32.mxu0 0.0
  %4073 = vmatmul.mubr.f32.gmra.mrb[0].mxu0 %v1050
  %v4074 = vpop.f32.mrb[0].mxu0
  %v4075 = vadd.f32 0.0, %v4074
  %v4076 = vpop.f32.mrb[0].mxu0
  %4077 = vdwg.mxu0
  %v4078 = vadd.f32 %v3916, %v4004
  %v4079 = vadd.f32 %v3917, %v4006
  %v4080 = vadd.f32 %v3918, %v4075
  %4081 = vrot.lane.b32.xlu0 %v2959, 110
  %v4082 = vpop.permute.xlu0 %4081
  %4083 = vrot.lane.b32.xlu0 %v2963, 110
  %v4084 = vpop.permute.xlu0 %4083
  %4085 = vrot.lane.b32.xlu0 %v2960, 110
  %v4086 = vpop.permute.xlu0 %4085
  %v4087 = vsel %vm1211, %v4084, %v4086
  %v4088 = vsel %vm1211, %v4082, %v4084
  %v4089 = vsel %vm1211, %v4086, %v4082
  %v4091 = vsel %vm84, %v4088, 0
  %v4094 = vsel %vm84, %v4087, 0
  %v4097 = vsel %vm84, %v4089, 0
  %4099 = vmatprep.subr.mxu0 %v4094
  %4100 = vmatpush1.msra.mxu0 %v4091
  %4101 = vmatprep.subr.mxu0 0.0
  %4102 = vmatpush1.msra.mxu0 0.0
  %4103 = vmatprep.subr.mxu0 0.0
  %4104 = vmatpush1.msra.mxu0 0.0
  %4105 = vmatprep.subr.mxu0 0.0
  %4106 = vmatpush1.msra.mxu0 0.0
  %4107 = vmatprep.subr.mxu0 0.0
  %4108 = vmatpush1.msra.mxu0 0.0
  %4109 = vmatprep.subr.mxu0 0.0
  %4110 = vmatpush1.msra.mxu0 0.0
  %4111 = vmatprep.subr.mxu0 0.0
  %4112 = vmatpush1.msra.mxu0 0.0
  %4113 = vmatprep.subr.mxu0 0.0
  %4114 = vmatpush1.msra.mxu0 0.0
  %4115 = vmatprep.subr.mxu0 0.0
  %4116 = vmatpush1.msra.mxu0 0.0
  %4117 = vmatprep.subr.mxu0 0.0
  %4118 = vmatpush1.msra.mxu0 0.0
  %4119 = vmatprep.subr.mxu0 0.0
  %4120 = vmatpush1.msra.mxu0 0.0
  %4121 = vmatprep.subr.mxu0 0.0
  %4122 = vmatpush1.msra.mxu0 0.0
  %4123 = vmatprep.subr.mxu0 0.0
  %4124 = vmatpush1.msra.mxu0 0.0
  %4125 = vmatprep.subr.mxu0 0.0
  %4126 = vmatpush1.msra.mxu0 0.0
  %4127 = vmatprep.subr.mxu0 0.0
  %4128 = vmatpush1.msra.mxu0 0.0
  %4129 = vmatprep.subr.mxu0 0.0
  %4130 = vmatpush1.msra.mxu0 0.0
  %4131 = vmatprep.subr.mxu0 0.0
  %4132 = vmatpush1.msra.mxu0 0.0
  %4133 = vmatprep.subr.mxu0 0.0
  %4134 = vmatpush1.msra.mxu0 0.0
  %4135 = vmatprep.subr.mxu0 0.0
  %4136 = vmatpush1.msra.mxu0 0.0
  %4137 = vmatprep.subr.mxu0 0.0
  %4138 = vmatpush1.msra.mxu0 0.0
  %4139 = vmatprep.subr.mxu0 0.0
  %4140 = vmatpush1.msra.mxu0 0.0
  %4141 = vmatprep.subr.mxu0 0.0
  %4142 = vmatpush1.msra.mxu0 0.0
  %4143 = vmatprep.subr.mxu0 0.0
  %4144 = vmatpush1.msra.mxu0 0.0
  %4145 = vmatprep.subr.mxu0 0.0
  %4146 = vmatpush1.msra.mxu0 0.0
  %4147 = vmatprep.subr.mxu0 0.0
  %4148 = vmatpush1.msra.mxu0 0.0
  %4149 = vmatprep.subr.mxu0 0.0
  %4150 = vmatpush1.msra.mxu0 0.0
  %4151 = vmatprep.subr.mxu0 0.0
  %4152 = vmatpush1.msra.mxu0 0.0
  %4153 = vmatprep.subr.mxu0 0.0
  %4154 = vmatpush1.msra.mxu0 0.0
  %4155 = vmatprep.subr.mxu0 0.0
  %4156 = vmatpush1.msra.mxu0 0.0
  %4157 = vmatprep.subr.mxu0 0.0
  %4158 = vmatpush1.msra.mxu0 0.0
  %4159 = vmatprep.subr.mxu0 0.0
  %4160 = vmatpush1.msra.mxu0 0.0
  %4161 = vmatprep.subr.mxu0 0.0
  %4162 = vmatpush1.msra.mxu0 0.0
  %4163 = vmatprep.mubr.f32.mxu0 0.0
  %4164 = vmatmul.mubr.f32.gmra.mrb[0].mxu0 %v1216
  %v4165 = vpop.f32.mrb[0].mxu0
  %v4166 = vadd.f32 0.0, %v4165
  %v4167 = vpop.f32.mrb[0].mxu0
  %v4168 = vadd.f32 0.0, %v4167
  %4169 = vdwg.mxu0
  %4170 = vmatprep.subr.mxu0 0.0
  %4171 = vmatpush1.msra.mxu0 %v4097
  %4172 = vmatprep.subr.mxu0 0.0
  %4173 = vmatpush1.msra.mxu0 0.0
  %4174 = vmatprep.subr.mxu0 0.0
  %4175 = vmatpush1.msra.mxu0 0.0
  %4176 = vmatprep.subr.mxu0 0.0
  %4177 = vmatpush1.msra.mxu0 0.0
  %4178 = vmatprep.subr.mxu0 0.0
  %4179 = vmatpush1.msra.mxu0 0.0
  %4180 = vmatprep.subr.mxu0 0.0
  %4181 = vmatpush1.msra.mxu0 0.0
  %4182 = vmatprep.subr.mxu0 0.0
  %4183 = vmatpush1.msra.mxu0 0.0
  %4184 = vmatprep.subr.mxu0 0.0
  %4185 = vmatpush1.msra.mxu0 0.0
  %4186 = vmatprep.subr.mxu0 0.0
  %4187 = vmatpush1.msra.mxu0 0.0
  %4188 = vmatprep.subr.mxu0 0.0
  %4189 = vmatpush1.msra.mxu0 0.0
  %4190 = vmatprep.subr.mxu0 0.0
  %4191 = vmatpush1.msra.mxu0 0.0
  %4192 = vmatprep.subr.mxu0 0.0
  %4193 = vmatpush1.msra.mxu0 0.0
  %4194 = vmatprep.subr.mxu0 0.0
  %4195 = vmatpush1.msra.mxu0 0.0
  %4196 = vmatprep.subr.mxu0 0.0
  %4197 = vmatpush1.msra.mxu0 0.0
  %4198 = vmatprep.subr.mxu0 0.0
  %4199 = vmatpush1.msra.mxu0 0.0
  %4200 = vmatprep.subr.mxu0 0.0
  %4201 = vmatpush1.msra.mxu0 0.0
  %4202 = vmatprep.subr.mxu0 0.0
  %4203 = vmatpush1.msra.mxu0 0.0
  %4204 = vmatprep.subr.mxu0 0.0
  %4205 = vmatpush1.msra.mxu0 0.0
  %4206 = vmatprep.subr.mxu0 0.0
  %4207 = vmatpush1.msra.mxu0 0.0
  %4208 = vmatprep.subr.mxu0 0.0
  %4209 = vmatpush1.msra.mxu0 0.0
  %4210 = vmatprep.subr.mxu0 0.0
  %4211 = vmatpush1.msra.mxu0 0.0
  %4212 = vmatprep.subr.mxu0 0.0
  %4213 = vmatpush1.msra.mxu0 0.0
  %4214 = vmatprep.subr.mxu0 0.0
  %4215 = vmatpush1.msra.mxu0 0.0
  %4216 = vmatprep.subr.mxu0 0.0
  %4217 = vmatpush1.msra.mxu0 0.0
  %4218 = vmatprep.subr.mxu0 0.0
  %4219 = vmatpush1.msra.mxu0 0.0
  %4220 = vmatprep.subr.mxu0 0.0
  %4221 = vmatpush1.msra.mxu0 0.0
  %4222 = vmatprep.subr.mxu0 0.0
  %4223 = vmatpush1.msra.mxu0 0.0
  %4224 = vmatprep.subr.mxu0 0.0
  %4225 = vmatpush1.msra.mxu0 0.0
  %4226 = vmatprep.subr.mxu0 0.0
  %4227 = vmatpush1.msra.mxu0 0.0
  %4228 = vmatprep.subr.mxu0 0.0
  %4229 = vmatpush1.msra.mxu0 0.0
  %4230 = vmatprep.subr.mxu0 0.0
  %4231 = vmatpush1.msra.mxu0 0.0
  %4232 = vmatprep.subr.mxu0 0.0
  %4233 = vmatpush1.msra.mxu0 0.0
  %4234 = vmatprep.mubr.f32.mxu0 0.0
  %4235 = vmatmul.mubr.f32.gmra.mrb[0].mxu0 %v1216
  %v4236 = vpop.f32.mrb[0].mxu0
  %v4237 = vadd.f32 0.0, %v4236
  %v4238 = vpop.f32.mrb[0].mxu0
  %4239 = vdwg.mxu0
  %v4240 = vadd.f32 %v4078, %v4166
  %v4241 = vadd.f32 %v4079, %v4168
  %v4242 = vadd.f32 %v4080, %v4237
  %4243 = vrot.lane.b32.xlu0 %v2959, 109
  %v4244 = vpop.permute.xlu0 %4243
  %4245 = vrot.lane.b32.xlu0 %v2963, 109
  %v4246 = vpop.permute.xlu0 %4245
  %4247 = vrot.lane.b32.xlu0 %v2960, 109
  %v4248 = vpop.permute.xlu0 %4247
  %v4249 = vsel %vm1377, %v4246, %v4248
  %v4250 = vsel %vm1377, %v4244, %v4246
  %v4251 = vsel %vm1377, %v4248, %v4244
  %v4253 = vsel %vm84, %v4250, 0
  %v4256 = vsel %vm84, %v4249, 0
  %v4259 = vsel %vm84, %v4251, 0
  %4261 = vmatprep.subr.mxu0 %v4256
  %4262 = vmatpush1.msra.mxu0 %v4253
  %4263 = vmatprep.subr.mxu0 0.0
  %4264 = vmatpush1.msra.mxu0 0.0
  %4265 = vmatprep.subr.mxu0 0.0
  %4266 = vmatpush1.msra.mxu0 0.0
  %4267 = vmatprep.subr.mxu0 0.0
  %4268 = vmatpush1.msra.mxu0 0.0
  %4269 = vmatprep.subr.mxu0 0.0
  %4270 = vmatpush1.msra.mxu0 0.0
  %4271 = vmatprep.subr.mxu0 0.0
  %4272 = vmatpush1.msra.mxu0 0.0
  %4273 = vmatprep.subr.mxu0 0.0
  %4274 = vmatpush1.msra.mxu0 0.0
  %4275 = vmatprep.subr.mxu0 0.0
  %4276 = vmatpush1.msra.mxu0 0.0
  %4277 = vmatprep.subr.mxu0 0.0
  %4278 = vmatpush1.msra.mxu0 0.0
  %4279 = vmatprep.subr.mxu0 0.0
  %4280 = vmatpush1.msra.mxu0 0.0
  %4281 = vmatprep.subr.mxu0 0.0
  %4282 = vmatpush1.msra.mxu0 0.0
  %4283 = vmatprep.subr.mxu0 0.0
  %4284 = vmatpush1.msra.mxu0 0.0
  %4285 = vmatprep.subr.mxu0 0.0
  %4286 = vmatpush1.msra.mxu0 0.0
  %4287 = vmatprep.subr.mxu0 0.0
  %4288 = vmatpush1.msra.mxu0 0.0
  %4289 = vmatprep.subr.mxu0 0.0
  %4290 = vmatpush1.msra.mxu0 0.0
  %4291 = vmatprep.subr.mxu0 0.0
  %4292 = vmatpush1.msra.mxu0 0.0
  %4293 = vmatprep.subr.mxu0 0.0
  %4294 = vmatpush1.msra.mxu0 0.0
  %4295 = vmatprep.subr.mxu0 0.0
  %4296 = vmatpush1.msra.mxu0 0.0
  %4297 = vmatprep.subr.mxu0 0.0
  %4298 = vmatpush1.msra.mxu0 0.0
  %4299 = vmatprep.subr.mxu0 0.0
  %4300 = vmatpush1.msra.mxu0 0.0
  %4301 = vmatprep.subr.mxu0 0.0
  %4302 = vmatpush1.msra.mxu0 0.0
  %4303 = vmatprep.subr.mxu0 0.0
  %4304 = vmatpush1.msra.mxu0 0.0
  %4305 = vmatprep.subr.mxu0 0.0
  %4306 = vmatpush1.msra.mxu0 0.0
  %4307 = vmatprep.subr.mxu0 0.0
  %4308 = vmatpush1.msra.mxu0 0.0
  %4309 = vmatprep.subr.mxu0 0.0
  %4310 = vmatpush1.msra.mxu0 0.0
  %4311 = vmatprep.subr.mxu0 0.0
  %4312 = vmatpush1.msra.mxu0 0.0
  %4313 = vmatprep.subr.mxu0 0.0
  %4314 = vmatpush1.msra.mxu0 0.0
  %4315 = vmatprep.subr.mxu0 0.0
  %4316 = vmatpush1.msra.mxu0 0.0
  %4317 = vmatprep.subr.mxu0 0.0
  %4318 = vmatpush1.msra.mxu0 0.0
  %4319 = vmatprep.subr.mxu0 0.0
  %4320 = vmatpush1.msra.mxu0 0.0
  %4321 = vmatprep.subr.mxu0 0.0
  %4322 = vmatpush1.msra.mxu0 0.0
  %4323 = vmatprep.subr.mxu0 0.0
  %4324 = vmatpush1.msra.mxu0 0.0
  %4325 = vmatprep.mubr.f32.mxu0 0.0
  %4326 = vmatmul.mubr.f32.gmra.mrb[0].mxu0 %v1382
  %v4327 = vpop.f32.mrb[0].mxu0
  %v4328 = vadd.f32 0.0, %v4327
  %v4329 = vpop.f32.mrb[0].mxu0
  %v4330 = vadd.f32 0.0, %v4329
  %4331 = vdwg.mxu0
  %4332 = vmatprep.subr.mxu0 0.0
  %4333 = vmatpush1.msra.mxu0 %v4259
  %4334 = vmatprep.subr.mxu0 0.0
  %4335 = vmatpush1.msra.mxu0 0.0
  %4336 = vmatprep.subr.mxu0 0.0
  %4337 = vmatpush1.msra.mxu0 0.0
  %4338 = vmatprep.subr.mxu0 0.0
  %4339 = vmatpush1.msra.mxu0 0.0
  %4340 = vmatprep.subr.mxu0 0.0
  %4341 = vmatpush1.msra.mxu0 0.0
  %4342 = vmatprep.subr.mxu0 0.0
  %4343 = vmatpush1.msra.mxu0 0.0
  %4344 = vmatprep.subr.mxu0 0.0
  %4345 = vmatpush1.msra.mxu0 0.0
  %4346 = vmatprep.subr.mxu0 0.0
  %4347 = vmatpush1.msra.mxu0 0.0
  %4348 = vmatprep.subr.mxu0 0.0
  %4349 = vmatpush1.msra.mxu0 0.0
  %4350 = vmatprep.subr.mxu0 0.0
  %4351 = vmatpush1.msra.mxu0 0.0
  %4352 = vmatprep.subr.mxu0 0.0
  %4353 = vmatpush1.msra.mxu0 0.0
  %4354 = vmatprep.subr.mxu0 0.0
  %4355 = vmatpush1.msra.mxu0 0.0
  %4356 = vmatprep.subr.mxu0 0.0
  %4357 = vmatpush1.msra.mxu0 0.0
  %4358 = vmatprep.subr.mxu0 0.0
  %4359 = vmatpush1.msra.mxu0 0.0
  %4360 = vmatprep.subr.mxu0 0.0
  %4361 = vmatpush1.msra.mxu0 0.0
  %4362 = vmatprep.subr.mxu0 0.0
  %4363 = vmatpush1.msra.mxu0 0.0
  %4364 = vmatprep.subr.mxu0 0.0
  %4365 = vmatpush1.msra.mxu0 0.0
  %4366 = vmatprep.subr.mxu0 0.0
  %4367 = vmatpush1.msra.mxu0 0.0
  %4368 = vmatprep.subr.mxu0 0.0
  %4369 = vmatpush1.msra.mxu0 0.0
  %4370 = vmatprep.subr.mxu0 0.0
  %4371 = vmatpush1.msra.mxu0 0.0
  %4372 = vmatprep.subr.mxu0 0.0
  %4373 = vmatpush1.msra.mxu0 0.0
  %4374 = vmatprep.subr.mxu0 0.0
  %4375 = vmatpush1.msra.mxu0 0.0
  %4376 = vmatprep.subr.mxu0 0.0
  %4377 = vmatpush1.msra.mxu0 0.0
  %4378 = vmatprep.subr.mxu0 0.0
  %4379 = vmatpush1.msra.mxu0 0.0
  %4380 = vmatprep.subr.mxu0 0.0
  %4381 = vmatpush1.msra.mxu0 0.0
  %4382 = vmatprep.subr.mxu0 0.0
  %4383 = vmatpush1.msra.mxu0 0.0
  %4384 = vmatprep.subr.mxu0 0.0
  %4385 = vmatpush1.msra.mxu0 0.0
  %4386 = vmatprep.subr.mxu0 0.0
  %4387 = vmatpush1.msra.mxu0 0.0
  %4388 = vmatprep.subr.mxu0 0.0
  %4389 = vmatpush1.msra.mxu0 0.0
  %4390 = vmatprep.subr.mxu0 0.0
  %4391 = vmatpush1.msra.mxu0 0.0
  %4392 = vmatprep.subr.mxu0 0.0
  %4393 = vmatpush1.msra.mxu0 0.0
  %4394 = vmatprep.subr.mxu0 0.0
  %4395 = vmatpush1.msra.mxu0 0.0
  %4396 = vmatprep.mubr.f32.mxu0 0.0
  %4397 = vmatmul.mubr.f32.gmra.mrb[0].mxu0 %v1382
  %v4398 = vpop.f32.mrb[0].mxu0
  %v4399 = vadd.f32 0.0, %v4398
  %v4400 = vpop.f32.mrb[0].mxu0
  %4401 = vdwg.mxu0
  %v4402 = vadd.f32 %v4240, %v4328
  %v4403 = vadd.f32 %v4241, %v4330
  %v4404 = vadd.f32 %v4242, %v4399
  %v4405 = vmax.f32 %v4402, 0.0
  %v4406 = vmax.f32 %v4403, 0.0
  %v4407 = vmax.f32 %v4404, 0.0
  %v4408 = vmul.f32 %v4405, %v1544
  %v4409 = vmul.f32 %v4406, %v1548
  %v4410 = vmul.f32 %v4407, %v1552
  %4411 = vrot.lane.b32.xlu0 %v4408, 19
  %v4412 = vpop.permute.xlu0 %4411
  %4413 = vrot.lane.b32.xlu0 %v4409, 19
  %v4414 = vpop.permute.xlu0 %4413
  %4415 = vrot.lane.b32.xlu0 %v4410, 19
  %v4416 = vpop.permute.xlu0 %4415
  %v4417 = vsel %vm66, %v4414, %v4416
  %v4418 = vsel %vm66, %v4412, %v4414
  %v4419 = vsel %vm66, %v4416, %v4412
  %4420 = vrot.lane.b32.xlu0 %v4408, 18
  %v4421 = vpop.permute.xlu0 %4420
  %4422 = vrot.lane.b32.xlu0 %v4409, 18
  %v4423 = vpop.permute.xlu0 %4422
  %4424 = vrot.lane.b32.xlu0 %v4410, 18
  %v4425 = vpop.permute.xlu0 %4424
  %v4426 = vsel %vm76, %v4423, %v4425
  %v4427 = vsel %vm76, %v4421, %v4423
  %v4428 = vsel %vm76, %v4425, %v4421
  %4429 = vmatprep.subr.mxu0 %v4427
  %4430 = vmatpush1.msra.mxu0 %v4428
  %4431 = vmatprep.subr.mxu0 0.0
  %4432 = vmatpush1.msra.mxu0 0.0
  %4433 = vmatprep.subr.mxu0 0.0
  %4434 = vmatpush1.msra.mxu0 0.0
  %4435 = vmatprep.subr.mxu0 0.0
  %4436 = vmatpush1.msra.mxu0 0.0
  %4437 = vmatprep.subr.mxu0 0.0
  %4438 = vmatpush1.msra.mxu0 0.0
  %4439 = vmatprep.subr.mxu0 0.0
  %4440 = vmatpush1.msra.mxu0 0.0
  %4441 = vmatprep.subr.mxu0 0.0
  %4442 = vmatpush1.msra.mxu0 0.0
  %4443 = vmatprep.subr.mxu0 0.0
  %4444 = vmatpush1.msra.mxu0 0.0
  %4445 = vmatprep.subr.mxu0 0.0
  %4446 = vmatpush1.msra.mxu0 0.0
  %4447 = vmatprep.subr.mxu0 0.0
  %4448 = vmatpush1.msra.mxu0 0.0
  %4449 = vmatprep.subr.mxu0 0.0
  %4450 = vmatpush1.msra.mxu0 0.0
  %4451 = vmatprep.subr.mxu0 0.0
  %4452 = vmatpush1.msra.mxu0 0.0
  %4453 = vmatprep.subr.mxu0 0.0
  %4454 = vmatpush1.msra.mxu0 0.0
  %4455 = vmatprep.subr.mxu0 0.0
  %4456 = vmatpush1.msra.mxu0 0.0
  %4457 = vmatprep.subr.mxu0 0.0
  %4458 = vmatpush1.msra.mxu0 0.0
  %4459 = vmatprep.subr.mxu0 0.0
  %4460 = vmatpush1.msra.mxu0 0.0
  %4461 = vmatprep.subr.mxu0 0.0
  %4462 = vmatpush1.msra.mxu0 0.0
  %4463 = vmatprep.subr.mxu0 0.0
  %4464 = vmatpush1.msra.mxu0 0.0
  %4465 = vmatprep.subr.mxu0 0.0
  %4466 = vmatpush1.msra.mxu0 0.0
  %4467 = vmatprep.subr.mxu0 0.0
  %4468 = vmatpush1.msra.mxu0 0.0
  %4469 = vmatprep.subr.mxu0 0.0
  %4470 = vmatpush1.msra.mxu0 0.0
  %4471 = vmatprep.subr.mxu0 0.0
  %4472 = vmatpush1.msra.mxu0 0.0
  %4473 = vmatprep.subr.mxu0 0.0
  %4474 = vmatpush1.msra.mxu0 0.0
  %4475 = vmatprep.subr.mxu0 0.0
  %4476 = vmatpush1.msra.mxu0 0.0
  %4477 = vmatprep.subr.mxu0 0.0
  %4478 = vmatpush1.msra.mxu0 0.0
  %4479 = vmatprep.subr.mxu0 0.0
  %4480 = vmatpush1.msra.mxu0 0.0
  %4481 = vmatprep.subr.mxu0 0.0
  %4482 = vmatpush1.msra.mxu0 0.0
  %4483 = vmatprep.subr.mxu0 0.0
  %4484 = vmatpush1.msra.mxu0 0.0
  %4485 = vmatprep.subr.mxu0 0.0
  %4486 = vmatpush1.msra.mxu0 0.0
  %4487 = vmatprep.subr.mxu0 0.0
  %4488 = vmatpush1.msra.mxu0 0.0
  %4489 = vmatprep.subr.mxu0 0.0
  %4490 = vmatpush1.msra.mxu0 0.0
  %4491 = vmatprep.subr.mxu0 0.0
  %4492 = vmatpush1.msra.mxu0 0.0
  %4493 = vmatprep.mubr.f32.mxu0 0.0
  %4494 = vmatmul.mubr.f32.gmra.mrb[0].mxu0 %v1579
  %v4495 = vpop.f32.mrb[0].mxu0
  %v4496 = vadd.f32 0.0, %v4495
  %v4497 = vpop.f32.mrb[0].mxu0
  %v4498 = vadd.f32 0.0, %v4497
  %4499 = vdwg.mxu0
  %4500 = vmatprep.subr.mxu0 0.0
  %4501 = vmatpush1.msra.mxu0 %v4426
  %4502 = vmatprep.subr.mxu0 0.0
  %4503 = vmatpush1.msra.mxu0 0.0
  %4504 = vmatprep.subr.mxu0 0.0
  %4505 = vmatpush1.msra.mxu0 0.0
  %4506 = vmatprep.subr.mxu0 0.0
  %4507 = vmatpush1.msra.mxu0 0.0
  %4508 = vmatprep.subr.mxu0 0.0
  %4509 = vmatpush1.msra.mxu0 0.0
  %4510 = vmatprep.subr.mxu0 0.0
  %4511 = vmatpush1.msra.mxu0 0.0
  %4512 = vmatprep.subr.mxu0 0.0
  %4513 = vmatpush1.msra.mxu0 0.0
  %4514 = vmatprep.subr.mxu0 0.0
  %4515 = vmatpush1.msra.mxu0 0.0
  %4516 = vmatprep.subr.mxu0 0.0
  %4517 = vmatpush1.msra.mxu0 0.0
  %4518 = vmatprep.subr.mxu0 0.0
  %4519 = vmatpush1.msra.mxu0 0.0
  %4520 = vmatprep.subr.mxu0 0.0
  %4521 = vmatpush1.msra.mxu0 0.0
  %4522 = vmatprep.subr.mxu0 0.0
  %4523 = vmatpush1.msra.mxu0 0.0
  %4524 = vmatprep.subr.mxu0 0.0
  %4525 = vmatpush1.msra.mxu0 0.0
  %4526 = vmatprep.subr.mxu0 0.0
  %4527 = vmatpush1.msra.mxu0 0.0
  %4528 = vmatprep.subr.mxu0 0.0
  %4529 = vmatpush1.msra.mxu0 0.0
  %4530 = vmatprep.subr.mxu0 0.0
  %4531 = vmatpush1.msra.mxu0 0.0
  %4532 = vmatprep.subr.mxu0 0.0
  %4533 = vmatpush1.msra.mxu0 0.0
  %4534 = vmatprep.subr.mxu0 0.0
  %4535 = vmatpush1.msra.mxu0 0.0
  %4536 = vmatprep.subr.mxu0 0.0
  %4537 = vmatpush1.msra.mxu0 0.0
  %4538 = vmatprep.subr.mxu0 0.0
  %4539 = vmatpush1.msra.mxu0 0.0
  %4540 = vmatprep.subr.mxu0 0.0
  %4541 = vmatpush1.msra.mxu0 0.0
  %4542 = vmatprep.subr.mxu0 0.0
  %4543 = vmatpush1.msra.mxu0 0.0
  %4544 = vmatprep.subr.mxu0 0.0
  %4545 = vmatpush1.msra.mxu0 0.0
  %4546 = vmatprep.subr.mxu0 0.0
  %4547 = vmatpush1.msra.mxu0 0.0
  %4548 = vmatprep.subr.mxu0 0.0
  %4549 = vmatpush1.msra.mxu0 0.0
  %4550 = vmatprep.subr.mxu0 0.0
  %4551 = vmatpush1.msra.mxu0 0.0
  %4552 = vmatprep.subr.mxu0 0.0
  %4553 = vmatpush1.msra.mxu0 0.0
  %4554 = vmatprep.subr.mxu0 0.0
  %4555 = vmatpush1.msra.mxu0 0.0
  %4556 = vmatprep.subr.mxu0 0.0
  %4557 = vmatpush1.msra.mxu0 0.0
  %4558 = vmatprep.subr.mxu0 0.0
  %4559 = vmatpush1.msra.mxu0 0.0
  %4560 = vmatprep.subr.mxu0 0.0
  %4561 = vmatpush1.msra.mxu0 0.0
  %4562 = vmatprep.subr.mxu0 0.0
  %4563 = vmatpush1.msra.mxu0 0.0
  %4564 = vmatprep.mubr.f32.mxu0 0.0
  %4565 = vmatmul.mubr.f32.gmra.mrb[0].mxu0 %v1579
  %v4566 = vpop.f32.mrb[0].mxu0
  %v4567 = vadd.f32 0.0, %v4566
  %v4568 = vpop.f32.mrb[0].mxu0
  %4569 = vdwg.mxu0
  %4570 = vmatprep.subr.mxu0 %v4418
  %4571 = vmatpush1.msra.mxu0 %v4419
  %4572 = vmatprep.subr.mxu0 0.0
  %4573 = vmatpush1.msra.mxu0 0.0
  %4574 = vmatprep.subr.mxu0 0.0
  %4575 = vmatpush1.msra.mxu0 0.0
  %4576 = vmatprep.subr.mxu0 0.0
  %4577 = vmatpush1.msra.mxu0 0.0
  %4578 = vmatprep.subr.mxu0 0.0
  %4579 = vmatpush1.msra.mxu0 0.0
  %4580 = vmatprep.subr.mxu0 0.0
  %4581 = vmatpush1.msra.mxu0 0.0
  %4582 = vmatprep.subr.mxu0 0.0
  %4583 = vmatpush1.msra.mxu0 0.0
  %4584 = vmatprep.subr.mxu0 0.0
  %4585 = vmatpush1.msra.mxu0 0.0
  %4586 = vmatprep.subr.mxu0 0.0
  %4587 = vmatpush1.msra.mxu0 0.0
  %4588 = vmatprep.subr.mxu0 0.0
  %4589 = vmatpush1.msra.mxu0 0.0
  %4590 = vmatprep.subr.mxu0 0.0
  %4591 = vmatpush1.msra.mxu0 0.0
  %4592 = vmatprep.subr.mxu0 0.0
  %4593 = vmatpush1.msra.mxu0 0.0
  %4594 = vmatprep.subr.mxu0 0.0
  %4595 = vmatpush1.msra.mxu0 0.0
  %4596 = vmatprep.subr.mxu0 0.0
  %4597 = vmatpush1.msra.mxu0 0.0
  %4598 = vmatprep.subr.mxu0 0.0
  %4599 = vmatpush1.msra.mxu0 0.0
  %4600 = vmatprep.subr.mxu0 0.0
  %4601 = vmatpush1.msra.mxu0 0.0
  %4602 = vmatprep.subr.mxu0 0.0
  %4603 = vmatpush1.msra.mxu0 0.0
  %4604 = vmatprep.subr.mxu0 0.0
  %4605 = vmatpush1.msra.mxu0 0.0
  %4606 = vmatprep.subr.mxu0 0.0
  %4607 = vmatpush1.msra.mxu0 0.0
  %4608 = vmatprep.subr.mxu0 0.0
  %4609 = vmatpush1.msra.mxu0 0.0
  %4610 = vmatprep.subr.mxu0 0.0
  %4611 = vmatpush1.msra.mxu0 0.0
  %4612 = vmatprep.subr.mxu0 0.0
  %4613 = vmatpush1.msra.mxu0 0.0
  %4614 = vmatprep.subr.mxu0 0.0
  %4615 = vmatpush1.msra.mxu0 0.0
  %4616 = vmatprep.subr.mxu0 0.0
  %4617 = vmatpush1.msra.mxu0 0.0
  %4618 = vmatprep.subr.mxu0 0.0
  %4619 = vmatpush1.msra.mxu0 0.0
  %4620 = vmatprep.subr.mxu0 0.0
  %4621 = vmatpush1.msra.mxu0 0.0
  %4622 = vmatprep.subr.mxu0 0.0
  %4623 = vmatpush1.msra.mxu0 0.0
  %4624 = vmatprep.subr.mxu0 0.0
  %4625 = vmatpush1.msra.mxu0 0.0
  %4626 = vmatprep.subr.mxu0 0.0
  %4627 = vmatpush1.msra.mxu0 0.0
  %4628 = vmatprep.subr.mxu0 0.0
  %4629 = vmatpush1.msra.mxu0 0.0
  %4630 = vmatprep.subr.mxu0 0.0
  %4631 = vmatpush1.msra.mxu0 0.0
  %4632 = vmatprep.subr.mxu0 0.0
  %4633 = vmatpush1.msra.mxu0 0.0
  %4634 = vmatprep.mubr.f32.mxu0 0.0
  %4635 = vmatmul.mubr.f32.gmra.mrb[0].mxu0 %v1723
  %v4636 = vpop.f32.mrb[0].mxu0
  %v4637 = vadd.f32 %v4496, %v4636
  %v4638 = vpop.f32.mrb[0].mxu0
  %v4639 = vadd.f32 %v4498, %v4638
  %4640 = vdwg.mxu0
  %4641 = vmatprep.subr.mxu0 0.0
  %4642 = vmatpush1.msra.mxu0 %v4417
  %4643 = vmatprep.subr.mxu0 0.0
  %4644 = vmatpush1.msra.mxu0 0.0
  %4645 = vmatprep.subr.mxu0 0.0
  %4646 = vmatpush1.msra.mxu0 0.0
  %4647 = vmatprep.subr.mxu0 0.0
  %4648 = vmatpush1.msra.mxu0 0.0
  %4649 = vmatprep.subr.mxu0 0.0
  %4650 = vmatpush1.msra.mxu0 0.0
  %4651 = vmatprep.subr.mxu0 0.0
  %4652 = vmatpush1.msra.mxu0 0.0
  %4653 = vmatprep.subr.mxu0 0.0
  %4654 = vmatpush1.msra.mxu0 0.0
  %4655 = vmatprep.subr.mxu0 0.0
  %4656 = vmatpush1.msra.mxu0 0.0
  %4657 = vmatprep.subr.mxu0 0.0
  %4658 = vmatpush1.msra.mxu0 0.0
  %4659 = vmatprep.subr.mxu0 0.0
  %4660 = vmatpush1.msra.mxu0 0.0
  %4661 = vmatprep.subr.mxu0 0.0
  %4662 = vmatpush1.msra.mxu0 0.0
  %4663 = vmatprep.subr.mxu0 0.0
  %4664 = vmatpush1.msra.mxu0 0.0
  %4665 = vmatprep.subr.mxu0 0.0
  %4666 = vmatpush1.msra.mxu0 0.0
  %4667 = vmatprep.subr.mxu0 0.0
  %4668 = vmatpush1.msra.mxu0 0.0
  %4669 = vmatprep.subr.mxu0 0.0
  %4670 = vmatpush1.msra.mxu0 0.0
  %4671 = vmatprep.subr.mxu0 0.0
  %4672 = vmatpush1.msra.mxu0 0.0
  %4673 = vmatprep.subr.mxu0 0.0
  %4674 = vmatpush1.msra.mxu0 0.0
  %4675 = vmatprep.subr.mxu0 0.0
  %4676 = vmatpush1.msra.mxu0 0.0
  %4677 = vmatprep.subr.mxu0 0.0
  %4678 = vmatpush1.msra.mxu0 0.0
  %4679 = vmatprep.subr.mxu0 0.0
  %4680 = vmatpush1.msra.mxu0 0.0
  %4681 = vmatprep.subr.mxu0 0.0
  %4682 = vmatpush1.msra.mxu0 0.0
  %4683 = vmatprep.subr.mxu0 0.0
  %4684 = vmatpush1.msra.mxu0 0.0
  %4685 = vmatprep.subr.mxu0 0.0
  %4686 = vmatpush1.msra.mxu0 0.0
  %4687 = vmatprep.subr.mxu0 0.0
  %4688 = vmatpush1.msra.mxu0 0.0
  %4689 = vmatprep.subr.mxu0 0.0
  %4690 = vmatpush1.msra.mxu0 0.0
  %4691 = vmatprep.subr.mxu0 0.0
  %4692 = vmatpush1.msra.mxu0 0.0
  %4693 = vmatprep.subr.mxu0 0.0
  %4694 = vmatpush1.msra.mxu0 0.0
  %4695 = vmatprep.subr.mxu0 0.0
  %4696 = vmatpush1.msra.mxu0 0.0
  %4697 = vmatprep.subr.mxu0 0.0
  %4698 = vmatpush1.msra.mxu0 0.0
  %4699 = vmatprep.subr.mxu0 0.0
  %4700 = vmatpush1.msra.mxu0 0.0
  %4701 = vmatprep.subr.mxu0 0.0
  %4702 = vmatpush1.msra.mxu0 0.0
  %4703 = vmatprep.subr.mxu0 0.0
  %4704 = vmatpush1.msra.mxu0 0.0
  %4705 = vmatprep.mubr.f32.mxu0 0.0
  %4706 = vmatmul.mubr.f32.gmra.mrb[0].mxu0 %v1723
  %v4707 = vpop.f32.mrb[0].mxu0
  %v4708 = vadd.f32 %v4567, %v4707
  %v4709 = vpop.f32.mrb[0].mxu0
  %4710 = vdwg.mxu0
  %4711 = vrot.lane.b32.xlu0 %v4408, 17
  %v4712 = vpop.permute.xlu0 %4711
  %4713 = vrot.lane.b32.xlu0 %v4409, 17
  %v4714 = vpop.permute.xlu0 %4713
  %4715 = vrot.lane.b32.xlu0 %v4410, 17
  %v4716 = vpop.permute.xlu0 %4715
  %v4717 = vsel %vm394, %v4714, %v4716
  %v4718 = vsel %vm394, %v4712, %v4714
  %v4719 = vsel %vm394, %v4716, %v4712
  %4720 = vmatprep.subr.mxu0 %v4718
  %4721 = vmatpush1.msra.mxu0 %v4719
  %4722 = vmatprep.subr.mxu0 0.0
  %4723 = vmatpush1.msra.mxu0 0.0
  %4724 = vmatprep.subr.mxu0 0.0
  %4725 = vmatpush1.msra.mxu0 0.0
  %4726 = vmatprep.subr.mxu0 0.0
  %4727 = vmatpush1.msra.mxu0 0.0
  %4728 = vmatprep.subr.mxu0 0.0
  %4729 = vmatpush1.msra.mxu0 0.0
  %4730 = vmatprep.subr.mxu0 0.0
  %4731 = vmatpush1.msra.mxu0 0.0
  %4732 = vmatprep.subr.mxu0 0.0
  %4733 = vmatpush1.msra.mxu0 0.0
  %4734 = vmatprep.subr.mxu0 0.0
  %4735 = vmatpush1.msra.mxu0 0.0
  %4736 = vmatprep.subr.mxu0 0.0
  %4737 = vmatpush1.msra.mxu0 0.0
  %4738 = vmatprep.subr.mxu0 0.0
  %4739 = vmatpush1.msra.mxu0 0.0
  %4740 = vmatprep.subr.mxu0 0.0
  %4741 = vmatpush1.msra.mxu0 0.0
  %4742 = vmatprep.subr.mxu0 0.0
  %4743 = vmatpush1.msra.mxu0 0.0
  %4744 = vmatprep.subr.mxu0 0.0
  %4745 = vmatpush1.msra.mxu0 0.0
  %4746 = vmatprep.subr.mxu0 0.0
  %4747 = vmatpush1.msra.mxu0 0.0
  %4748 = vmatprep.subr.mxu0 0.0
  %4749 = vmatpush1.msra.mxu0 0.0
  %4750 = vmatprep.subr.mxu0 0.0
  %4751 = vmatpush1.msra.mxu0 0.0
  %4752 = vmatprep.subr.mxu0 0.0
  %4753 = vmatpush1.msra.mxu0 0.0
  %4754 = vmatprep.subr.mxu0 0.0
  %4755 = vmatpush1.msra.mxu0 0.0
  %4756 = vmatprep.subr.mxu0 0.0
  %4757 = vmatpush1.msra.mxu0 0.0
  %4758 = vmatprep.subr.mxu0 0.0
  %4759 = vmatpush1.msra.mxu0 0.0
  %4760 = vmatprep.subr.mxu0 0.0
  %4761 = vmatpush1.msra.mxu0 0.0
  %4762 = vmatprep.subr.mxu0 0.0
  %4763 = vmatpush1.msra.mxu0 0.0
  %4764 = vmatprep.subr.mxu0 0.0
  %4765 = vmatpush1.msra.mxu0 0.0
  %4766 = vmatprep.subr.mxu0 0.0
  %4767 = vmatpush1.msra.mxu0 0.0
  %4768 = vmatprep.subr.mxu0 0.0
  %4769 = vmatpush1.msra.mxu0 0.0
  %4770 = vmatprep.subr.mxu0 0.0
  %4771 = vmatpush1.msra.mxu0 0.0
  %4772 = vmatprep.subr.mxu0 0.0
  %4773 = vmatpush1.msra.mxu0 0.0
  %4774 = vmatprep.subr.mxu0 0.0
  %4775 = vmatpush1.msra.mxu0 0.0
  %4776 = vmatprep.subr.mxu0 0.0
  %4777 = vmatpush1.msra.mxu0 0.0
  %4778 = vmatprep.subr.mxu0 0.0
  %4779 = vmatpush1.msra.mxu0 0.0
  %4780 = vmatprep.subr.mxu0 0.0
  %4781 = vmatpush1.msra.mxu0 0.0
  %4782 = vmatprep.subr.mxu0 0.0
  %4783 = vmatpush1.msra.mxu0 0.0
  %4784 = vmatprep.mubr.f32.mxu0 0.0
  %4785 = vmatmul.mubr.f32.gmra.mrb[0].mxu0 %v1876
  %v4786 = vpop.f32.mrb[0].mxu0
  %v4787 = vadd.f32 0.0, %v4786
  %v4788 = vpop.f32.mrb[0].mxu0
  %v4789 = vadd.f32 0.0, %v4788
  %4790 = vdwg.mxu0
  %4791 = vmatprep.subr.mxu0 0.0
  %4792 = vmatpush1.msra.mxu0 %v4717
  %4793 = vmatprep.subr.mxu0 0.0
  %4794 = vmatpush1.msra.mxu0 0.0
  %4795 = vmatprep.subr.mxu0 0.0
  %4796 = vmatpush1.msra.mxu0 0.0
  %4797 = vmatprep.subr.mxu0 0.0
  %4798 = vmatpush1.msra.mxu0 0.0
  %4799 = vmatprep.subr.mxu0 0.0
  %4800 = vmatpush1.msra.mxu0 0.0
  %4801 = vmatprep.subr.mxu0 0.0
  %4802 = vmatpush1.msra.mxu0 0.0
  %4803 = vmatprep.subr.mxu0 0.0
  %4804 = vmatpush1.msra.mxu0 0.0
  %4805 = vmatprep.subr.mxu0 0.0
  %4806 = vmatpush1.msra.mxu0 0.0
  %4807 = vmatprep.subr.mxu0 0.0
  %4808 = vmatpush1.msra.mxu0 0.0
  %4809 = vmatprep.subr.mxu0 0.0
  %4810 = vmatpush1.msra.mxu0 0.0
  %4811 = vmatprep.subr.mxu0 0.0
  %4812 = vmatpush1.msra.mxu0 0.0
  %4813 = vmatprep.subr.mxu0 0.0
  %4814 = vmatpush1.msra.mxu0 0.0
  %4815 = vmatprep.subr.mxu0 0.0
  %4816 = vmatpush1.msra.mxu0 0.0
  %4817 = vmatprep.subr.mxu0 0.0
  %4818 = vmatpush1.msra.mxu0 0.0
  %4819 = vmatprep.subr.mxu0 0.0
  %4820 = vmatpush1.msra.mxu0 0.0
  %4821 = vmatprep.subr.mxu0 0.0
  %4822 = vmatpush1.msra.mxu0 0.0
  %4823 = vmatprep.subr.mxu0 0.0
  %4824 = vmatpush1.msra.mxu0 0.0
  %4825 = vmatprep.subr.mxu0 0.0
  %4826 = vmatpush1.msra.mxu0 0.0
  %4827 = vmatprep.subr.mxu0 0.0
  %4828 = vmatpush1.msra.mxu0 0.0
  %4829 = vmatprep.subr.mxu0 0.0
  %4830 = vmatpush1.msra.mxu0 0.0
  %4831 = vmatprep.subr.mxu0 0.0
  %4832 = vmatpush1.msra.mxu0 0.0
  %4833 = vmatprep.subr.mxu0 0.0
  %4834 = vmatpush1.msra.mxu0 0.0
  %4835 = vmatprep.subr.mxu0 0.0
  %4836 = vmatpush1.msra.mxu0 0.0
  %4837 = vmatprep.subr.mxu0 0.0
  %4838 = vmatpush1.msra.mxu0 0.0
  %4839 = vmatprep.subr.mxu0 0.0
  %4840 = vmatpush1.msra.mxu0 0.0
  %4841 = vmatprep.subr.mxu0 0.0
  %4842 = vmatpush1.msra.mxu0 0.0
  %4843 = vmatprep.subr.mxu0 0.0
  %4844 = vmatpush1.msra.mxu0 0.0
  %4845 = vmatprep.subr.mxu0 0.0
  %4846 = vmatpush1.msra.mxu0 0.0
  %4847 = vmatprep.subr.mxu0 0.0
  %4848 = vmatpush1.msra.mxu0 0.0
  %4849 = vmatprep.subr.mxu0 0.0
  %4850 = vmatpush1.msra.mxu0 0.0
  %4851 = vmatprep.subr.mxu0 0.0
  %4852 = vmatpush1.msra.mxu0 0.0
  %4853 = vmatprep.subr.mxu0 0.0
  %4854 = vmatpush1.msra.mxu0 0.0
  %4855 = vmatprep.mubr.f32.mxu0 0.0
  %4856 = vmatmul.mubr.f32.gmra.mrb[0].mxu0 %v1876
  %v4857 = vpop.f32.mrb[0].mxu0
  %v4858 = vadd.f32 0.0, %v4857
  %v4859 = vpop.f32.mrb[0].mxu0
  %4860 = vdwg.mxu0
  %v4861 = vadd.f32 %v4637, %v4787
  %v4862 = vadd.f32 %v4639, %v4789
  %v4863 = vadd.f32 %v4708, %v4858
  %4864 = vrot.lane.b32.xlu0 %v4408, 1
  %v4865 = vpop.permute.xlu0 %4864
  %4866 = vrot.lane.b32.xlu0 %v4409, 1
  %v4867 = vpop.permute.xlu0 %4866
  %4868 = vrot.lane.b32.xlu0 %v4410, 1
  %v4869 = vpop.permute.xlu0 %4868
  %v4870 = vsel %vm560, %v4867, %v4869
  %v4871 = vsel %vm560, %v4865, %v4867
  %v4872 = vsel %vm560, %v4869, %v4865
  %4873 = vmatprep.subr.mxu0 %v4871
  %4874 = vmatpush1.msra.mxu0 %v4872
  %4875 = vmatprep.subr.mxu0 0.0
  %4876 = vmatpush1.msra.mxu0 0.0
  %4877 = vmatprep.subr.mxu0 0.0
  %4878 = vmatpush1.msra.mxu0 0.0
  %4879 = vmatprep.subr.mxu0 0.0
  %4880 = vmatpush1.msra.mxu0 0.0
  %4881 = vmatprep.subr.mxu0 0.0
  %4882 = vmatpush1.msra.mxu0 0.0
  %4883 = vmatprep.subr.mxu0 0.0
  %4884 = vmatpush1.msra.mxu0 0.0
  %4885 = vmatprep.subr.mxu0 0.0
  %4886 = vmatpush1.msra.mxu0 0.0
  %4887 = vmatprep.subr.mxu0 0.0
  %4888 = vmatpush1.msra.mxu0 0.0
  %4889 = vmatprep.subr.mxu0 0.0
  %4890 = vmatpush1.msra.mxu0 0.0
  %4891 = vmatprep.subr.mxu0 0.0
  %4892 = vmatpush1.msra.mxu0 0.0
  %4893 = vmatprep.subr.mxu0 0.0
  %4894 = vmatpush1.msra.mxu0 0.0
  %4895 = vmatprep.subr.mxu0 0.0
  %4896 = vmatpush1.msra.mxu0 0.0
  %4897 = vmatprep.subr.mxu0 0.0
  %4898 = vmatpush1.msra.mxu0 0.0
  %4899 = vmatprep.subr.mxu0 0.0
  %4900 = vmatpush1.msra.mxu0 0.0
  %4901 = vmatprep.subr.mxu0 0.0
  %4902 = vmatpush1.msra.mxu0 0.0
  %4903 = vmatprep.subr.mxu0 0.0
  %4904 = vmatpush1.msra.mxu0 0.0
  %4905 = vmatprep.subr.mxu0 0.0
  %4906 = vmatpush1.msra.mxu0 0.0
  %4907 = vmatprep.subr.mxu0 0.0
  %4908 = vmatpush1.msra.mxu0 0.0
  %4909 = vmatprep.subr.mxu0 0.0
  %4910 = vmatpush1.msra.mxu0 0.0
  %4911 = vmatprep.subr.mxu0 0.0
  %4912 = vmatpush1.msra.mxu0 0.0
  %4913 = vmatprep.subr.mxu0 0.0
  %4914 = vmatpush1.msra.mxu0 0.0
  %4915 = vmatprep.subr.mxu0 0.0
  %4916 = vmatpush1.msra.mxu0 0.0
  %4917 = vmatprep.subr.mxu0 0.0
  %4918 = vmatpush1.msra.mxu0 0.0
  %4919 = vmatprep.subr.mxu0 0.0
  %4920 = vmatpush1.msra.mxu0 0.0
  %4921 = vmatprep.subr.mxu0 0.0
  %4922 = vmatpush1.msra.mxu0 0.0
  %4923 = vmatprep.subr.mxu0 0.0
  %4924 = vmatpush1.msra.mxu0 0.0
  %4925 = vmatprep.subr.mxu0 0.0
  %4926 = vmatpush1.msra.mxu0 0.0
  %4927 = vmatprep.subr.mxu0 0.0
  %4928 = vmatpush1.msra.mxu0 0.0
  %4929 = vmatprep.subr.mxu0 0.0
  %4930 = vmatpush1.msra.mxu0 0.0
  %4931 = vmatprep.subr.mxu0 0.0
  %4932 = vmatpush1.msra.mxu0 0.0
  %4933 = vmatprep.subr.mxu0 0.0
  %4934 = vmatpush1.msra.mxu0 0.0
  %4935 = vmatprep.subr.mxu0 0.0
  %4936 = vmatpush1.msra.mxu0 0.0
  %4937 = vmatprep.mubr.f32.mxu0 0.0
  %4938 = vmatmul.mubr.f32.gmra.mrb[0].mxu0 %v2032
  %v4939 = vpop.f32.mrb[0].mxu0
  %v4940 = vadd.f32 0.0, %v4939
  %v4941 = vpop.f32.mrb[0].mxu0
  %v4942 = vadd.f32 0.0, %v4941
  %4943 = vdwg.mxu0
  %4944 = vmatprep.subr.mxu0 0.0
  %4945 = vmatpush1.msra.mxu0 %v4870
  %4946 = vmatprep.subr.mxu0 0.0
  %4947 = vmatpush1.msra.mxu0 0.0
  %4948 = vmatprep.subr.mxu0 0.0
  %4949 = vmatpush1.msra.mxu0 0.0
  %4950 = vmatprep.subr.mxu0 0.0
  %4951 = vmatpush1.msra.mxu0 0.0
  %4952 = vmatprep.subr.mxu0 0.0
  %4953 = vmatpush1.msra.mxu0 0.0
  %4954 = vmatprep.subr.mxu0 0.0
  %4955 = vmatpush1.msra.mxu0 0.0
  %4956 = vmatprep.subr.mxu0 0.0
  %4957 = vmatpush1.msra.mxu0 0.0
  %4958 = vmatprep.subr.mxu0 0.0
  %4959 = vmatpush1.msra.mxu0 0.0
  %4960 = vmatprep.subr.mxu0 0.0
  %4961 = vmatpush1.msra.mxu0 0.0
  %4962 = vmatprep.subr.mxu0 0.0
  %4963 = vmatpush1.msra.mxu0 0.0
  %4964 = vmatprep.subr.mxu0 0.0
  %4965 = vmatpush1.msra.mxu0 0.0
  %4966 = vmatprep.subr.mxu0 0.0
  %4967 = vmatpush1.msra.mxu0 0.0
  %4968 = vmatprep.subr.mxu0 0.0
  %4969 = vmatpush1.msra.mxu0 0.0
  %4970 = vmatprep.subr.mxu0 0.0
  %4971 = vmatpush1.msra.mxu0 0.0
  %4972 = vmatprep.subr.mxu0 0.0
  %4973 = vmatpush1.msra.mxu0 0.0
  %4974 = vmatprep.subr.mxu0 0.0
  %4975 = vmatpush1.msra.mxu0 0.0
  %4976 = vmatprep.subr.mxu0 0.0
  %4977 = vmatpush1.msra.mxu0 0.0
  %4978 = vmatprep.subr.mxu0 0.0
  %4979 = vmatpush1.msra.mxu0 0.0
  %4980 = vmatprep.subr.mxu0 0.0
  %4981 = vmatpush1.msra.mxu0 0.0
  %4982 = vmatprep.subr.mxu0 0.0
  %4983 = vmatpush1.msra.mxu0 0.0
  %4984 = vmatprep.subr.mxu0 0.0
  %4985 = vmatpush1.msra.mxu0 0.0
  %4986 = vmatprep.subr.mxu0 0.0
  %4987 = vmatpush1.msra.mxu0 0.0
  %4988 = vmatprep.subr.mxu0 0.0
  %4989 = vmatpush1.msra.mxu0 0.0
  %4990 = vmatprep.subr.mxu0 0.0
  %4991 = vmatpush1.msra.mxu0 0.0
  %4992 = vmatprep.subr.mxu0 0.0
  %4993 = vmatpush1.msra.mxu0 0.0
  %4994 = vmatprep.subr.mxu0 0.0
  %4995 = vmatpush1.msra.mxu0 0.0
  %4996 = vmatprep.subr.mxu0 0.0
  %4997 = vmatpush1.msra.mxu0 0.0
  %4998 = vmatprep.subr.mxu0 0.0
  %4999 = vmatpush1.msra.mxu0 0.0
  %5000 = vmatprep.subr.mxu0 0.0
  %5001 = vmatpush1.msra.mxu0 0.0
  %5002 = vmatprep.subr.mxu0 0.0
  %5003 = vmatpush1.msra.mxu0 0.0
  %5004 = vmatprep.subr.mxu0 0.0
  %5005 = vmatpush1.msra.mxu0 0.0
  %5006 = vmatprep.subr.mxu0 0.0
  %5007 = vmatpush1.msra.mxu0 0.0
  %5008 = vmatprep.mubr.f32.mxu0 0.0
  %5009 = vmatmul.mubr.f32.gmra.mrb[0].mxu0 %v2032
  %v5010 = vpop.f32.mrb[0].mxu0
  %v5011 = vadd.f32 0.0, %v5010
  %v5012 = vpop.f32.mrb[0].mxu0
  %5013 = vdwg.mxu0
  %v5014 = vadd.f32 %v4861, %v4940
  %v5015 = vadd.f32 %v4862, %v4942
  %v5016 = vadd.f32 %v4863, %v5011
  %5017 = vmatprep.subr.mxu0 %v4409
  %5018 = vmatpush1.msra.mxu0 %v4408
  %5019 = vmatprep.subr.mxu0 0.0
  %5020 = vmatpush1.msra.mxu0 0.0
  %5021 = vmatprep.subr.mxu0 0.0
  %5022 = vmatpush1.msra.mxu0 0.0
  %5023 = vmatprep.subr.mxu0 0.0
  %5024 = vmatpush1.msra.mxu0 0.0
  %5025 = vmatprep.subr.mxu0 0.0
  %5026 = vmatpush1.msra.mxu0 0.0
  %5027 = vmatprep.subr.mxu0 0.0
  %5028 = vmatpush1.msra.mxu0 0.0
  %5029 = vmatprep.subr.mxu0 0.0
  %5030 = vmatpush1.msra.mxu0 0.0
  %5031 = vmatprep.subr.mxu0 0.0
  %5032 = vmatpush1.msra.mxu0 0.0
  %5033 = vmatprep.subr.mxu0 0.0
  %5034 = vmatpush1.msra.mxu0 0.0
  %5035 = vmatprep.subr.mxu0 0.0
  %5036 = vmatpush1.msra.mxu0 0.0
  %5037 = vmatprep.subr.mxu0 0.0
  %5038 = vmatpush1.msra.mxu0 0.0
  %5039 = vmatprep.subr.mxu0 0.0
  %5040 = vmatpush1.msra.mxu0 0.0
  %5041 = vmatprep.subr.mxu0 0.0
  %5042 = vmatpush1.msra.mxu0 0.0
  %5043 = vmatprep.subr.mxu0 0.0
  %5044 = vmatpush1.msra.mxu0 0.0
  %5045 = vmatprep.subr.mxu0 0.0
  %5046 = vmatpush1.msra.mxu0 0.0
  %5047 = vmatprep.subr.mxu0 0.0
  %5048 = vmatpush1.msra.mxu0 0.0
  %5049 = vmatprep.subr.mxu0 0.0
  %5050 = vmatpush1.msra.mxu0 0.0
  %5051 = vmatprep.subr.mxu0 0.0
  %5052 = vmatpush1.msra.mxu0 0.0
  %5053 = vmatprep.subr.mxu0 0.0
  %5054 = vmatpush1.msra.mxu0 0.0
  %5055 = vmatprep.subr.mxu0 0.0
  %5056 = vmatpush1.msra.mxu0 0.0
  %5057 = vmatprep.subr.mxu0 0.0
  %5058 = vmatpush1.msra.mxu0 0.0
  %5059 = vmatprep.subr.mxu0 0.0
  %5060 = vmatpush1.msra.mxu0 0.0
  %5061 = vmatprep.subr.mxu0 0.0
  %5062 = vmatpush1.msra.mxu0 0.0
  %5063 = vmatprep.subr.mxu0 0.0
  %5064 = vmatpush1.msra.mxu0 0.0
  %5065 = vmatprep.subr.mxu0 0.0
  %5066 = vmatpush1.msra.mxu0 0.0
  %5067 = vmatprep.subr.mxu0 0.0
  %5068 = vmatpush1.msra.mxu0 0.0
  %5069 = vmatprep.subr.mxu0 0.0
  %5070 = vmatpush1.msra.mxu0 0.0
  %5071 = vmatprep.subr.mxu0 0.0
  %5072 = vmatpush1.msra.mxu0 0.0
  %5073 = vmatprep.subr.mxu0 0.0
  %5074 = vmatpush1.msra.mxu0 0.0
  %5075 = vmatprep.subr.mxu0 0.0
  %5076 = vmatpush1.msra.mxu0 0.0
  %5077 = vmatprep.subr.mxu0 0.0
  %5078 = vmatpush1.msra.mxu0 0.0
  %5079 = vmatprep.subr.mxu0 0.0
  %5080 = vmatpush1.msra.mxu0 0.0
  %5081 = vmatprep.mubr.f32.mxu0 0.0
  %5082 = vmatmul.mubr.f32.gmra.mrb[0].mxu0 %v2179
  %v5083 = vpop.f32.mrb[0].mxu0
  %v5084 = vadd.f32 0.0, %v5083
  %v5085 = vpop.f32.mrb[0].mxu0
  %v5086 = vadd.f32 0.0, %v5085
  %5087 = vdwg.mxu0
  %5088 = vmatprep.subr.mxu0 0.0
  %5089 = vmatpush1.msra.mxu0 %v4410
  %5090 = vmatprep.subr.mxu0 0.0
  %5091 = vmatpush1.msra.mxu0 0.0
  %5092 = vmatprep.subr.mxu0 0.0
  %5093 = vmatpush1.msra.mxu0 0.0
  %5094 = vmatprep.subr.mxu0 0.0
  %5095 = vmatpush1.msra.mxu0 0.0
  %5096 = vmatprep.subr.mxu0 0.0
  %5097 = vmatpush1.msra.mxu0 0.0
  %5098 = vmatprep.subr.mxu0 0.0
  %5099 = vmatpush1.msra.mxu0 0.0
  %5100 = vmatprep.subr.mxu0 0.0
  %5101 = vmatpush1.msra.mxu0 0.0
  %5102 = vmatprep.subr.mxu0 0.0
  %5103 = vmatpush1.msra.mxu0 0.0
  %5104 = vmatprep.subr.mxu0 0.0
  %5105 = vmatpush1.msra.mxu0 0.0
  %5106 = vmatprep.subr.mxu0 0.0
  %5107 = vmatpush1.msra.mxu0 0.0
  %5108 = vmatprep.subr.mxu0 0.0
  %5109 = vmatpush1.msra.mxu0 0.0
  %5110 = vmatprep.subr.mxu0 0.0
  %5111 = vmatpush1.msra.mxu0 0.0
  %5112 = vmatprep.subr.mxu0 0.0
  %5113 = vmatpush1.msra.mxu0 0.0
  %5114 = vmatprep.subr.mxu0 0.0
  %5115 = vmatpush1.msra.mxu0 0.0
  %5116 = vmatprep.subr.mxu0 0.0
  %5117 = vmatpush1.msra.mxu0 0.0
  %5118 = vmatprep.subr.mxu0 0.0
  %5119 = vmatpush1.msra.mxu0 0.0
  %5120 = vmatprep.subr.mxu0 0.0
  %5121 = vmatpush1.msra.mxu0 0.0
  %5122 = vmatprep.subr.mxu0 0.0
  %5123 = vmatpush1.msra.mxu0 0.0
  %5124 = vmatprep.subr.mxu0 0.0
  %5125 = vmatpush1.msra.mxu0 0.0
  %5126 = vmatprep.subr.mxu0 0.0
  %5127 = vmatpush1.msra.mxu0 0.0
  %5128 = vmatprep.subr.mxu0 0.0
  %5129 = vmatpush1.msra.mxu0 0.0
  %5130 = vmatprep.subr.mxu0 0.0
  %5131 = vmatpush1.msra.mxu0 0.0
  %5132 = vmatprep.subr.mxu0 0.0
  %5133 = vmatpush1.msra.mxu0 0.0
  %5134 = vmatprep.subr.mxu0 0.0
  %5135 = vmatpush1.msra.mxu0 0.0
  %5136 = vmatprep.subr.mxu0 0.0
  %5137 = vmatpush1.msra.mxu0 0.0
  %5138 = vmatprep.subr.mxu0 0.0
  %5139 = vmatpush1.msra.mxu0 0.0
  %5140 = vmatprep.subr.mxu0 0.0
  %5141 = vmatpush1.msra.mxu0 0.0
  %5142 = vmatprep.subr.mxu0 0.0
  %5143 = vmatpush1.msra.mxu0 0.0
  %5144 = vmatprep.subr.mxu0 0.0
  %5145 = vmatpush1.msra.mxu0 0.0
  %5146 = vmatprep.subr.mxu0 0.0
  %5147 = vmatpush1.msra.mxu0 0.0
  %5148 = vmatprep.subr.mxu0 0.0
  %5149 = vmatpush1.msra.mxu0 0.0
  %5150 = vmatprep.subr.mxu0 0.0
  %5151 = vmatpush1.msra.mxu0 0.0
  %5152 = vmatprep.mubr.f32.mxu0 0.0
  %5153 = vmatmul.mubr.f32.gmra.mrb[0].mxu0 %v2179
  %v5154 = vpop.f32.mrb[0].mxu0
  %v5155 = vadd.f32 0.0, %v5154
  %v5156 = vpop.f32.mrb[0].mxu0
  %5157 = vdwg.mxu0
  %v5158 = vadd.f32 %v5014, %v5084
  %v5159 = vadd.f32 %v5015, %v5086
  %v5160 = vadd.f32 %v5016, %v5155
  %5161 = vrot.lane.b32.xlu0 %v4408, 127
  %v5162 = vpop.permute.xlu0 %5161
  %5163 = vrot.lane.b32.xlu0 %v4409, 127
  %v5164 = vpop.permute.xlu0 %5163
  %5165 = vrot.lane.b32.xlu0 %v4410, 127
  %v5166 = vpop.permute.xlu0 %5165
  %v5167 = vsel %vm879, %v5164, %v5166
  %v5168 = vsel %vm879, %v5162, %v5164
  %v5169 = vsel %vm879, %v5166, %v5162
  %5170 = vmatprep.subr.mxu0 %v5167
  %5171 = vmatpush1.msra.mxu0 %v5168
  %5172 = vmatprep.subr.mxu0 0.0
  %5173 = vmatpush1.msra.mxu0 0.0
  %5174 = vmatprep.subr.mxu0 0.0
  %5175 = vmatpush1.msra.mxu0 0.0
  %5176 = vmatprep.subr.mxu0 0.0
  %5177 = vmatpush1.msra.mxu0 0.0
  %5178 = vmatprep.subr.mxu0 0.0
  %5179 = vmatpush1.msra.mxu0 0.0
  %5180 = vmatprep.subr.mxu0 0.0
  %5181 = vmatpush1.msra.mxu0 0.0
  %5182 = vmatprep.subr.mxu0 0.0
  %5183 = vmatpush1.msra.mxu0 0.0
  %5184 = vmatprep.subr.mxu0 0.0
  %5185 = vmatpush1.msra.mxu0 0.0
  %5186 = vmatprep.subr.mxu0 0.0
  %5187 = vmatpush1.msra.mxu0 0.0
  %5188 = vmatprep.subr.mxu0 0.0
  %5189 = vmatpush1.msra.mxu0 0.0
  %5190 = vmatprep.subr.mxu0 0.0
  %5191 = vmatpush1.msra.mxu0 0.0
  %5192 = vmatprep.subr.mxu0 0.0
  %5193 = vmatpush1.msra.mxu0 0.0
  %5194 = vmatprep.subr.mxu0 0.0
  %5195 = vmatpush1.msra.mxu0 0.0
  %5196 = vmatprep.subr.mxu0 0.0
  %5197 = vmatpush1.msra.mxu0 0.0
  %5198 = vmatprep.subr.mxu0 0.0
  %5199 = vmatpush1.msra.mxu0 0.0
  %5200 = vmatprep.subr.mxu0 0.0
  %5201 = vmatpush1.msra.mxu0 0.0
  %5202 = vmatprep.subr.mxu0 0.0
  %5203 = vmatpush1.msra.mxu0 0.0
  %5204 = vmatprep.subr.mxu0 0.0
  %5205 = vmatpush1.msra.mxu0 0.0
  %5206 = vmatprep.subr.mxu0 0.0
  %5207 = vmatpush1.msra.mxu0 0.0
  %5208 = vmatprep.subr.mxu0 0.0
  %5209 = vmatpush1.msra.mxu0 0.0
  %5210 = vmatprep.subr.mxu0 0.0
  %5211 = vmatpush1.msra.mxu0 0.0
  %5212 = vmatprep.subr.mxu0 0.0
  %5213 = vmatpush1.msra.mxu0 0.0
  %5214 = vmatprep.subr.mxu0 0.0
  %5215 = vmatpush1.msra.mxu0 0.0
  %5216 = vmatprep.subr.mxu0 0.0
  %5217 = vmatpush1.msra.mxu0 0.0
  %5218 = vmatprep.subr.mxu0 0.0
  %5219 = vmatpush1.msra.mxu0 0.0
  %5220 = vmatprep.subr.mxu0 0.0
  %5221 = vmatpush1.msra.mxu0 0.0
  %5222 = vmatprep.subr.mxu0 0.0
  %5223 = vmatpush1.msra.mxu0 0.0
  %5224 = vmatprep.subr.mxu0 0.0
  %5225 = vmatpush1.msra.mxu0 0.0
  %5226 = vmatprep.subr.mxu0 0.0
  %5227 = vmatpush1.msra.mxu0 0.0
  %5228 = vmatprep.subr.mxu0 0.0
  %5229 = vmatpush1.msra.mxu0 0.0
  %5230 = vmatprep.subr.mxu0 0.0
  %5231 = vmatpush1.msra.mxu0 0.0
  %5232 = vmatprep.subr.mxu0 0.0
  %5233 = vmatpush1.msra.mxu0 0.0
  %5234 = vmatprep.mubr.f32.mxu0 0.0
  %5235 = vmatmul.mubr.f32.gmra.mrb[0].mxu0 %v2335
  %v5236 = vpop.f32.mrb[0].mxu0
  %v5237 = vadd.f32 0.0, %v5236
  %v5238 = vpop.f32.mrb[0].mxu0
  %v5239 = vadd.f32 0.0, %v5238
  %5240 = vdwg.mxu0
  %5241 = vmatprep.subr.mxu0 0.0
  %5242 = vmatpush1.msra.mxu0 %v5169
  %5243 = vmatprep.subr.mxu0 0.0
  %5244 = vmatpush1.msra.mxu0 0.0
  %5245 = vmatprep.subr.mxu0 0.0
  %5246 = vmatpush1.msra.mxu0 0.0
  %5247 = vmatprep.subr.mxu0 0.0
  %5248 = vmatpush1.msra.mxu0 0.0
  %5249 = vmatprep.subr.mxu0 0.0
  %5250 = vmatpush1.msra.mxu0 0.0
  %5251 = vmatprep.subr.mxu0 0.0
  %5252 = vmatpush1.msra.mxu0 0.0
  %5253 = vmatprep.subr.mxu0 0.0
  %5254 = vmatpush1.msra.mxu0 0.0
  %5255 = vmatprep.subr.mxu0 0.0
  %5256 = vmatpush1.msra.mxu0 0.0
  %5257 = vmatprep.subr.mxu0 0.0
  %5258 = vmatpush1.msra.mxu0 0.0
  %5259 = vmatprep.subr.mxu0 0.0
  %5260 = vmatpush1.msra.mxu0 0.0
  %5261 = vmatprep.subr.mxu0 0.0
  %5262 = vmatpush1.msra.mxu0 0.0
  %5263 = vmatprep.subr.mxu0 0.0
  %5264 = vmatpush1.msra.mxu0 0.0
  %5265 = vmatprep.subr.mxu0 0.0
  %5266 = vmatpush1.msra.mxu0 0.0
  %5267 = vmatprep.subr.mxu0 0.0
  %5268 = vmatpush1.msra.mxu0 0.0
  %5269 = vmatprep.subr.mxu0 0.0
  %5270 = vmatpush1.msra.mxu0 0.0
  %5271 = vmatprep.subr.mxu0 0.0
  %5272 = vmatpush1.msra.mxu0 0.0
  %5273 = vmatprep.subr.mxu0 0.0
  %5274 = vmatpush1.msra.mxu0 0.0
  %5275 = vmatprep.subr.mxu0 0.0
  %5276 = vmatpush1.msra.mxu0 0.0
  %5277 = vmatprep.subr.mxu0 0.0
  %5278 = vmatpush1.msra.mxu0 0.0
  %5279 = vmatprep.subr.mxu0 0.0
  %5280 = vmatpush1.msra.mxu0 0.0
  %5281 = vmatprep.subr.mxu0 0.0
  %5282 = vmatpush1.msra.mxu0 0.0
  %5283 = vmatprep.subr.mxu0 0.0
  %5284 = vmatpush1.msra.mxu0 0.0
  %5285 = vmatprep.subr.mxu0 0.0
  %5286 = vmatpush1.msra.mxu0 0.0
  %5287 = vmatprep.subr.mxu0 0.0
  %5288 = vmatpush1.msra.mxu0 0.0
  %5289 = vmatprep.subr.mxu0 0.0
  %5290 = vmatpush1.msra.mxu0 0.0
  %5291 = vmatprep.subr.mxu0 0.0
  %5292 = vmatpush1.msra.mxu0 0.0
  %5293 = vmatprep.subr.mxu0 0.0
  %5294 = vmatpush1.msra.mxu0 0.0
  %5295 = vmatprep.subr.mxu0 0.0
  %5296 = vmatpush1.msra.mxu0 0.0
  %5297 = vmatprep.subr.mxu0 0.0
  %5298 = vmatpush1.msra.mxu0 0.0
  %5299 = vmatprep.subr.mxu0 0.0
  %5300 = vmatpush1.msra.mxu0 0.0
  %5301 = vmatprep.subr.mxu0 0.0
  %5302 = vmatpush1.msra.mxu0 0.0
  %5303 = vmatprep.subr.mxu0 0.0
  %5304 = vmatpush1.msra.mxu0 0.0
  %5305 = vmatprep.mubr.f32.mxu0 0.0
  %5306 = vmatmul.mubr.f32.gmra.mrb[0].mxu0 %v2335
  %v5307 = vpop.f32.mrb[0].mxu0
  %v5308 = vadd.f32 0.0, %v5307
  %v5309 = vpop.f32.mrb[0].mxu0
  %5310 = vdwg.mxu0
  %v5311 = vadd.f32 %v5158, %v5237
  %v5312 = vadd.f32 %v5159, %v5239
  %v5313 = vadd.f32 %v5160, %v5308
  %5314 = vrot.lane.b32.xlu0 %v4408, 111
  %v5315 = vpop.permute.xlu0 %5314
  %5316 = vrot.lane.b32.xlu0 %v4409, 111
  %v5317 = vpop.permute.xlu0 %5316
  %5318 = vrot.lane.b32.xlu0 %v4410, 111
  %v5319 = vpop.permute.xlu0 %5318
  %v5320 = vsel %vm1045, %v5317, %v5319
  %v5321 = vsel %vm1045, %v5315, %v5317
  %v5322 = vsel %vm1045, %v5319, %v5315
  %5323 = vmatprep.subr.mxu0 %v5320
  %5324 = vmatpush1.msra.mxu0 %v5321
  %5325 = vmatprep.subr.mxu0 0.0
  %5326 = vmatpush1.msra.mxu0 0.0
  %5327 = vmatprep.subr.mxu0 0.0
  %5328 = vmatpush1.msra.mxu0 0.0
  %5329 = vmatprep.subr.mxu0 0.0
  %5330 = vmatpush1.msra.mxu0 0.0
  %5331 = vmatprep.subr.mxu0 0.0
  %5332 = vmatpush1.msra.mxu0 0.0
  %5333 = vmatprep.subr.mxu0 0.0
  %5334 = vmatpush1.msra.mxu0 0.0
  %5335 = vmatprep.subr.mxu0 0.0
  %5336 = vmatpush1.msra.mxu0 0.0
  %5337 = vmatprep.subr.mxu0 0.0
  %5338 = vmatpush1.msra.mxu0 0.0
  %5339 = vmatprep.subr.mxu0 0.0
  %5340 = vmatpush1.msra.mxu0 0.0
  %5341 = vmatprep.subr.mxu0 0.0
  %5342 = vmatpush1.msra.mxu0 0.0
  %5343 = vmatprep.subr.mxu0 0.0
  %5344 = vmatpush1.msra.mxu0 0.0
  %5345 = vmatprep.subr.mxu0 0.0
  %5346 = vmatpush1.msra.mxu0 0.0
  %5347 = vmatprep.subr.mxu0 0.0
  %5348 = vmatpush1.msra.mxu0 0.0
  %5349 = vmatprep.subr.mxu0 0.0
  %5350 = vmatpush1.msra.mxu0 0.0
  %5351 = vmatprep.subr.mxu0 0.0
  %5352 = vmatpush1.msra.mxu0 0.0
  %5353 = vmatprep.subr.mxu0 0.0
  %5354 = vmatpush1.msra.mxu0 0.0
  %5355 = vmatprep.subr.mxu0 0.0
  %5356 = vmatpush1.msra.mxu0 0.0
  %5357 = vmatprep.subr.mxu0 0.0
  %5358 = vmatpush1.msra.mxu0 0.0
  %5359 = vmatprep.subr.mxu0 0.0
  %5360 = vmatpush1.msra.mxu0 0.0
  %5361 = vmatprep.subr.mxu0 0.0
  %5362 = vmatpush1.msra.mxu0 0.0
  %5363 = vmatprep.subr.mxu0 0.0
  %5364 = vmatpush1.msra.mxu0 0.0
  %5365 = vmatprep.subr.mxu0 0.0
  %5366 = vmatpush1.msra.mxu0 0.0
  %5367 = vmatprep.subr.mxu0 0.0
  %5368 = vmatpush1.msra.mxu0 0.0
  %5369 = vmatprep.subr.mxu0 0.0
  %5370 = vmatpush1.msra.mxu0 0.0
  %5371 = vmatprep.subr.mxu0 0.0
  %5372 = vmatpush1.msra.mxu0 0.0
  %5373 = vmatprep.subr.mxu0 0.0
  %5374 = vmatpush1.msra.mxu0 0.0
  %5375 = vmatprep.subr.mxu0 0.0
  %5376 = vmatpush1.msra.mxu0 0.0
  %5377 = vmatprep.subr.mxu0 0.0
  %5378 = vmatpush1.msra.mxu0 0.0
  %5379 = vmatprep.subr.mxu0 0.0
  %5380 = vmatpush1.msra.mxu0 0.0
  %5381 = vmatprep.subr.mxu0 0.0
  %5382 = vmatpush1.msra.mxu0 0.0
  %5383 = vmatprep.subr.mxu0 0.0
  %5384 = vmatpush1.msra.mxu0 0.0
  %5385 = vmatprep.subr.mxu0 0.0
  %5386 = vmatpush1.msra.mxu0 0.0
  %5387 = vmatprep.mubr.f32.mxu0 0.0
  %5388 = vmatmul.mubr.f32.gmra.mrb[0].mxu0 %v2491
  %v5389 = vpop.f32.mrb[0].mxu0
  %v5390 = vadd.f32 0.0, %v5389
  %v5391 = vpop.f32.mrb[0].mxu0
  %v5392 = vadd.f32 0.0, %v5391
  %5393 = vdwg.mxu0
  %5394 = vmatprep.subr.mxu0 0.0
  %5395 = vmatpush1.msra.mxu0 %v5322
  %5396 = vmatprep.subr.mxu0 0.0
  %5397 = vmatpush1.msra.mxu0 0.0
  %5398 = vmatprep.subr.mxu0 0.0
  %5399 = vmatpush1.msra.mxu0 0.0
  %5400 = vmatprep.subr.mxu0 0.0
  %5401 = vmatpush1.msra.mxu0 0.0
  %5402 = vmatprep.subr.mxu0 0.0
  %5403 = vmatpush1.msra.mxu0 0.0
  %5404 = vmatprep.subr.mxu0 0.0
  %5405 = vmatpush1.msra.mxu0 0.0
  %5406 = vmatprep.subr.mxu0 0.0
  %5407 = vmatpush1.msra.mxu0 0.0
  %5408 = vmatprep.subr.mxu0 0.0
  %5409 = vmatpush1.msra.mxu0 0.0
  %5410 = vmatprep.subr.mxu0 0.0
  %5411 = vmatpush1.msra.mxu0 0.0
  %5412 = vmatprep.subr.mxu0 0.0
  %5413 = vmatpush1.msra.mxu0 0.0
  %5414 = vmatprep.subr.mxu0 0.0
  %5415 = vmatpush1.msra.mxu0 0.0
  %5416 = vmatprep.subr.mxu0 0.0
  %5417 = vmatpush1.msra.mxu0 0.0
  %5418 = vmatprep.subr.mxu0 0.0
  %5419 = vmatpush1.msra.mxu0 0.0
  %5420 = vmatprep.subr.mxu0 0.0
  %5421 = vmatpush1.msra.mxu0 0.0
  %5422 = vmatprep.subr.mxu0 0.0
  %5423 = vmatpush1.msra.mxu0 0.0
  %5424 = vmatprep.subr.mxu0 0.0
  %5425 = vmatpush1.msra.mxu0 0.0
  %5426 = vmatprep.subr.mxu0 0.0
  %5427 = vmatpush1.msra.mxu0 0.0
  %5428 = vmatprep.subr.mxu0 0.0
  %5429 = vmatpush1.msra.mxu0 0.0
  %5430 = vmatprep.subr.mxu0 0.0
  %5431 = vmatpush1.msra.mxu0 0.0
  %5432 = vmatprep.subr.mxu0 0.0
  %5433 = vmatpush1.msra.mxu0 0.0
  %5434 = vmatprep.subr.mxu0 0.0
  %5435 = vmatpush1.msra.mxu0 0.0
  %5436 = vmatprep.subr.mxu0 0.0
  %5437 = vmatpush1.msra.mxu0 0.0
  %5438 = vmatprep.subr.mxu0 0.0
  %5439 = vmatpush1.msra.mxu0 0.0
  %5440 = vmatprep.subr.mxu0 0.0
  %5441 = vmatpush1.msra.mxu0 0.0
  %5442 = vmatprep.subr.mxu0 0.0
  %5443 = vmatpush1.msra.mxu0 0.0
  %5444 = vmatprep.subr.mxu0 0.0
  %5445 = vmatpush1.msra.mxu0 0.0
  %5446 = vmatprep.subr.mxu0 0.0
  %5447 = vmatpush1.msra.mxu0 0.0
  %5448 = vmatprep.subr.mxu0 0.0
  %5449 = vmatpush1.msra.mxu0 0.0
  %5450 = vmatprep.subr.mxu0 0.0
  %5451 = vmatpush1.msra.mxu0 0.0
  %5452 = vmatprep.subr.mxu0 0.0
  %5453 = vmatpush1.msra.mxu0 0.0
  %5454 = vmatprep.subr.mxu0 0.0
  %5455 = vmatpush1.msra.mxu0 0.0
  %5456 = vmatprep.subr.mxu0 0.0
  %5457 = vmatpush1.msra.mxu0 0.0
  %5458 = vmatprep.mubr.f32.mxu0 0.0
  %5459 = vmatmul.mubr.f32.gmra.mrb[0].mxu0 %v2491
  %v5460 = vpop.f32.mrb[0].mxu0
  %v5461 = vadd.f32 0.0, %v5460
  %v5462 = vpop.f32.mrb[0].mxu0
  %5463 = vdwg.mxu0
  %v5464 = vadd.f32 %v5311, %v5390
  %v5465 = vadd.f32 %v5312, %v5392
  %v5466 = vadd.f32 %v5313, %v5461
  %5467 = vrot.lane.b32.xlu0 %v4408, 110
  %v5468 = vpop.permute.xlu0 %5467
  %5469 = vrot.lane.b32.xlu0 %v4409, 110
  %v5470 = vpop.permute.xlu0 %5469
  %5471 = vrot.lane.b32.xlu0 %v4410, 110
  %v5472 = vpop.permute.xlu0 %5471
  %v5473 = vsel %vm1211, %v5470, %v5472
  %v5474 = vsel %vm1211, %v5468, %v5470
  %v5475 = vsel %vm1211, %v5472, %v5468
  %5476 = vmatprep.subr.mxu0 %v5473
  %5477 = vmatpush1.msra.mxu0 %v5474
  %5478 = vmatprep.subr.mxu0 0.0
  %5479 = vmatpush1.msra.mxu0 0.0
  %5480 = vmatprep.subr.mxu0 0.0
  %5481 = vmatpush1.msra.mxu0 0.0
  %5482 = vmatprep.subr.mxu0 0.0
  %5483 = vmatpush1.msra.mxu0 0.0
  %5484 = vmatprep.subr.mxu0 0.0
  %5485 = vmatpush1.msra.mxu0 0.0
  %5486 = vmatprep.subr.mxu0 0.0
  %5487 = vmatpush1.msra.mxu0 0.0
  %5488 = vmatprep.subr.mxu0 0.0
  %5489 = vmatpush1.msra.mxu0 0.0
  %5490 = vmatprep.subr.mxu0 0.0
  %5491 = vmatpush1.msra.mxu0 0.0
  %5492 = vmatprep.subr.mxu0 0.0
  %5493 = vmatpush1.msra.mxu0 0.0
  %5494 = vmatprep.subr.mxu0 0.0
  %5495 = vmatpush1.msra.mxu0 0.0
  %5496 = vmatprep.subr.mxu0 0.0
  %5497 = vmatpush1.msra.mxu0 0.0
  %5498 = vmatprep.subr.mxu0 0.0
  %5499 = vmatpush1.msra.mxu0 0.0
  %5500 = vmatprep.subr.mxu0 0.0
  %5501 = vmatpush1.msra.mxu0 0.0
  %5502 = vmatprep.subr.mxu0 0.0
  %5503 = vmatpush1.msra.mxu0 0.0
  %5504 = vmatprep.subr.mxu0 0.0
  %5505 = vmatpush1.msra.mxu0 0.0
  %5506 = vmatprep.subr.mxu0 0.0
  %5507 = vmatpush1.msra.mxu0 0.0
  %5508 = vmatprep.subr.mxu0 0.0
  %5509 = vmatpush1.msra.mxu0 0.0
  %5510 = vmatprep.subr.mxu0 0.0
  %5511 = vmatpush1.msra.mxu0 0.0
  %5512 = vmatprep.subr.mxu0 0.0
  %5513 = vmatpush1.msra.mxu0 0.0
  %5514 = vmatprep.subr.mxu0 0.0
  %5515 = vmatpush1.msra.mxu0 0.0
  %5516 = vmatprep.subr.mxu0 0.0
  %5517 = vmatpush1.msra.mxu0 0.0
  %5518 = vmatprep.subr.mxu0 0.0
  %5519 = vmatpush1.msra.mxu0 0.0
  %5520 = vmatprep.subr.mxu0 0.0
  %5521 = vmatpush1.msra.mxu0 0.0
  %5522 = vmatprep.subr.mxu0 0.0
  %5523 = vmatpush1.msra.mxu0 0.0
  %5524 = vmatprep.subr.mxu0 0.0
  %5525 = vmatpush1.msra.mxu0 0.0
  %5526 = vmatprep.subr.mxu0 0.0
  %5527 = vmatpush1.msra.mxu0 0.0
  %5528 = vmatprep.subr.mxu0 0.0
  %5529 = vmatpush1.msra.mxu0 0.0
  %5530 = vmatprep.subr.mxu0 0.0
  %5531 = vmatpush1.msra.mxu0 0.0
  %5532 = vmatprep.subr.mxu0 0.0
  %5533 = vmatpush1.msra.mxu0 0.0
  %5534 = vmatprep.subr.mxu0 0.0
  %5535 = vmatpush1.msra.mxu0 0.0
  %5536 = vmatprep.subr.mxu0 0.0
  %5537 = vmatpush1.msra.mxu0 0.0
  %5538 = vmatprep.subr.mxu0 0.0
  %5539 = vmatpush1.msra.mxu0 0.0
  %5540 = vmatprep.mubr.f32.mxu0 0.0
  %5541 = vmatmul.mubr.f32.gmra.mrb[0].mxu0 %v2647
  %v5542 = vpop.f32.mrb[0].mxu0
  %v5543 = vadd.f32 0.0, %v5542
  %v5544 = vpop.f32.mrb[0].mxu0
  %v5545 = vadd.f32 0.0, %v5544
  %5546 = vdwg.mxu0
  %5547 = vmatprep.subr.mxu0 0.0
  %5548 = vmatpush1.msra.mxu0 %v5475
  %5549 = vmatprep.subr.mxu0 0.0
  %5550 = vmatpush1.msra.mxu0 0.0
  %5551 = vmatprep.subr.mxu0 0.0
  %5552 = vmatpush1.msra.mxu0 0.0
  %5553 = vmatprep.subr.mxu0 0.0
  %5554 = vmatpush1.msra.mxu0 0.0
  %5555 = vmatprep.subr.mxu0 0.0
  %5556 = vmatpush1.msra.mxu0 0.0
  %5557 = vmatprep.subr.mxu0 0.0
  %5558 = vmatpush1.msra.mxu0 0.0
  %5559 = vmatprep.subr.mxu0 0.0
  %5560 = vmatpush1.msra.mxu0 0.0
  %5561 = vmatprep.subr.mxu0 0.0
  %5562 = vmatpush1.msra.mxu0 0.0
  %5563 = vmatprep.subr.mxu0 0.0
  %5564 = vmatpush1.msra.mxu0 0.0
  %5565 = vmatprep.subr.mxu0 0.0
  %5566 = vmatpush1.msra.mxu0 0.0
  %5567 = vmatprep.subr.mxu0 0.0
  %5568 = vmatpush1.msra.mxu0 0.0
  %5569 = vmatprep.subr.mxu0 0.0
  %5570 = vmatpush1.msra.mxu0 0.0
  %5571 = vmatprep.subr.mxu0 0.0
  %5572 = vmatpush1.msra.mxu0 0.0
  %5573 = vmatprep.subr.mxu0 0.0
  %5574 = vmatpush1.msra.mxu0 0.0
  %5575 = vmatprep.subr.mxu0 0.0
  %5576 = vmatpush1.msra.mxu0 0.0
  %5577 = vmatprep.subr.mxu0 0.0
  %5578 = vmatpush1.msra.mxu0 0.0
  %5579 = vmatprep.subr.mxu0 0.0
  %5580 = vmatpush1.msra.mxu0 0.0
  %5581 = vmatprep.subr.mxu0 0.0
  %5582 = vmatpush1.msra.mxu0 0.0
  %5583 = vmatprep.subr.mxu0 0.0
  %5584 = vmatpush1.msra.mxu0 0.0
  %5585 = vmatprep.subr.mxu0 0.0
  %5586 = vmatpush1.msra.mxu0 0.0
  %5587 = vmatprep.subr.mxu0 0.0
  %5588 = vmatpush1.msra.mxu0 0.0
  %5589 = vmatprep.subr.mxu0 0.0
  %5590 = vmatpush1.msra.mxu0 0.0
  %5591 = vmatprep.subr.mxu0 0.0
  %5592 = vmatpush1.msra.mxu0 0.0
  %5593 = vmatprep.subr.mxu0 0.0
  %5594 = vmatpush1.msra.mxu0 0.0
  %5595 = vmatprep.subr.mxu0 0.0
  %5596 = vmatpush1.msra.mxu0 0.0
  %5597 = vmatprep.subr.mxu0 0.0
  %5598 = vmatpush1.msra.mxu0 0.0
  %5599 = vmatprep.subr.mxu0 0.0
  %5600 = vmatpush1.msra.mxu0 0.0
  %5601 = vmatprep.subr.mxu0 0.0
  %5602 = vmatpush1.msra.mxu0 0.0
  %5603 = vmatprep.subr.mxu0 0.0
  %5604 = vmatpush1.msra.mxu0 0.0
  %5605 = vmatprep.subr.mxu0 0.0
  %5606 = vmatpush1.msra.mxu0 0.0
  %5607 = vmatprep.subr.mxu0 0.0
  %5608 = vmatpush1.msra.mxu0 0.0
  %5609 = vmatprep.subr.mxu0 0.0
  %5610 = vmatpush1.msra.mxu0 0.0
  %5611 = vmatprep.mubr.f32.mxu0 0.0
  %5612 = vmatmul.mubr.f32.gmra.mrb[0].mxu0 %v2647
  %v5613 = vpop.f32.mrb[0].mxu0
  %v5614 = vadd.f32 0.0, %v5613
  %v5615 = vpop.f32.mrb[0].mxu0
  %5616 = vdwg.mxu0
  %v5617 = vadd.f32 %v5464, %v5543
  %v5618 = vadd.f32 %v5465, %v5545
  %v5619 = vadd.f32 %v5466, %v5614
  %5620 = vrot.lane.b32.xlu0 %v4408, 109
  %v5621 = vpop.permute.xlu0 %5620
  %5622 = vrot.lane.b32.xlu0 %v4409, 109
  %v5623 = vpop.permute.xlu0 %5622
  %5624 = vrot.lane.b32.xlu0 %v4410, 109
  %v5625 = vpop.permute.xlu0 %5624
  %v5626 = vsel %vm1377, %v5623, %v5625
  %v5627 = vsel %vm1377, %v5621, %v5623
  %v5628 = vsel %vm1377, %v5625, %v5621
  %5629 = vmatprep.subr.mxu0 %v5626
  %5630 = vmatpush1.msra.mxu0 %v5627
  %5631 = vmatprep.subr.mxu0 0.0
  %5632 = vmatpush1.msra.mxu0 0.0
  %5633 = vmatprep.subr.mxu0 0.0
  %5634 = vmatpush1.msra.mxu0 0.0
  %5635 = vmatprep.subr.mxu0 0.0
  %5636 = vmatpush1.msra.mxu0 0.0
  %5637 = vmatprep.subr.mxu0 0.0
  %5638 = vmatpush1.msra.mxu0 0.0
  %5639 = vmatprep.subr.mxu0 0.0
  %5640 = vmatpush1.msra.mxu0 0.0
  %5641 = vmatprep.subr.mxu0 0.0
  %5642 = vmatpush1.msra.mxu0 0.0
  %5643 = vmatprep.subr.mxu0 0.0
  %5644 = vmatpush1.msra.mxu0 0.0
  %5645 = vmatprep.subr.mxu0 0.0
  %5646 = vmatpush1.msra.mxu0 0.0
  %5647 = vmatprep.subr.mxu0 0.0
  %5648 = vmatpush1.msra.mxu0 0.0
  %5649 = vmatprep.subr.mxu0 0.0
  %5650 = vmatpush1.msra.mxu0 0.0
  %5651 = vmatprep.subr.mxu0 0.0
  %5652 = vmatpush1.msra.mxu0 0.0
  %5653 = vmatprep.subr.mxu0 0.0
  %5654 = vmatpush1.msra.mxu0 0.0
  %5655 = vmatprep.subr.mxu0 0.0
  %5656 = vmatpush1.msra.mxu0 0.0
  %5657 = vmatprep.subr.mxu0 0.0
  %5658 = vmatpush1.msra.mxu0 0.0
  %5659 = vmatprep.subr.mxu0 0.0
  %5660 = vmatpush1.msra.mxu0 0.0
  %5661 = vmatprep.subr.mxu0 0.0
  %5662 = vmatpush1.msra.mxu0 0.0
  %5663 = vmatprep.subr.mxu0 0.0
  %5664 = vmatpush1.msra.mxu0 0.0
  %5665 = vmatprep.subr.mxu0 0.0
  %5666 = vmatpush1.msra.mxu0 0.0
  %5667 = vmatprep.subr.mxu0 0.0
  %5668 = vmatpush1.msra.mxu0 0.0
  %5669 = vmatprep.subr.mxu0 0.0
  %5670 = vmatpush1.msra.mxu0 0.0
  %5671 = vmatprep.subr.mxu0 0.0
  %5672 = vmatpush1.msra.mxu0 0.0
  %5673 = vmatprep.subr.mxu0 0.0
  %5674 = vmatpush1.msra.mxu0 0.0
  %5675 = vmatprep.subr.mxu0 0.0
  %5676 = vmatpush1.msra.mxu0 0.0
  %5677 = vmatprep.subr.mxu0 0.0
  %5678 = vmatpush1.msra.mxu0 0.0
  %5679 = vmatprep.subr.mxu0 0.0
  %5680 = vmatpush1.msra.mxu0 0.0
  %5681 = vmatprep.subr.mxu0 0.0
  %5682 = vmatpush1.msra.mxu0 0.0
  %5683 = vmatprep.subr.mxu0 0.0
  %5684 = vmatpush1.msra.mxu0 0.0
  %5685 = vmatprep.subr.mxu0 0.0
  %5686 = vmatpush1.msra.mxu0 0.0
  %5687 = vmatprep.subr.mxu0 0.0
  %5688 = vmatpush1.msra.mxu0 0.0
  %5689 = vmatprep.subr.mxu0 0.0
  %5690 = vmatpush1.msra.mxu0 0.0
  %5691 = vmatprep.subr.mxu0 0.0
  %5692 = vmatpush1.msra.mxu0 0.0
  %5693 = vmatprep.mubr.f32.mxu0 0.0
  %5694 = vmatmul.mubr.f32.gmra.mrb[0].mxu0 %v2803
  %v5695 = vpop.f32.mrb[0].mxu0
  %v5696 = vadd.f32 0.0, %v5695
  %v5697 = vpop.f32.mrb[0].mxu0
  %v5698 = vadd.f32 0.0, %v5697
  %5699 = vdwg.mxu0
  %5700 = vmatprep.subr.mxu0 0.0
  %5701 = vmatpush1.msra.mxu0 %v5628
  %5702 = vmatprep.subr.mxu0 0.0
  %5703 = vmatpush1.msra.mxu0 0.0
  %5704 = vmatprep.subr.mxu0 0.0
  %5705 = vmatpush1.msra.mxu0 0.0
  %5706 = vmatprep.subr.mxu0 0.0
  %5707 = vmatpush1.msra.mxu0 0.0
  %5708 = vmatprep.subr.mxu0 0.0
  %5709 = vmatpush1.msra.mxu0 0.0
  %5710 = vmatprep.subr.mxu0 0.0
  %5711 = vmatpush1.msra.mxu0 0.0
  %5712 = vmatprep.subr.mxu0 0.0
  %5713 = vmatpush1.msra.mxu0 0.0
  %5714 = vmatprep.subr.mxu0 0.0
  %5715 = vmatpush1.msra.mxu0 0.0
  %5716 = vmatprep.subr.mxu0 0.0
  %5717 = vmatpush1.msra.mxu0 0.0
  %5718 = vmatprep.subr.mxu0 0.0
  %5719 = vmatpush1.msra.mxu0 0.0
  %5720 = vmatprep.subr.mxu0 0.0
  %5721 = vmatpush1.msra.mxu0 0.0
  %5722 = vmatprep.subr.mxu0 0.0
  %5723 = vmatpush1.msra.mxu0 0.0
  %5724 = vmatprep.subr.mxu0 0.0
  %5725 = vmatpush1.msra.mxu0 0.0
  %5726 = vmatprep.subr.mxu0 0.0
  %5727 = vmatpush1.msra.mxu0 0.0
  %5728 = vmatprep.subr.mxu0 0.0
  %5729 = vmatpush1.msra.mxu0 0.0
  %5730 = vmatprep.subr.mxu0 0.0
  %5731 = vmatpush1.msra.mxu0 0.0
  %5732 = vmatprep.subr.mxu0 0.0
  %5733 = vmatpush1.msra.mxu0 0.0
  %5734 = vmatprep.subr.mxu0 0.0
  %5735 = vmatpush1.msra.mxu0 0.0
  %5736 = vmatprep.subr.mxu0 0.0
  %5737 = vmatpush1.msra.mxu0 0.0
  %5738 = vmatprep.subr.mxu0 0.0
  %5739 = vmatpush1.msra.mxu0 0.0
  %5740 = vmatprep.subr.mxu0 0.0
  %5741 = vmatpush1.msra.mxu0 0.0
  %5742 = vmatprep.subr.mxu0 0.0
  %5743 = vmatpush1.msra.mxu0 0.0
  %5744 = vmatprep.subr.mxu0 0.0
  %5745 = vmatpush1.msra.mxu0 0.0
  %5746 = vmatprep.subr.mxu0 0.0
  %5747 = vmatpush1.msra.mxu0 0.0
  %5748 = vmatprep.subr.mxu0 0.0
  %5749 = vmatpush1.msra.mxu0 0.0
  %5750 = vmatprep.subr.mxu0 0.0
  %5751 = vmatpush1.msra.mxu0 0.0
  %5752 = vmatprep.subr.mxu0 0.0
  %5753 = vmatpush1.msra.mxu0 0.0
  %5754 = vmatprep.subr.mxu0 0.0
  %5755 = vmatpush1.msra.mxu0 0.0
  %5756 = vmatprep.subr.mxu0 0.0
  %5757 = vmatpush1.msra.mxu0 0.0
  %5758 = vmatprep.subr.mxu0 0.0
  %5759 = vmatpush1.msra.mxu0 0.0
  %5760 = vmatprep.subr.mxu0 0.0
  %5761 = vmatpush1.msra.mxu0 0.0
  %5762 = vmatprep.subr.mxu0 0.0
  %5763 = vmatpush1.msra.mxu0 0.0
  %5764 = vmatprep.mubr.f32.mxu0 0.0
  %5765 = vmatmul.mubr.f32.gmra.mrb[0].mxu0 %v2803
  %v5766 = vpop.f32.mrb[0].mxu0
  %v5767 = vadd.f32 0.0, %v5766
  %v5768 = vpop.f32.mrb[0].mxu0
  %5769 = vdwg.mxu0
  %v5770 = vadd.f32 %v5617, %v5696
  %v5771 = vadd.f32 %v5618, %v5698
  %v5772 = vadd.f32 %v5619, %v5767
  %v5773 = vmax.f32 %v5770, 0.0
  %v5774 = vmax.f32 %v5771, 0.0
  %v5775 = vmax.f32 %v5772, 0.0
  %v5778 = vcombine.low %v5773, %v5774
  %s5780 = scalar_lea.vmem %s4, 12
  %5781 = vst [vmem:[%s5780] sm:$0xff] %v5778
  %5782 = vst [vmem:[%s5780 + $0x8] sm:$0xf] %v5775
  // Predicated region
  $region18: #{fpn_head_pallas.1} parent=0 // pred_check
    _
  $region19: #{fpn_head_pallas.1} parent=0 // pred_check_branch
    %5784 = sbr.rel (0) target = $region21
  $region20: #{fpn_head_pallas.1} parent=0 // pred_region
    _
  $region21: #{fpn_head_pallas.1} parent=0 // pred_fallthru
    _
  // Predicated region
  $region22: #{fpn_head_pallas.1} parent=0 // pred_check
    _
  $region23: #{fpn_head_pallas.1} parent=0 // pred_check_branch
    %5786 = sbr.rel (0) target = $region25
  $region24: #{fpn_head_pallas.1} parent=0 // pred_region
    _
  $region25: #{fpn_head_pallas.1} parent=0 // pred_fallthru
    _

</llo_original>
